<compile_context>
chip_gen: v7x
topology: tpu7x:2x2x1
jax: 0.10.0
libtpu: 0.0.40
codegen_flags: <defaults>
</compile_context>

<pallas_src>
import numpy as np

import jax
import jax.numpy as jnp
from jax import lax
from jax.experimental import pallas as pl
from jax.experimental.pallas import tpu as pltpu


# ------------------------------ fused kernel --------------------------------

def _lenet_kernel(x_ref, b1m_ref, b1b_ref, me1_ref, mo1_ref, ce1_ref, co1_ref,
                  b2m_ref, b2b_ref, me2_ref, mo2_ref, ce2_ref, co2_ref,
                  wf1_ref, bf1_ref, wf2_ref, bf2_ref, wf3_ref, bf3_ref,
                  out_ref):
    """Whole LeNet forward for a small batch, fully VMEM-resident."""
    f32 = jnp.float32

    def dot(a, b):
        return jnp.dot(a, b, preferred_element_type=f32)

    n_imgs = x_ref.shape[0]
    for n in range(n_imgs):                       # tiny batch -> unrolled
        xn = x_ref[n]                             # (28, 28)

        # conv1 + bias + relu: out lanes = ow*6 + oc  -> (24, 144)
        a1 = dot(xn[0:24, :], b1m_ref[0])
        for ki in range(1, 5):
            a1 = a1 + dot(xn[ki:ki + 24, :], b1m_ref[ki])
        a1 = jnp.maximum(a1 + b1b_ref[...], 0.0)

        # max-pool 2x2: rows via selection matmul, lanes via selection matmul
        h1 = jnp.maximum(dot(me1_ref[...], a1), dot(mo1_ref[...], a1))  # (12,144)
        p1 = jnp.maximum(dot(h1, ce1_ref[...]), dot(h1, co1_ref[...]))  # (12, 72)

        # conv2 + bias + relu: in lanes = w*6 + c, out lanes = ow*12 + oc
        a2 = dot(p1[0:8, :], b2m_ref[0])
        for ki in range(1, 5):
            a2 = a2 + dot(p1[ki:ki + 8, :], b2m_ref[ki])
        a2 = jnp.maximum(a2 + b2b_ref[...], 0.0)                        # (8, 96)

        # max-pool 2x2
        h2 = jnp.maximum(dot(me2_ref[...], a2), dot(mo2_ref[...], a2))  # (4, 96)
        p2 = jnp.maximum(dot(h2, ce2_ref[...]), dot(h2, co2_ref[...]))  # (4, 48)

        # fc1 (+relu): 4 row-block matmuls reproduce PyTorch's NCHW flatten
        f1 = bf1_ref[...]                                               # (1,120)
        for i in range(4):
            f1 = f1 + dot(p2[i:i + 1, :], wf1_ref[i])
        f1 = jnp.maximum(f1, 0.0)

        # fc2 (+relu) and output layer, chained in-register
        f2 = jnp.maximum(dot(f1, wf2_ref[...]) + bf2_ref[...], 0.0)     # (1, 60)
        f3 = dot(f2, wf3_ref[...]) + bf3_ref[...]                       # (1, 10)

        out_ref[n:n + 1, :] = f3


# --------------------------- parameter packing ------------------------------

def init_params(key):
    """Same parameterization as the PyTorch module (NCHW / OIHW layouts)."""
    def uni(k, shape, fan_in):
        bound = 1.0 / jnp.sqrt(jnp.float32(fan_in))
        return jax.random.uniform(k, shape, jnp.float32, -bound, bound)

    ks = jax.random.split(key, 10)
    return {
        "conv1_w": uni(ks[0], (6, 1, 5, 5), 1 * 5 * 5),
        "conv1_b": uni(ks[1], (6,), 1 * 5 * 5),
        "conv2_w": uni(ks[2], (12, 6, 5, 5), 6 * 5 * 5),
        "conv2_b": uni(ks[3], (12,), 6 * 5 * 5),
        "fc1_w":   uni(ks[4], (120, 192), 192),
        "fc1_b":   uni(ks[5], (120,), 192),
        "fc2_w":   uni(ks[6], (60, 120), 120),
        "fc2_b":   uni(ks[7], (60,), 120),
        "out_w":   uni(ks[8], (10, 60), 60),
        "out_b":   uni(ks[9], (10,), 60),
    }


def pack_params(params):
    """One-time host-side packing of weights into kernel-friendly layouts."""
    w1 = np.asarray(params["conv1_w"], np.float32)   # (6, 1, 5, 5)
    b1 = np.asarray(params["conv1_b"], np.float32)   # (6,)
    w2 = np.asarray(params["conv2_w"], np.float32)   # (12, 6, 5, 5)
    b2 = np.asarray(params["conv2_b"], np.float32)   # (12,)
    fc1_w = np.asarray(params["fc1_w"], np.float32)  # (120, 192)
    fc1_b = np.asarray(params["fc1_b"], np.float32)
    fc2_w = np.asarray(params["fc2_w"], np.float32)  # (60, 120)
    fc2_b = np.asarray(params["fc2_b"], np.float32)
    out_w = np.asarray(params["out_w"], np.float32)  # (10, 60)
    out_b = np.asarray(params["out_b"], np.float32)

    # conv1 structured matrices: B1[ki, w_in, ow*6 + oc] = w1[oc, 0, ki, w_in-ow]
    B1 = np.zeros((5, 28, 24 * 6), np.float32)
    for ki in range(5):
        for kj in range(5):
            for ow in range(24):
                B1[ki, ow + kj, ow * 6:(ow + 1) * 6] += w1[:, 0, ki, kj]
    b1_lane = np.tile(b1, 24)[None, :]                        # (1, 144)

    # conv2 structured matrices: B2[ki, w*6+c, ow*12+oc] = w2[oc, c, ki, w-ow]
    B2 = np.zeros((5, 12 * 6, 8 * 12), np.float32)
    for ki in range(5):
        for kj in range(5):
            for ow in range(8):
                w_in = ow + kj
                B2[ki, w_in * 6:(w_in + 1) * 6,
                   ow * 12:(ow + 1) * 12] += w2[:, :, ki, kj].T   # (c, oc)
    b2_lane = np.tile(b2, 8)[None, :]                         # (1, 96)

    # pool selection matrices (0/1): rows select H pairs, lanes select W pairs.
    Me1 = np.zeros((12, 24), np.float32); Me1[np.arange(12), 2 * np.arange(12)] = 1
    Mo1 = np.zeros((12, 24), np.float32); Mo1[np.arange(12), 2 * np.arange(12) + 1] = 1
    Ce1 = np.zeros((144, 72), np.float32)
    Co1 = np.zeros((144, 72), np.float32)
    for j in range(12):
        for c in range(6):
            Ce1[(2 * j) * 6 + c, j * 6 + c] = 1
            Co1[(2 * j + 1) * 6 + c, j * 6 + c] = 1
    Me2 = np.zeros((4, 8), np.float32); Me2[np.arange(4), 2 * np.arange(4)] = 1
    Mo2 = np.zeros((4, 8), np.float32); Mo2[np.arange(4), 2 * np.arange(4) + 1] = 1
    Ce2 = np.zeros((96, 48), np.float32)
    Co2 = np.zeros((96, 48), np.float32)
    for j in range(4):
        for c in range(12):
            Ce2[(2 * j) * 12 + c, j * 12 + c] = 1
            Co2[(2 * j + 1) * 12 + c, j * 12 + c] = 1

    # fc1 weight permuted so Wf1[i, j*12+c, o] = fc1_w[o, c*16 + i*4 + j]
    Wf1 = fc1_w.reshape(120, 12, 4, 4).transpose(2, 3, 1, 0).reshape(4, 48, 120)
    bf1 = fc1_b[None, :]                                      # (1, 120)
    Wf2 = fc2_w.T.copy()                                      # (120, 60)
    bf2 = fc2_b[None, :]
    Wf3 = out_w.T.copy()                                      # (60, 10)
    bf3 = out_b[None, :]

    return {
        "B1": B1, "b1": b1_lane, "Me1": Me1, "Mo1": Mo1, "Ce1": Ce1, "Co1": Co1,
        "B2": B2, "b2": b2_lane, "Me2": Me2, "Mo2": Mo2, "Ce2": Ce2, "Co2": Co2,
        "Wf1": Wf1, "bf1": bf1, "Wf2": Wf2, "bf2": bf2, "Wf3": Wf3, "bf3": bf3,
    }


# ------------------------------ the network ---------------------------------

def network_forward(packed, x):
    """x: (N, 1, 28, 28) float32 -> (N, 10) float32, single fused pallas_call."""
    N = x.shape[0]
    x3 = x.reshape(N, 28, 28).astype(jnp.float32)   # drop the size-1 channel

    args = (x3,
            packed["B1"], packed["b1"],
            packed["Me1"], packed["Mo1"], packed["Ce1"], packed["Co1"],
            packed["B2"], packed["b2"],
            packed["Me2"], packed["Mo2"], packed["Ce2"], packed["Co2"],
            packed["Wf1"], packed["bf1"],
            packed["Wf2"], packed["bf2"],
            packed["Wf3"], packed["bf3"])

    vmem = pl.BlockSpec(memory_space=pltpu.MemorySpace.VMEM)
    return pl.pallas_call(
        _lenet_kernel,
        out_shape=jax.ShapeDtypeStruct((N, 10), jnp.float32),
        in_specs=[vmem] * len(args),
        out_specs=vmem,
    )(*args)


# --------------------------- pure-JAX reference ------------------------------

def network_reference(params, x):
    dn = lax.conv_dimension_numbers(x.shape, params["conv1_w"].shape,
                                    ("NCHW", "OIHW", "NCHW"))
    t = lax.conv_general_dilated(x, params["conv1_w"], (1, 1), "VALID",
                                 dimension_numbers=dn)
    t = jax.nn.relu(t + params["conv1_b"][None, :, None, None])
    t = lax.reduce_window(t, -jnp.inf, lax.max, (1, 1, 2, 2), (1, 1, 2, 2), "VALID")
    dn = lax.conv_dimension_numbers(t.shape, params["conv2_w"].shape,
                                    ("NCHW", "OIHW", "NCHW"))
    t = lax.conv_general_dilated(t, params["conv2_w"], (1, 1), "VALID",
                                 dimension_numbers=dn)
    t = jax.nn.relu(t + params["conv2_b"][None, :, None, None])
    t = lax.reduce_window(t, -jnp.inf, lax.max, (1, 1, 2, 2), (1, 1, 2, 2), "VALID")
    t = t.reshape(t.shape[0], -1)
    t = jax.nn.relu(t @ params["fc1_w"].T + params["fc1_b"])
    t = jax.nn.relu(t @ params["fc2_w"].T + params["fc2_b"])
    return t @ params["out_w"].T + params["out_b"]


if __name__ == "__main__":
    key = jax.random.PRNGKey(0)
    pkey, xkey = jax.random.split(key)
    params = init_params(pkey)
    packed = pack_params(params)

    # Input shape forced by the architecture: 28x28 single-channel images.
    x = jax.random.normal(xkey, (2, 1, 28, 28), dtype=jnp.float32)

    out = jax.jit(network_forward)(packed, x)
    out = jax.block_until_ready(out)

    ref = network_reference(params, x)
    assert out.shape == (2, 10)
    assert jnp.allclose(out, ref, atol=5e-4, rtol=5e-4), "mismatch vs JAX reference"

    print("KERNEL_OK")
</pallas_src>

<mosaic_0001>
module attributes {stable_mosaic.version = 11 : i64} {
  func.func @_lenet_kernel(%arg0: memref<2x28x28xf32, #tpu.memory_space<vmem>>, %arg1: memref<5x28x144xf32, #tpu.memory_space<vmem>>, %arg2: memref<1x144xf32, #tpu.memory_space<vmem>>, %arg3: memref<12x24xf32, #tpu.memory_space<vmem>>, %arg4: memref<12x24xf32, #tpu.memory_space<vmem>>, %arg5: memref<144x72xf32, #tpu.memory_space<vmem>>, %arg6: memref<144x72xf32, #tpu.memory_space<vmem>>, %arg7: memref<5x72x96xf32, #tpu.memory_space<vmem>>, %arg8: memref<1x96xf32, #tpu.memory_space<vmem>>, %arg9: memref<4x8xf32, #tpu.memory_space<vmem>>, %arg10: memref<4x8xf32, #tpu.memory_space<vmem>>, %arg11: memref<96x48xf32, #tpu.memory_space<vmem>>, %arg12: memref<96x48xf32, #tpu.memory_space<vmem>>, %arg13: memref<4x48x120xf32, #tpu.memory_space<vmem>>, %arg14: memref<1x120xf32, #tpu.memory_space<vmem>>, %arg15: memref<120x60xf32, #tpu.memory_space<vmem>>, %arg16: memref<1x60xf32, #tpu.memory_space<vmem>>, %arg17: memref<60x10xf32, #tpu.memory_space<vmem>>, %arg18: memref<1x10xf32, #tpu.memory_space<vmem>>, %arg19: memref<2x10xf32, #tpu.memory_space<vmem>>) attributes {dimension_semantics = [], scalar_prefetch = 0 : i64, scratch_operands = 0 : i64, tpu.core_type = #tpu.core_type<tc>} {
    %c0 = arith.constant 0 : index
    %c0_0 = arith.constant 0 : index
    %c0_1 = arith.constant 0 : index
    %0 = vector.load %arg0[%c0, %c0_0, %c0_1] : memref<2x28x28xf32, #tpu.memory_space<vmem>>, vector<1x28x28xf32>
    %1 = vector.shape_cast %0 : vector<1x28x28xf32> to vector<28x28xf32>
    %2 = vector.extract_strided_slice %1 {offsets = [0, 0], sizes = [24, 28], strides = [1, 1]} : vector<28x28xf32> to vector<24x28xf32>
    %c0_2 = arith.constant 0 : index
    %c0_3 = arith.constant 0 : index
    %c0_4 = arith.constant 0 : index
    %3 = vector.load %arg1[%c0_2, %c0_3, %c0_4] : memref<5x28x144xf32, #tpu.memory_space<vmem>>, vector<1x28x144xf32>
    %4 = vector.shape_cast %3 : vector<1x28x144xf32> to vector<28x144xf32>
    %cst = arith.constant dense<0.000000e+00> : vector<24x144xf32>
    %5 = tpu.matmul %2, %4, %cst {dimension_numbers = #tpu.dot_dimension_numbers<[1], [0], [0], [1], [0, 0, 1, 1], [], []>} : vector<24x28xf32>, vector<28x144xf32>, vector<24x144xf32> -> vector<24x144xf32>
    %6 = vector.extract_strided_slice %1 {offsets = [1, 0], sizes = [24, 28], strides = [1, 1]} : vector<28x28xf32> to vector<24x28xf32>
    %c1 = arith.constant 1 : index
    %c0_5 = arith.constant 0 : index
    %c0_6 = arith.constant 0 : index
    %7 = vector.load %arg1[%c1, %c0_5, %c0_6] : memref<5x28x144xf32, #tpu.memory_space<vmem>>, vector<1x28x144xf32>
    %8 = vector.shape_cast %7 : vector<1x28x144xf32> to vector<28x144xf32>
    %cst_7 = arith.constant dense<0.000000e+00> : vector<24x144xf32>
    %9 = tpu.matmul %6, %8, %cst_7 {dimension_numbers = #tpu.dot_dimension_numbers<[1], [0], [0], [1], [0, 0, 1, 1], [], []>} : vector<24x28xf32>, vector<28x144xf32>, vector<24x144xf32> -> vector<24x144xf32>
    %10 = arith.addf %5, %9 : vector<24x144xf32>
    %11 = vector.extract_strided_slice %1 {offsets = [2, 0], sizes = [24, 28], strides = [1, 1]} : vector<28x28xf32> to vector<24x28xf32>
    %c2 = arith.constant 2 : index
    %c0_8 = arith.constant 0 : index
    %c0_9 = arith.constant 0 : index
    %12 = vector.load %arg1[%c2, %c0_8, %c0_9] : memref<5x28x144xf32, #tpu.memory_space<vmem>>, vector<1x28x144xf32>
    %13 = vector.shape_cast %12 : vector<1x28x144xf32> to vector<28x144xf32>
    %cst_10 = arith.constant dense<0.000000e+00> : vector<24x144xf32>
    %14 = tpu.matmul %11, %13, %cst_10 {dimension_numbers = #tpu.dot_dimension_numbers<[1], [0], [0], [1], [0, 0, 1, 1], [], []>} : vector<24x28xf32>, vector<28x144xf32>, vector<24x144xf32> -> vector<24x144xf32>
    %15 = arith.addf %10, %14 : vector<24x144xf32>
    %16 = vector.extract_strided_slice %1 {offsets = [3, 0], sizes = [24, 28], strides = [1, 1]} : vector<28x28xf32> to vector<24x28xf32>
    %c3 = arith.constant 3 : index
    %c0_11 = arith.constant 0 : index
    %c0_12 = arith.constant 0 : index
    %17 = vector.load %arg1[%c3, %c0_11, %c0_12] : memref<5x28x144xf32, #tpu.memory_space<vmem>>, vector<1x28x144xf32>
    %18 = vector.shape_cast %17 : vector<1x28x144xf32> to vector<28x144xf32>
    %cst_13 = arith.constant dense<0.000000e+00> : vector<24x144xf32>
    %19 = tpu.matmul %16, %18, %cst_13 {dimension_numbers = #tpu.dot_dimension_numbers<[1], [0], [0], [1], [0, 0, 1, 1], [], []>} : vector<24x28xf32>, vector<28x144xf32>, vector<24x144xf32> -> vector<24x144xf32>
    %20 = arith.addf %15, %19 : vector<24x144xf32>
    %21 = vector.extract_strided_slice %1 {offsets = [4, 0], sizes = [24, 28], strides = [1, 1]} : vector<28x28xf32> to vector<24x28xf32>
    %c4 = arith.constant 4 : index
    %c0_14 = arith.constant 0 : index
    %c0_15 = arith.constant 0 : index
    %22 = vector.load %arg1[%c4, %c0_14, %c0_15] : memref<5x28x144xf32, #tpu.memory_space<vmem>>, vector<1x28x144xf32>
    %23 = vector.shape_cast %22 : vector<1x28x144xf32> to vector<28x144xf32>
    %cst_16 = arith.constant dense<0.000000e+00> : vector<24x144xf32>
    %24 = tpu.matmul %21, %23, %cst_16 {dimension_numbers = #tpu.dot_dimension_numbers<[1], [0], [0], [1], [0, 0, 1, 1], [], []>} : vector<24x28xf32>, vector<28x144xf32>, vector<24x144xf32> -> vector<24x144xf32>
    %25 = arith.addf %20, %24 : vector<24x144xf32>
    %c0_17 = arith.constant 0 : index
    %c0_18 = arith.constant 0 : index
    %26 = vector.load %arg2[%c0_17, %c0_18] : memref<1x144xf32, #tpu.memory_space<vmem>>, vector<1x144xf32>
    %27 = vector.broadcast %26 : vector<1x144xf32> to vector<24x144xf32>
    %28 = arith.addf %25, %27 : vector<24x144xf32>
    %cst_19 = arith.constant 0.000000e+00 : f32
    %29 = vector.broadcast %cst_19 : f32 to vector<24x144xf32>
    %30 = arith.maximumf %28, %29 : vector<24x144xf32>
    %c0_20 = arith.constant 0 : index
    %c0_21 = arith.constant 0 : index
    %31 = vector.load %arg3[%c0_20, %c0_21] : memref<12x24xf32, #tpu.memory_space<vmem>>, vector<12x24xf32>
    %cst_22 = arith.constant dense<0.000000e+00> : vector<12x144xf32>
    %32 = tpu.matmul %31, %30, %cst_22 {dimension_numbers = #tpu.dot_dimension_numbers<[1], [0], [0], [1], [0, 0, 1, 1], [], []>} : vector<12x24xf32>, vector<24x144xf32>, vector<12x144xf32> -> vector<12x144xf32>
    %c0_23 = arith.constant 0 : index
    %c0_24 = arith.constant 0 : index
    %33 = vector.load %arg4[%c0_23, %c0_24] : memref<12x24xf32, #tpu.memory_space<vmem>>, vector<12x24xf32>
    %cst_25 = arith.constant dense<0.000000e+00> : vector<12x144xf32>
    %34 = tpu.matmul %33, %30, %cst_25 {dimension_numbers = #tpu.dot_dimension_numbers<[1], [0], [0], [1], [0, 0, 1, 1], [], []>} : vector<12x24xf32>, vector<24x144xf32>, vector<12x144xf32> -> vector<12x144xf32>
    %35 = arith.maximumf %32, %34 : vector<12x144xf32>
    %c0_26 = arith.constant 0 : index
    %c0_27 = arith.constant 0 : index
    %36 = vector.load %arg5[%c0_26, %c0_27] : memref<144x72xf32, #tpu.memory_space<vmem>>, vector<144x72xf32>
    %cst_28 = arith.constant dense<0.000000e+00> : vector<12x72xf32>
    %37 = tpu.matmul %35, %36, %cst_28 {dimension_numbers = #tpu.dot_dimension_numbers<[1], [0], [0], [1], [0, 0, 1, 1], [], []>} : vector<12x144xf32>, vector<144x72xf32>, vector<12x72xf32> -> vector<12x72xf32>
    %c0_29 = arith.constant 0 : index
    %c0_30 = arith.constant 0 : index
    %38 = vector.load %arg6[%c0_29, %c0_30] : memref<144x72xf32, #tpu.memory_space<vmem>>, vector<144x72xf32>
    %cst_31 = arith.constant dense<0.000000e+00> : vector<12x72xf32>
    %39 = tpu.matmul %35, %38, %cst_31 {dimension_numbers = #tpu.dot_dimension_numbers<[1], [0], [0], [1], [0, 0, 1, 1], [], []>} : vector<12x144xf32>, vector<144x72xf32>, vector<12x72xf32> -> vector<12x72xf32>
    %40 = arith.maximumf %37, %39 : vector<12x72xf32>
    %41 = vector.extract_strided_slice %40 {offsets = [0, 0], sizes = [8, 72], strides = [1, 1]} : vector<12x72xf32> to vector<8x72xf32>
    %c0_32 = arith.constant 0 : index
    %c0_33 = arith.constant 0 : index
    %c0_34 = arith.constant 0 : index
    %42 = vector.load %arg7[%c0_32, %c0_33, %c0_34] : memref<5x72x96xf32, #tpu.memory_space<vmem>>, vector<1x72x96xf32>
    %43 = vector.shape_cast %42 : vector<1x72x96xf32> to vector<72x96xf32>
    %cst_35 = arith.constant dense<0.000000e+00> : vector<8x96xf32>
    %44 = tpu.matmul %41, %43, %cst_35 {dimension_numbers = #tpu.dot_dimension_numbers<[1], [0], [0], [1], [0, 0, 1, 1], [], []>} : vector<8x72xf32>, vector<72x96xf32>, vector<8x96xf32> -> vector<8x96xf32>
    %45 = vector.extract_strided_slice %40 {offsets = [1, 0], sizes = [8, 72], strides = [1, 1]} : vector<12x72xf32> to vector<8x72xf32>
    %c1_36 = arith.constant 1 : index
    %c0_37 = arith.constant 0 : index
    %c0_38 = arith.constant 0 : index
    %46 = vector.load %arg7[%c1_36, %c0_37, %c0_38] : memref<5x72x96xf32, #tpu.memory_space<vmem>>, vector<1x72x96xf32>
    %47 = vector.shape_cast %46 : vector<1x72x96xf32> to vector<72x96xf32>
    %cst_39 = arith.constant dense<0.000000e+00> : vector<8x96xf32>
    %48 = tpu.matmul %45, %47, %cst_39 {dimension_numbers = #tpu.dot_dimension_numbers<[1], [0], [0], [1], [0, 0, 1, 1], [], []>} : vector<8x72xf32>, vector<72x96xf32>, vector<8x96xf32> -> vector<8x96xf32>
    %49 = arith.addf %44, %48 : vector<8x96xf32>
    %50 = vector.extract_strided_slice %40 {offsets = [2, 0], sizes = [8, 72], strides = [1, 1]} : vector<12x72xf32> to vector<8x72xf32>
    %c2_40 = arith.constant 2 : index
    %c0_41 = arith.constant 0 : index
    %c0_42 = arith.constant 0 : index
    %51 = vector.load %arg7[%c2_40, %c0_41, %c0_42] : memref<5x72x96xf32, #tpu.memory_space<vmem>>, vector<1x72x96xf32>
    %52 = vector.shape_cast %51 : vector<1x72x96xf32> to vector<72x96xf32>
    %cst_43 = arith.constant dense<0.000000e+00> : vector<8x96xf32>
    %53 = tpu.matmul %50, %52, %cst_43 {dimension_numbers = #tpu.dot_dimension_numbers<[1], [0], [0], [1], [0, 0, 1, 1], [], []>} : vector<8x72xf32>, vector<72x96xf32>, vector<8x96xf32> -> vector<8x96xf32>
    %54 = arith.addf %49, %53 : vector<8x96xf32>
    %55 = vector.extract_strided_slice %40 {offsets = [3, 0], sizes = [8, 72], strides = [1, 1]} : vector<12x72xf32> to vector<8x72xf32>
    %c3_44 = arith.constant 3 : index
    %c0_45 = arith.constant 0 : index
    %c0_46 = arith.constant 0 : index
    %56 = vector.load %arg7[%c3_44, %c0_45, %c0_46] : memref<5x72x96xf32, #tpu.memory_space<vmem>>, vector<1x72x96xf32>
    %57 = vector.shape_cast %56 : vector<1x72x96xf32> to vector<72x96xf32>
    %cst_47 = arith.constant dense<0.000000e+00> : vector<8x96xf32>
    %58 = tpu.matmul %55, %57, %cst_47 {dimension_numbers = #tpu.dot_dimension_numbers<[1], [0], [0], [1], [0, 0, 1, 1], [], []>} : vector<8x72xf32>, vector<72x96xf32>, vector<8x96xf32> -> vector<8x96xf32>
    %59 = arith.addf %54, %58 : vector<8x96xf32>
    %60 = vector.extract_strided_slice %40 {offsets = [4, 0], sizes = [8, 72], strides = [1, 1]} : vector<12x72xf32> to vector<8x72xf32>
    %c4_48 = arith.constant 4 : index
    %c0_49 = arith.constant 0 : index
    %c0_50 = arith.constant 0 : index
    %61 = vector.load %arg7[%c4_48, %c0_49, %c0_50] : memref<5x72x96xf32, #tpu.memory_space<vmem>>, vector<1x72x96xf32>
    %62 = vector.shape_cast %61 : vector<1x72x96xf32> to vector<72x96xf32>
    %cst_51 = arith.constant dense<0.000000e+00> : vector<8x96xf32>
    %63 = tpu.matmul %60, %62, %cst_51 {dimension_numbers = #tpu.dot_dimension_numbers<[1], [0], [0], [1], [0, 0, 1, 1], [], []>} : vector<8x72xf32>, vector<72x96xf32>, vector<8x96xf32> -> vector<8x96xf32>
    %64 = arith.addf %59, %63 : vector<8x96xf32>
    %c0_52 = arith.constant 0 : index
    %c0_53 = arith.constant 0 : index
    %65 = vector.load %arg8[%c0_52, %c0_53] : memref<1x96xf32, #tpu.memory_space<vmem>>, vector<1x96xf32>
    %66 = vector.broadcast %65 : vector<1x96xf32> to vector<8x96xf32>
    %67 = arith.addf %64, %66 : vector<8x96xf32>
    %cst_54 = arith.constant 0.000000e+00 : f32
    %68 = vector.broadcast %cst_54 : f32 to vector<8x96xf32>
    %69 = arith.maximumf %67, %68 : vector<8x96xf32>
    %c0_55 = arith.constant 0 : index
    %c0_56 = arith.constant 0 : index
    %70 = vector.load %arg9[%c0_55, %c0_56] : memref<4x8xf32, #tpu.memory_space<vmem>>, vector<4x8xf32>
    %cst_57 = arith.constant dense<0.000000e+00> : vector<4x96xf32>
    %71 = tpu.matmul %70, %69, %cst_57 {dimension_numbers = #tpu.dot_dimension_numbers<[1], [0], [0], [1], [0, 0, 1, 1], [], []>} : vector<4x8xf32>, vector<8x96xf32>, vector<4x96xf32> -> vector<4x96xf32>
    %c0_58 = arith.constant 0 : index
    %c0_59 = arith.constant 0 : index
    %72 = vector.load %arg10[%c0_58, %c0_59] : memref<4x8xf32, #tpu.memory_space<vmem>>, vector<4x8xf32>
    %cst_60 = arith.constant dense<0.000000e+00> : vector<4x96xf32>
    %73 = tpu.matmul %72, %69, %cst_60 {dimension_numbers = #tpu.dot_dimension_numbers<[1], [0], [0], [1], [0, 0, 1, 1], [], []>} : vector<4x8xf32>, vector<8x96xf32>, vector<4x96xf32> -> vector<4x96xf32>
    %74 = arith.maximumf %71, %73 : vector<4x96xf32>
    %c0_61 = arith.constant 0 : index
    %c0_62 = arith.constant 0 : index
    %75 = vector.load %arg11[%c0_61, %c0_62] : memref<96x48xf32, #tpu.memory_space<vmem>>, vector<96x48xf32>
    %cst_63 = arith.constant dense<0.000000e+00> : vector<4x48xf32>
    %76 = tpu.matmul %74, %75, %cst_63 {dimension_numbers = #tpu.dot_dimension_numbers<[1], [0], [0], [1], [0, 0, 1, 1], [], []>} : vector<4x96xf32>, vector<96x48xf32>, vector<4x48xf32> -> vector<4x48xf32>
    %c0_64 = arith.constant 0 : index
    %c0_65 = arith.constant 0 : index
    %77 = vector.load %arg12[%c0_64, %c0_65] : memref<96x48xf32, #tpu.memory_space<vmem>>, vector<96x48xf32>
    %cst_66 = arith.constant dense<0.000000e+00> : vector<4x48xf32>
    %78 = tpu.matmul %74, %77, %cst_66 {dimension_numbers = #tpu.dot_dimension_numbers<[1], [0], [0], [1], [0, 0, 1, 1], [], []>} : vector<4x96xf32>, vector<96x48xf32>, vector<4x48xf32> -> vector<4x48xf32>
    %79 = arith.maximumf %76, %78 : vector<4x48xf32>
    %c0_67 = arith.constant 0 : index
    %c0_68 = arith.constant 0 : index
    %80 = vector.load %arg14[%c0_67, %c0_68] : memref<1x120xf32, #tpu.memory_space<vmem>>, vector<1x120xf32>
    %81 = vector.extract_strided_slice %79 {offsets = [0, 0], sizes = [1, 48], strides = [1, 1]} : vector<4x48xf32> to vector<1x48xf32>
    %c0_69 = arith.constant 0 : index
    %c0_70 = arith.constant 0 : index
    %c0_71 = arith.constant 0 : index
    %82 = vector.load %arg13[%c0_69, %c0_70, %c0_71] : memref<4x48x120xf32, #tpu.memory_space<vmem>>, vector<1x48x120xf32>
    %83 = vector.shape_cast %82 : vector<1x48x120xf32> to vector<48x120xf32>
    %cst_72 = arith.constant dense<0.000000e+00> : vector<1x120xf32>
    %84 = tpu.matmul %81, %83, %cst_72 {dimension_numbers = #tpu.dot_dimension_numbers<[1], [0], [0], [1], [0, 0, 1, 1], [], []>} : vector<1x48xf32>, vector<48x120xf32>, vector<1x120xf32> -> vector<1x120xf32>
    %85 = arith.addf %80, %84 : vector<1x120xf32>
    %86 = vector.extract_strided_slice %79 {offsets = [1, 0], sizes = [1, 48], strides = [1, 1]} : vector<4x48xf32> to vector<1x48xf32>
    %c1_73 = arith.constant 1 : index
    %c0_74 = arith.constant 0 : index
    %c0_75 = arith.constant 0 : index
    %87 = vector.load %arg13[%c1_73, %c0_74, %c0_75] : memref<4x48x120xf32, #tpu.memory_space<vmem>>, vector<1x48x120xf32>
    %88 = vector.shape_cast %87 : vector<1x48x120xf32> to vector<48x120xf32>
    %cst_76 = arith.constant dense<0.000000e+00> : vector<1x120xf32>
    %89 = tpu.matmul %86, %88, %cst_76 {dimension_numbers = #tpu.dot_dimension_numbers<[1], [0], [0], [1], [0, 0, 1, 1], [], []>} : vector<1x48xf32>, vector<48x120xf32>, vector<1x120xf32> -> vector<1x120xf32>
    %90 = arith.addf %85, %89 : vector<1x120xf32>
    %91 = vector.extract_strided_slice %79 {offsets = [2, 0], sizes = [1, 48], strides = [1, 1]} : vector<4x48xf32> to vector<1x48xf32>
    %c2_77 = arith.constant 2 : index
    %c0_78 = arith.constant 0 : index
    %c0_79 = arith.constant 0 : index
    %92 = vector.load %arg13[%c2_77, %c0_78, %c0_79] : memref<4x48x120xf32, #tpu.memory_space<vmem>>, vector<1x48x120xf32>
    %93 = vector.shape_cast %92 : vector<1x48x120xf32> to vector<48x120xf32>
    %cst_80 = arith.constant dense<0.000000e+00> : vector<1x120xf32>
    %94 = tpu.matmul %91, %93, %cst_80 {dimension_numbers = #tpu.dot_dimension_numbers<[1], [0], [0], [1], [0, 0, 1, 1], [], []>} : vector<1x48xf32>, vector<48x120xf32>, vector<1x120xf32> -> vector<1x120xf32>
    %95 = arith.addf %90, %94 : vector<1x120xf32>
    %96 = vector.extract_strided_slice %79 {offsets = [3, 0], sizes = [1, 48], strides = [1, 1]} : vector<4x48xf32> to vector<1x48xf32>
    %c3_81 = arith.constant 3 : index
    %c0_82 = arith.constant 0 : index
    %c0_83 = arith.constant 0 : index
    %97 = vector.load %arg13[%c3_81, %c0_82, %c0_83] : memref<4x48x120xf32, #tpu.memory_space<vmem>>, vector<1x48x120xf32>
    %98 = vector.shape_cast %97 : vector<1x48x120xf32> to vector<48x120xf32>
    %cst_84 = arith.constant dense<0.000000e+00> : vector<1x120xf32>
    %99 = tpu.matmul %96, %98, %cst_84 {dimension_numbers = #tpu.dot_dimension_numbers<[1], [0], [0], [1], [0, 0, 1, 1], [], []>} : vector<1x48xf32>, vector<48x120xf32>, vector<1x120xf32> -> vector<1x120xf32>
    %100 = arith.addf %95, %99 : vector<1x120xf32>
    %cst_85 = arith.constant 0.000000e+00 : f32
    %101 = vector.broadcast %cst_85 : f32 to vector<1x120xf32>
    %102 = arith.maximumf %100, %101 : vector<1x120xf32>
    %c0_86 = arith.constant 0 : index
    %c0_87 = arith.constant 0 : index
    %103 = vector.load %arg15[%c0_86, %c0_87] : memref<120x60xf32, #tpu.memory_space<vmem>>, vector<120x60xf32>
    %cst_88 = arith.constant dense<0.000000e+00> : vector<1x60xf32>
    %104 = tpu.matmul %102, %103, %cst_88 {dimension_numbers = #tpu.dot_dimension_numbers<[1], [0], [0], [1], [0, 0, 1, 1], [], []>} : vector<1x120xf32>, vector<120x60xf32>, vector<1x60xf32> -> vector<1x60xf32>
    %c0_89 = arith.constant 0 : index
    %c0_90 = arith.constant 0 : index
    %105 = vector.load %arg16[%c0_89, %c0_90] : memref<1x60xf32, #tpu.memory_space<vmem>>, vector<1x60xf32>
    %106 = arith.addf %104, %105 : vector<1x60xf32>
    %cst_91 = arith.constant 0.000000e+00 : f32
    %107 = vector.broadcast %cst_91 : f32 to vector<1x60xf32>
    %108 = arith.maximumf %106, %107 : vector<1x60xf32>
    %c0_92 = arith.constant 0 : index
    %c0_93 = arith.constant 0 : index
    %109 = vector.load %arg17[%c0_92, %c0_93] : memref<60x10xf32, #tpu.memory_space<vmem>>, vector<60x10xf32>
    %cst_94 = arith.constant dense<0.000000e+00> : vector<1x10xf32>
    %110 = tpu.matmul %108, %109, %cst_94 {dimension_numbers = #tpu.dot_dimension_numbers<[1], [0], [0], [1], [0, 0, 1, 1], [], []>} : vector<1x60xf32>, vector<60x10xf32>, vector<1x10xf32> -> vector<1x10xf32>
    %c0_95 = arith.constant 0 : index
    %c0_96 = arith.constant 0 : index
    %111 = vector.load %arg18[%c0_95, %c0_96] : memref<1x10xf32, #tpu.memory_space<vmem>>, vector<1x10xf32>
    %112 = arith.addf %110, %111 : vector<1x10xf32>
    %c0_97 = arith.constant 0 : index
    %c0_98 = arith.constant 0 : index
    %113 = vector.load %arg19[%c0_97, %c0_98] : memref<2x10xf32, #tpu.memory_space<vmem>>, vector<1x10xf32>
    tpu.vector_store %arg19[%c0_97, %c0_98], %112 {strides = array<i32>} : memref<2x10xf32, #tpu.memory_space<vmem>>, vector<1x10xf32>,
    %c1_99 = arith.constant 1 : index
    %c0_100 = arith.constant 0 : index
    %c0_101 = arith.constant 0 : index
    %114 = vector.load %arg0[%c1_99, %c0_100, %c0_101] : memref<2x28x28xf32, #tpu.memory_space<vmem>>, vector<1x28x28xf32>
    %115 = vector.shape_cast %114 : vector<1x28x28xf32> to vector<28x28xf32>
    %116 = vector.extract_strided_slice %115 {offsets = [0, 0], sizes = [24, 28], strides = [1, 1]} : vector<28x28xf32> to vector<24x28xf32>
    %c0_102 = arith.constant 0 : index
    %c0_103 = arith.constant 0 : index
    %c0_104 = arith.constant 0 : index
    %117 = vector.load %arg1[%c0_102, %c0_103, %c0_104] : memref<5x28x144xf32, #tpu.memory_space<vmem>>, vector<1x28x144xf32>
    %118 = vector.shape_cast %117 : vector<1x28x144xf32> to vector<28x144xf32>
    %cst_105 = arith.constant dense<0.000000e+00> : vector<24x144xf32>
    %119 = tpu.matmul %116, %118, %cst_105 {dimension_numbers = #tpu.dot_dimension_numbers<[1], [0], [0], [1], [0, 0, 1, 1], [], []>} : vector<24x28xf32>, vector<28x144xf32>, vector<24x144xf32> -> vector<24x144xf32>
    %120 = vector.extract_strided_slice %115 {offsets = [1, 0], sizes = [24, 28], strides = [1, 1]} : vector<28x28xf32> to vector<24x28xf32>
    %c1_106 = arith.constant 1 : index
    %c0_107 = arith.constant 0 : index
    %c0_108 = arith.constant 0 : index
    %121 = vector.load %arg1[%c1_106, %c0_107, %c0_108] : memref<5x28x144xf32, #tpu.memory_space<vmem>>, vector<1x28x144xf32>
    %122 = vector.shape_cast %121 : vector<1x28x144xf32> to vector<28x144xf32>
    %cst_109 = arith.constant dense<0.000000e+00> : vector<24x144xf32>
    %123 = tpu.matmul %120, %122, %cst_109 {dimension_numbers = #tpu.dot_dimension_numbers<[1], [0], [0], [1], [0, 0, 1, 1], [], []>} : vector<24x28xf32>, vector<28x144xf32>, vector<24x144xf32> -> vector<24x144xf32>
    %124 = arith.addf %119, %123 : vector<24x144xf32>
    %125 = vector.extract_strided_slice %115 {offsets = [2, 0], sizes = [24, 28], strides = [1, 1]} : vector<28x28xf32> to vector<24x28xf32>
    %c2_110 = arith.constant 2 : index
    %c0_111 = arith.constant 0 : index
    %c0_112 = arith.constant 0 : index
    %126 = vector.load %arg1[%c2_110, %c0_111, %c0_112] : memref<5x28x144xf32, #tpu.memory_space<vmem>>, vector<1x28x144xf32>
    %127 = vector.shape_cast %126 : vector<1x28x144xf32> to vector<28x144xf32>
    %cst_113 = arith.constant dense<0.000000e+00> : vector<24x144xf32>
    %128 = tpu.matmul %125, %127, %cst_113 {dimension_numbers = #tpu.dot_dimension_numbers<[1], [0], [0], [1], [0, 0, 1, 1], [], []>} : vector<24x28xf32>, vector<28x144xf32>, vector<24x144xf32> -> vector<24x144xf32>
    %129 = arith.addf %124, %128 : vector<24x144xf32>
    %130 = vector.extract_strided_slice %115 {offsets = [3, 0], sizes = [24, 28], strides = [1, 1]} : vector<28x28xf32> to vector<24x28xf32>
    %c3_114 = arith.constant 3 : index
    %c0_115 = arith.constant 0 : index
    %c0_116 = arith.constant 0 : index
    %131 = vector.load %arg1[%c3_114, %c0_115, %c0_116] : memref<5x28x144xf32, #tpu.memory_space<vmem>>, vector<1x28x144xf32>
    %132 = vector.shape_cast %131 : vector<1x28x144xf32> to vector<28x144xf32>
    %cst_117 = arith.constant dense<0.000000e+00> : vector<24x144xf32>
    %133 = tpu.matmul %130, %132, %cst_117 {dimension_numbers = #tpu.dot_dimension_numbers<[1], [0], [0], [1], [0, 0, 1, 1], [], []>} : vector<24x28xf32>, vector<28x144xf32>, vector<24x144xf32> -> vector<24x144xf32>
    %134 = arith.addf %129, %133 : vector<24x144xf32>
    %135 = vector.extract_strided_slice %115 {offsets = [4, 0], sizes = [24, 28], strides = [1, 1]} : vector<28x28xf32> to vector<24x28xf32>
    %c4_118 = arith.constant 4 : index
    %c0_119 = arith.constant 0 : index
    %c0_120 = arith.constant 0 : index
    %136 = vector.load %arg1[%c4_118, %c0_119, %c0_120] : memref<5x28x144xf32, #tpu.memory_space<vmem>>, vector<1x28x144xf32>
    %137 = vector.shape_cast %136 : vector<1x28x144xf32> to vector<28x144xf32>
    %cst_121 = arith.constant dense<0.000000e+00> : vector<24x144xf32>
    %138 = tpu.matmul %135, %137, %cst_121 {dimension_numbers = #tpu.dot_dimension_numbers<[1], [0], [0], [1], [0, 0, 1, 1], [], []>} : vector<24x28xf32>, vector<28x144xf32>, vector<24x144xf32> -> vector<24x144xf32>
    %139 = arith.addf %134, %138 : vector<24x144xf32>
    %c0_122 = arith.constant 0 : index
    %c0_123 = arith.constant 0 : index
    %140 = vector.load %arg2[%c0_122, %c0_123] : memref<1x144xf32, #tpu.memory_space<vmem>>, vector<1x144xf32>
    %141 = vector.broadcast %140 : vector<1x144xf32> to vector<24x144xf32>
    %142 = arith.addf %139, %141 : vector<24x144xf32>
    %cst_124 = arith.constant 0.000000e+00 : f32
    %143 = vector.broadcast %cst_124 : f32 to vector<24x144xf32>
    %144 = arith.maximumf %142, %143 : vector<24x144xf32>
    %c0_125 = arith.constant 0 : index
    %c0_126 = arith.constant 0 : index
    %145 = vector.load %arg3[%c0_125, %c0_126] : memref<12x24xf32, #tpu.memory_space<vmem>>, vector<12x24xf32>
    %cst_127 = arith.constant dense<0.000000e+00> : vector<12x144xf32>
    %146 = tpu.matmul %145, %144, %cst_127 {dimension_numbers = #tpu.dot_dimension_numbers<[1], [0], [0], [1], [0, 0, 1, 1], [], []>} : vector<12x24xf32>, vector<24x144xf32>, vector<12x144xf32> -> vector<12x144xf32>
    %c0_128 = arith.constant 0 : index
    %c0_129 = arith.constant 0 : index
    %147 = vector.load %arg4[%c0_128, %c0_129] : memref<12x24xf32, #tpu.memory_space<vmem>>, vector<12x24xf32>
    %cst_130 = arith.constant dense<0.000000e+00> : vector<12x144xf32>
    %148 = tpu.matmul %147, %144, %cst_130 {dimension_numbers = #tpu.dot_dimension_numbers<[1], [0], [0], [1], [0, 0, 1, 1], [], []>} : vector<12x24xf32>, vector<24x144xf32>, vector<12x144xf32> -> vector<12x144xf32>
    %149 = arith.maximumf %146, %148 : vector<12x144xf32>
    %c0_131 = arith.constant 0 : index
    %c0_132 = arith.constant 0 : index
    %150 = vector.load %arg5[%c0_131, %c0_132] : memref<144x72xf32, #tpu.memory_space<vmem>>, vector<144x72xf32>
    %cst_133 = arith.constant dense<0.000000e+00> : vector<12x72xf32>
    %151 = tpu.matmul %149, %150, %cst_133 {dimension_numbers = #tpu.dot_dimension_numbers<[1], [0], [0], [1], [0, 0, 1, 1], [], []>} : vector<12x144xf32>, vector<144x72xf32>, vector<12x72xf32> -> vector<12x72xf32>
    %c0_134 = arith.constant 0 : index
    %c0_135 = arith.constant 0 : index
    %152 = vector.load %arg6[%c0_134, %c0_135] : memref<144x72xf32, #tpu.memory_space<vmem>>, vector<144x72xf32>
    %cst_136 = arith.constant dense<0.000000e+00> : vector<12x72xf32>
    %153 = tpu.matmul %149, %152, %cst_136 {dimension_numbers = #tpu.dot_dimension_numbers<[1], [0], [0], [1], [0, 0, 1, 1], [], []>} : vector<12x144xf32>, vector<144x72xf32>, vector<12x72xf32> -> vector<12x72xf32>
    %154 = arith.maximumf %151, %153 : vector<12x72xf32>
    %155 = vector.extract_strided_slice %154 {offsets = [0, 0], sizes = [8, 72], strides = [1, 1]} : vector<12x72xf32> to vector<8x72xf32>
    %c0_137 = arith.constant 0 : index
    %c0_138 = arith.constant 0 : index
    %c0_139 = arith.constant 0 : index
    %156 = vector.load %arg7[%c0_137, %c0_138, %c0_139] : memref<5x72x96xf32, #tpu.memory_space<vmem>>, vector<1x72x96xf32>
    %157 = vector.shape_cast %156 : vector<1x72x96xf32> to vector<72x96xf32>
    %cst_140 = arith.constant dense<0.000000e+00> : vector<8x96xf32>
    %158 = tpu.matmul %155, %157, %cst_140 {dimension_numbers = #tpu.dot_dimension_numbers<[1], [0], [0], [1], [0, 0, 1, 1], [], []>} : vector<8x72xf32>, vector<72x96xf32>, vector<8x96xf32> -> vector<8x96xf32>
    %159 = vector.extract_strided_slice %154 {offsets = [1, 0], sizes = [8, 72], strides = [1, 1]} : vector<12x72xf32> to vector<8x72xf32>
    %c1_141 = arith.constant 1 : index
    %c0_142 = arith.constant 0 : index
    %c0_143 = arith.constant 0 : index
    %160 = vector.load %arg7[%c1_141, %c0_142, %c0_143] : memref<5x72x96xf32, #tpu.memory_space<vmem>>, vector<1x72x96xf32>
    %161 = vector.shape_cast %160 : vector<1x72x96xf32> to vector<72x96xf32>
    %cst_144 = arith.constant dense<0.000000e+00> : vector<8x96xf32>
    %162 = tpu.matmul %159, %161, %cst_144 {dimension_numbers = #tpu.dot_dimension_numbers<[1], [0], [0], [1], [0, 0, 1, 1], [], []>} : vector<8x72xf32>, vector<72x96xf32>, vector<8x96xf32> -> vector<8x96xf32>
    %163 = arith.addf %158, %162 : vector<8x96xf32>
    %164 = vector.extract_strided_slice %154 {offsets = [2, 0], sizes = [8, 72], strides = [1, 1]} : vector<12x72xf32> to vector<8x72xf32>
    %c2_145 = arith.constant 2 : index
    %c0_146 = arith.constant 0 : index
    %c0_147 = arith.constant 0 : index
    %165 = vector.load %arg7[%c2_145, %c0_146, %c0_147] : memref<5x72x96xf32, #tpu.memory_space<vmem>>, vector<1x72x96xf32>
    %166 = vector.shape_cast %165 : vector<1x72x96xf32> to vector<72x96xf32>
    %cst_148 = arith.constant dense<0.000000e+00> : vector<8x96xf32>
    %167 = tpu.matmul %164, %166, %cst_148 {dimension_numbers = #tpu.dot_dimension_numbers<[1], [0], [0], [1], [0, 0, 1, 1], [], []>} : vector<8x72xf32>, vector<72x96xf32>, vector<8x96xf32> -> vector<8x96xf32>
    %168 = arith.addf %163, %167 : vector<8x96xf32>
    %169 = vector.extract_strided_slice %154 {offsets = [3, 0], sizes = [8, 72], strides = [1, 1]} : vector<12x72xf32> to vector<8x72xf32>
    %c3_149 = arith.constant 3 : index
    %c0_150 = arith.constant 0 : index
    %c0_151 = arith.constant 0 : index
    %170 = vector.load %arg7[%c3_149, %c0_150, %c0_151] : memref<5x72x96xf32, #tpu.memory_space<vmem>>, vector<1x72x96xf32>
    %171 = vector.shape_cast %170 : vector<1x72x96xf32> to vector<72x96xf32>
    %cst_152 = arith.constant dense<0.000000e+00> : vector<8x96xf32>
    %172 = tpu.matmul %169, %171, %cst_152 {dimension_numbers = #tpu.dot_dimension_numbers<[1], [0], [0], [1], [0, 0, 1, 1], [], []>} : vector<8x72xf32>, vector<72x96xf32>, vector<8x96xf32> -> vector<8x96xf32>
    %173 = arith.addf %168, %172 : vector<8x96xf32>
    %174 = vector.extract_strided_slice %154 {offsets = [4, 0], sizes = [8, 72], strides = [1, 1]} : vector<12x72xf32> to vector<8x72xf32>
    %c4_153 = arith.constant 4 : index
    %c0_154 = arith.constant 0 : index
    %c0_155 = arith.constant 0 : index
    %175 = vector.load %arg7[%c4_153, %c0_154, %c0_155] : memref<5x72x96xf32, #tpu.memory_space<vmem>>, vector<1x72x96xf32>
    %176 = vector.shape_cast %175 : vector<1x72x96xf32> to vector<72x96xf32>
    %cst_156 = arith.constant dense<0.000000e+00> : vector<8x96xf32>
    %177 = tpu.matmul %174, %176, %cst_156 {dimension_numbers = #tpu.dot_dimension_numbers<[1], [0], [0], [1], [0, 0, 1, 1], [], []>} : vector<8x72xf32>, vector<72x96xf32>, vector<8x96xf32> -> vector<8x96xf32>
    %178 = arith.addf %173, %177 : vector<8x96xf32>
    %c0_157 = arith.constant 0 : index
    %c0_158 = arith.constant 0 : index
    %179 = vector.load %arg8[%c0_157, %c0_158] : memref<1x96xf32, #tpu.memory_space<vmem>>, vector<1x96xf32>
    %180 = vector.broadcast %179 : vector<1x96xf32> to vector<8x96xf32>
    %181 = arith.addf %178, %180 : vector<8x96xf32>
    %cst_159 = arith.constant 0.000000e+00 : f32
    %182 = vector.broadcast %cst_159 : f32 to vector<8x96xf32>
    %183 = arith.maximumf %181, %182 : vector<8x96xf32>
    %c0_160 = arith.constant 0 : index
    %c0_161 = arith.constant 0 : index
    %184 = vector.load %arg9[%c0_160, %c0_161] : memref<4x8xf32, #tpu.memory_space<vmem>>, vector<4x8xf32>
    %cst_162 = arith.constant dense<0.000000e+00> : vector<4x96xf32>
    %185 = tpu.matmul %184, %183, %cst_162 {dimension_numbers = #tpu.dot_dimension_numbers<[1], [0], [0], [1], [0, 0, 1, 1], [], []>} : vector<4x8xf32>, vector<8x96xf32>, vector<4x96xf32> -> vector<4x96xf32>
    %c0_163 = arith.constant 0 : index
    %c0_164 = arith.constant 0 : index
    %186 = vector.load %arg10[%c0_163, %c0_164] : memref<4x8xf32, #tpu.memory_space<vmem>>, vector<4x8xf32>
    %cst_165 = arith.constant dense<0.000000e+00> : vector<4x96xf32>
    %187 = tpu.matmul %186, %183, %cst_165 {dimension_numbers = #tpu.dot_dimension_numbers<[1], [0], [0], [1], [0, 0, 1, 1], [], []>} : vector<4x8xf32>, vector<8x96xf32>, vector<4x96xf32> -> vector<4x96xf32>
    %188 = arith.maximumf %185, %187 : vector<4x96xf32>
    %c0_166 = arith.constant 0 : index
    %c0_167 = arith.constant 0 : index
    %189 = vector.load %arg11[%c0_166, %c0_167] : memref<96x48xf32, #tpu.memory_space<vmem>>, vector<96x48xf32>
    %cst_168 = arith.constant dense<0.000000e+00> : vector<4x48xf32>
    %190 = tpu.matmul %188, %189, %cst_168 {dimension_numbers = #tpu.dot_dimension_numbers<[1], [0], [0], [1], [0, 0, 1, 1], [], []>} : vector<4x96xf32>, vector<96x48xf32>, vector<4x48xf32> -> vector<4x48xf32>
    %c0_169 = arith.constant 0 : index
    %c0_170 = arith.constant 0 : index
    %191 = vector.load %arg12[%c0_169, %c0_170] : memref<96x48xf32, #tpu.memory_space<vmem>>, vector<96x48xf32>
    %cst_171 = arith.constant dense<0.000000e+00> : vector<4x48xf32>
    %192 = tpu.matmul %188, %191, %cst_171 {dimension_numbers = #tpu.dot_dimension_numbers<[1], [0], [0], [1], [0, 0, 1, 1], [], []>} : vector<4x96xf32>, vector<96x48xf32>, vector<4x48xf32> -> vector<4x48xf32>
    %193 = arith.maximumf %190, %192 : vector<4x48xf32>
    %c0_172 = arith.constant 0 : index
    %c0_173 = arith.constant 0 : index
    %194 = vector.load %arg14[%c0_172, %c0_173] : memref<1x120xf32, #tpu.memory_space<vmem>>, vector<1x120xf32>
    %195 = vector.extract_strided_slice %193 {offsets = [0, 0], sizes = [1, 48], strides = [1, 1]} : vector<4x48xf32> to vector<1x48xf32>
    %c0_174 = arith.constant 0 : index
    %c0_175 = arith.constant 0 : index
    %c0_176 = arith.constant 0 : index
    %196 = vector.load %arg13[%c0_174, %c0_175, %c0_176] : memref<4x48x120xf32, #tpu.memory_space<vmem>>, vector<1x48x120xf32>
    %197 = vector.shape_cast %196 : vector<1x48x120xf32> to vector<48x120xf32>
    %cst_177 = arith.constant dense<0.000000e+00> : vector<1x120xf32>
    %198 = tpu.matmul %195, %197, %cst_177 {dimension_numbers = #tpu.dot_dimension_numbers<[1], [0], [0], [1], [0, 0, 1, 1], [], []>} : vector<1x48xf32>, vector<48x120xf32>, vector<1x120xf32> -> vector<1x120xf32>
    %199 = arith.addf %194, %198 : vector<1x120xf32>
    %200 = vector.extract_strided_slice %193 {offsets = [1, 0], sizes = [1, 48], strides = [1, 1]} : vector<4x48xf32> to vector<1x48xf32>
    %c1_178 = arith.constant 1 : index
    %c0_179 = arith.constant 0 : index
    %c0_180 = arith.constant 0 : index
    %201 = vector.load %arg13[%c1_178, %c0_179, %c0_180] : memref<4x48x120xf32, #tpu.memory_space<vmem>>, vector<1x48x120xf32>
    %202 = vector.shape_cast %201 : vector<1x48x120xf32> to vector<48x120xf32>
    %cst_181 = arith.constant dense<0.000000e+00> : vector<1x120xf32>
    %203 = tpu.matmul %200, %202, %cst_181 {dimension_numbers = #tpu.dot_dimension_numbers<[1], [0], [0], [1], [0, 0, 1, 1], [], []>} : vector<1x48xf32>, vector<48x120xf32>, vector<1x120xf32> -> vector<1x120xf32>
    %204 = arith.addf %199, %203 : vector<1x120xf32>
    %205 = vector.extract_strided_slice %193 {offsets = [2, 0], sizes = [1, 48], strides = [1, 1]} : vector<4x48xf32> to vector<1x48xf32>
    %c2_182 = arith.constant 2 : index
    %c0_183 = arith.constant 0 : index
    %c0_184 = arith.constant 0 : index
    %206 = vector.load %arg13[%c2_182, %c0_183, %c0_184] : memref<4x48x120xf32, #tpu.memory_space<vmem>>, vector<1x48x120xf32>
    %207 = vector.shape_cast %206 : vector<1x48x120xf32> to vector<48x120xf32>
    %cst_185 = arith.constant dense<0.000000e+00> : vector<1x120xf32>
    %208 = tpu.matmul %205, %207, %cst_185 {dimension_numbers = #tpu.dot_dimension_numbers<[1], [0], [0], [1], [0, 0, 1, 1], [], []>} : vector<1x48xf32>, vector<48x120xf32>, vector<1x120xf32> -> vector<1x120xf32>
    %209 = arith.addf %204, %208 : vector<1x120xf32>
    %210 = vector.extract_strided_slice %193 {offsets = [3, 0], sizes = [1, 48], strides = [1, 1]} : vector<4x48xf32> to vector<1x48xf32>
    %c3_186 = arith.constant 3 : index
    %c0_187 = arith.constant 0 : index
    %c0_188 = arith.constant 0 : index
    %211 = vector.load %arg13[%c3_186, %c0_187, %c0_188] : memref<4x48x120xf32, #tpu.memory_space<vmem>>, vector<1x48x120xf32>
    %212 = vector.shape_cast %211 : vector<1x48x120xf32> to vector<48x120xf32>
    %cst_189 = arith.constant dense<0.000000e+00> : vector<1x120xf32>
    %213 = tpu.matmul %210, %212, %cst_189 {dimension_numbers = #tpu.dot_dimension_numbers<[1], [0], [0], [1], [0, 0, 1, 1], [], []>} : vector<1x48xf32>, vector<48x120xf32>, vector<1x120xf32> -> vector<1x120xf32>
    %214 = arith.addf %209, %213 : vector<1x120xf32>
    %cst_190 = arith.constant 0.000000e+00 : f32
    %215 = vector.broadcast %cst_190 : f32 to vector<1x120xf32>
    %216 = arith.maximumf %214, %215 : vector<1x120xf32>
    %c0_191 = arith.constant 0 : index
    %c0_192 = arith.constant 0 : index
    %217 = vector.load %arg15[%c0_191, %c0_192] : memref<120x60xf32, #tpu.memory_space<vmem>>, vector<120x60xf32>
    %cst_193 = arith.constant dense<0.000000e+00> : vector<1x60xf32>
    %218 = tpu.matmul %216, %217, %cst_193 {dimension_numbers = #tpu.dot_dimension_numbers<[1], [0], [0], [1], [0, 0, 1, 1], [], []>} : vector<1x120xf32>, vector<120x60xf32>, vector<1x60xf32> -> vector<1x60xf32>
    %c0_194 = arith.constant 0 : index
    %c0_195 = arith.constant 0 : index
    %219 = vector.load %arg16[%c0_194, %c0_195] : memref<1x60xf32, #tpu.memory_space<vmem>>, vector<1x60xf32>
    %220 = arith.addf %218, %219 : vector<1x60xf32>
    %cst_196 = arith.constant 0.000000e+00 : f32
    %221 = vector.broadcast %cst_196 : f32 to vector<1x60xf32>
    %222 = arith.maximumf %220, %221 : vector<1x60xf32>
    %c0_197 = arith.constant 0 : index
    %c0_198 = arith.constant 0 : index
    %223 = vector.load %arg17[%c0_197, %c0_198] : memref<60x10xf32, #tpu.memory_space<vmem>>, vector<60x10xf32>
    %cst_199 = arith.constant dense<0.000000e+00> : vector<1x10xf32>
    %224 = tpu.matmul %222, %223, %cst_199 {dimension_numbers = #tpu.dot_dimension_numbers<[1], [0], [0], [1], [0, 0, 1, 1], [], []>} : vector<1x60xf32>, vector<60x10xf32>, vector<1x10xf32> -> vector<1x10xf32>
    %c0_200 = arith.constant 0 : index
    %c0_201 = arith.constant 0 : index
    %225 = vector.load %arg18[%c0_200, %c0_201] : memref<1x10xf32, #tpu.memory_space<vmem>>, vector<1x10xf32>
    %226 = arith.addf %224, %225 : vector<1x10xf32>
    %c1_202 = arith.constant 1 : index
    %c0_203 = arith.constant 0 : index
    %227 = vector.load %arg19[%c1_202, %c0_203] : memref<2x10xf32, #tpu.memory_space<vmem>>, vector<1x10xf32>
    tpu.vector_store %arg19[%c1_202, %c0_203], %226 {strides = array<i32>} : memref<2x10xf32, #tpu.memory_space<vmem>>, vector<1x10xf32>,
    return
  }
}

</mosaic_0001>

<llo_original>
// kernel: network_forward.1
$region0: #{network_forward.1}
  #allocation0 [shape = 'u32[]', space=smem, size = 0x4, offset = 0x4, fixed_abs, tag = 'smem constant byte address 0x4 - core index']
  #allocation1 [shape = 'u32[144,128]{1,0:T(1,128)}', space=vmem, size = 0x12000, scoped, tag = 'internal scratch']
  %s0 = inlined_call_operand.vmem [shape: f32[2,28,28], index: 0, kind: input, shape index: {}]
  %s1 = inlined_call_operand.vmem [shape: f32[5,28,144], index: 1, kind: input, shape index: {}]
  %s2 = inlined_call_operand.hbm [shape: f32[1,144], index: 2, kind: input, shape index: {}]
  %s3 = inlined_call_operand.hbm [shape: f32[12,24], index: 3, kind: input, shape index: {}]
  %s4 = inlined_call_operand.hbm [shape: f32[12,24], index: 4, kind: input, shape index: {}]
  %s5 = inlined_call_operand.hbm [shape: f32[144,72], index: 5, kind: input, shape index: {}]
  %s6 = inlined_call_operand.hbm [shape: f32[144,72], index: 6, kind: input, shape index: {}]
  %s7 = inlined_call_operand.vmem [shape: f32[5,72,96], index: 7, kind: input, shape index: {}]
  %s8 = inlined_call_operand.hbm [shape: f32[1,96], index: 8, kind: input, shape index: {}]
  %s9 = inlined_call_operand.vmem [shape: f32[4,8], index: 9, kind: input, shape index: {}]
  %s10 = inlined_call_operand.hbm [shape: f32[4,8], index: 10, kind: input, shape index: {}]
  %s11 = inlined_call_operand.vmem [shape: f32[96,48], index: 11, kind: input, shape index: {}]
  %s12 = inlined_call_operand.vmem [shape: f32[96,48], index: 12, kind: input, shape index: {}]
  %s13 = inlined_call_operand.hbm [shape: f32[4,48,120], index: 13, kind: input, shape index: {}]
  %s14 = inlined_call_operand.hbm [shape: f32[1,120], index: 14, kind: input, shape index: {}]
  %s15 = inlined_call_operand.vmem [shape: f32[120,60], index: 15, kind: input, shape index: {}]
  %s16 = inlined_call_operand.hbm [shape: f32[1,60], index: 16, kind: input, shape index: {}]
  %s17 = inlined_call_operand.vmem [shape: f32[60,10], index: 17, kind: input, shape index: {}]
  %s18 = inlined_call_operand.hbm [shape: f32[1,10], index: 18, kind: input, shape index: {}]
  %s19 = inlined_call_operand.hbm [shape: f32[2,10], index: 19, kind: output, shape index: {}]
  %s20 = sld [smem:[#allocation0]]
  $region130: #{network_forward.1} parent=0
    _
  %s22 = ssub.s32 1, %s20
  %s23 = scalar_select 0, %s22, %s20
  $region1: #{network_forward.1} parent=0
    #allocation2 [shape = 'u8[1024]{0}', space=vmem, size = 0x400, scoped, tag = 'input window, operand 2, single buffered']
    #allocation3 [shape = 's32[1]{0}', space=sflag, size = 0x4, scoped, tag = 'scoped memory for network_forward.1']
    #allocation4 [shape = 's32[1]{0}', space=sflag, size = 0x4, scoped, tag = 'scoped memory for network_forward.1']
    #allocation5 [shape = 'u8[8192]{0}', space=vmem, size = 0x2000, scoped, tag = 'input window, operand 3, single buffered']
    #allocation6 [shape = 's32[1]{0}', space=sflag, size = 0x4, scoped, tag = 'scoped memory for network_forward.1']
    #allocation7 [shape = 'u8[8192]{0}', space=vmem, size = 0x2000, scoped, tag = 'input window, operand 4, single buffered']
    #allocation8 [shape = 'u8[73728]{0}', space=vmem, size = 0x12000, scoped, tag = 'input window, operand 5, single buffered']
    #allocation9 [shape = 's32[1]{0}', space=sflag, size = 0x4, scoped, tag = 'scoped memory for network_forward.1']
    #allocation10 [shape = 'u8[73728]{0}', space=vmem, size = 0x12000, scoped, tag = 'input window, operand 6, single buffered']
    #allocation11 [shape = 'u8[512]{0}', space=vmem, size = 0x400, scoped, tag = 'input window, operand 8, single buffered']
    #allocation12 [shape = 's32[1]{0}', space=sflag, size = 0x4, scoped, tag = 'scoped memory for network_forward.1']
    #allocation13 [shape = 'u8[2048]{0}', space=vmem, size = 0x800, scoped, tag = 'input window, operand 10, single buffered']
    #allocation14 [shape = 'u8[98304]{0}', space=vmem, size = 0x18000, scoped, tag = 'input window, operand 13, single buffered']
    #allocation15 [shape = 's32[1]{0}', space=sflag, size = 0x4, scoped, tag = 'scoped memory for network_forward.1']
    #allocation16 [shape = 'u8[512]{0}', space=vmem, size = 0x400, scoped, tag = 'input window, operand 14, single buffered']
    #allocation17 [shape = 'u8[512]{0}', space=vmem, size = 0x400, scoped, tag = 'input window, operand 16, single buffered']
    #allocation18 [shape = 's32[1]{0}', space=sflag, size = 0x4, scoped, tag = 'scoped memory for network_forward.1']
    #allocation19 [shape = 'u8[512]{0}', space=vmem, size = 0x400, scoped, tag = 'input window, operand 18, single buffered']
    #allocation20 [shape = 'u8[1024]{0}', space=vmem, size = 0x400, scoped, tag = 'output window, operand 0, single buffered']
    %24 = vsyncpa [#allocation3], 0
    %25 = vsyncpa [#allocation6], 0
    %26 = vsyncpa [#allocation9], 0
    %27 = vsyncpa [#allocation12], 0
    %28 = vsyncpa [#allocation15], 0
    %29 = vsyncpa [#allocation18], 0
    %30 = vsyncpa [#allocation4], 0
    // Predicated region
    $region2: #{network_forward.1} parent=1 // pred_check
      _
    $region3: #{network_forward.1} parent=1 // pred_check_branch
      %32 = sbr.rel (0) target = $region5
    $region4: #{network_forward.1} parent=1 // pred_region
      _
    $region5: #{network_forward.1} parent=1 // pred_fallthru
      _
    // Predicated region
    $region6: #{network_forward.1} parent=1 // pred_check
      _
    $region7: #{network_forward.1} parent=1 // pred_check_branch
      %34 = sbr.rel (0) target = $region9
    $region8: #{network_forward.1} parent=1 // pred_region
      _
    $region9: #{network_forward.1} parent=1 // pred_fallthru
      _
    // Predicated region
    $region10: #{network_forward.1} parent=1 // pred_check
      _
    $region11: #{network_forward.1} parent=1 // pred_check_branch
      %36 = sbr.rel (0) target = $region13
    $region12: #{network_forward.1} parent=1 // pred_region
      %s38 = ssub.s32 32, 32
      %39 = vsyncadd [#allocation3], %s38
      %s41 = sshll.u32 [#allocation2], 4
      %s42 = int_to_ptr.vmem [resolvable:$true] %s41
      %44 = dma.hbm_to_vmem [thread:$0]  %s2, 32, %s42, [#allocation3]
    $region13: #{network_forward.1} parent=1 // pred_fallthru
      _
    // Predicated region
    $region14: #{network_forward.1} parent=1 // pred_check
      _
    $region15: #{network_forward.1} parent=1 // pred_check_branch
      %46 = sbr.rel (0) target = $region17
    $region16: #{network_forward.1} parent=1 // pred_region
      %s48 = ssub.s32 256, 256
      %49 = vsyncadd [#allocation6], %s48
      %s50 = sshll.u32 [#allocation5], 4
      %s51 = int_to_ptr.vmem [resolvable:$true] %s50
      %56 = dma.hbm_to_vmem [thread:$0]  %s3, 256, %s51, [#allocation6], 128, 128, 8
    $region17: #{network_forward.1} parent=1 // pred_fallthru
      _
    // Predicated region
    $region18: #{network_forward.1} parent=1 // pred_check
      _
    $region19: #{network_forward.1} parent=1 // pred_check_branch
      %58 = sbr.rel (0) target = $region21
    $region20: #{network_forward.1} parent=1 // pred_region
      %s60 = ssub.s32 256, 256
      %61 = vsyncadd [#allocation6], %s60
      %s62 = sshll.u32 [#allocation7], 4
      %s63 = int_to_ptr.vmem [resolvable:$true] %s62
      %68 = dma.hbm_to_vmem [thread:$0]  %s4, 256, %s63, [#allocation6], 128, 128, 8
    $region21: #{network_forward.1} parent=1 // pred_fallthru
      _
    // Predicated region
    $region22: #{network_forward.1} parent=1 // pred_check
      _
    $region23: #{network_forward.1} parent=1 // pred_check_branch
      %70 = sbr.rel (0) target = $region25
    $region24: #{network_forward.1} parent=1 // pred_region
      %s72 = ssub.s32 2304, 2304
      %73 = vsyncadd [#allocation9], %s72
      %s74 = sshll.u32 [#allocation8], 4
      %s75 = int_to_ptr.vmem [resolvable:$true] %s74
      %80 = dma.hbm_to_vmem [thread:$0]  %s5, 2304, %s75, [#allocation9], 128, 128, 8
    $region25: #{network_forward.1} parent=1 // pred_fallthru
      _
    // Predicated region
    $region26: #{network_forward.1} parent=1 // pred_check
      _
    $region27: #{network_forward.1} parent=1 // pred_check_branch
      %82 = sbr.rel (0) target = $region29
    $region28: #{network_forward.1} parent=1 // pred_region
      %s84 = ssub.s32 2304, 2304
      %85 = vsyncadd [#allocation9], %s84
      %s86 = sshll.u32 [#allocation10], 4
      %s87 = int_to_ptr.vmem [resolvable:$true] %s86
      %92 = dma.hbm_to_vmem [thread:$0]  %s6, 2304, %s87, [#allocation9], 128, 128, 8
    $region29: #{network_forward.1} parent=1 // pred_fallthru
      _
    // Predicated region
    $region30: #{network_forward.1} parent=1 // pred_check
      _
    $region31: #{network_forward.1} parent=1 // pred_check_branch
      %94 = sbr.rel (0) target = $region33
    $region32: #{network_forward.1} parent=1 // pred_region
      _
    $region33: #{network_forward.1} parent=1 // pred_fallthru
      _
    // Predicated region
    $region34: #{network_forward.1} parent=1 // pred_check
      _
    $region35: #{network_forward.1} parent=1 // pred_check_branch
      %96 = sbr.rel (0) target = $region37
    $region36: #{network_forward.1} parent=1 // pred_region
      %s98 = ssub.s32 16, 16
      %99 = vsyncadd [#allocation12], %s98
      %s101 = sshll.u32 [#allocation11], 4
      %s102 = int_to_ptr.vmem [resolvable:$true] %s101
      %104 = dma.hbm_to_vmem [thread:$0]  %s8, 16, %s102, [#allocation12]
    $region37: #{network_forward.1} parent=1 // pred_fallthru
      _
    // Predicated region
    $region38: #{network_forward.1} parent=1 // pred_check
      _
    $region39: #{network_forward.1} parent=1 // pred_check_branch
      %106 = sbr.rel (0) target = $region41
    $region40: #{network_forward.1} parent=1 // pred_region
      _
    $region41: #{network_forward.1} parent=1 // pred_fallthru
      _
    // Predicated region
    $region42: #{network_forward.1} parent=1 // pred_check
      _
    $region43: #{network_forward.1} parent=1 // pred_check_branch
      %108 = sbr.rel (0) target = $region45
    $region44: #{network_forward.1} parent=1 // pred_region
      %s110 = ssub.s32 64, 64
      %111 = vsyncadd [#allocation12], %s110
      %s113 = sshll.u32 [#allocation13], 4
      %s114 = int_to_ptr.vmem [resolvable:$true] %s113
      %116 = dma.hbm_to_vmem [thread:$0]  %s10, 64, %s114, [#allocation12]
    $region45: #{network_forward.1} parent=1 // pred_fallthru
      _
    // Predicated region
    $region46: #{network_forward.1} parent=1 // pred_check
      _
    $region47: #{network_forward.1} parent=1 // pred_check_branch
      %118 = sbr.rel (0) target = $region49
    $region48: #{network_forward.1} parent=1 // pred_region
      _
    $region49: #{network_forward.1} parent=1 // pred_fallthru
      _
    // Predicated region
    $region50: #{network_forward.1} parent=1 // pred_check
      _
    $region51: #{network_forward.1} parent=1 // pred_check_branch
      %120 = sbr.rel (0) target = $region53
    $region52: #{network_forward.1} parent=1 // pred_region
      _
    $region53: #{network_forward.1} parent=1 // pred_fallthru
      _
    // Predicated region
    $region54: #{network_forward.1} parent=1 // pred_check
      _
    $region55: #{network_forward.1} parent=1 // pred_check_branch
      %122 = sbr.rel (0) target = $region57
    $region56: #{network_forward.1} parent=1 // pred_region
      %s124 = ssub.s32 3072, 3072
      %125 = vsyncadd [#allocation15], %s124
      %s126 = sshll.u32 [#allocation14], 4
      %s127 = int_to_ptr.vmem [resolvable:$true] %s126
      %132 = dma.hbm_to_vmem [thread:$0]  %s13, 3072, %s127, [#allocation15], 128, 128, 8
    $region57: #{network_forward.1} parent=1 // pred_fallthru
      _
    // Predicated region
    $region58: #{network_forward.1} parent=1 // pred_check
      _
    $region59: #{network_forward.1} parent=1 // pred_check_branch
      %134 = sbr.rel (0) target = $region61
    $region60: #{network_forward.1} parent=1 // pred_region
      %s136 = ssub.s32 16, 16
      %137 = vsyncadd [#allocation15], %s136
      %s139 = sshll.u32 [#allocation16], 4
      %s140 = int_to_ptr.vmem [resolvable:$true] %s139
      %142 = dma.hbm_to_vmem [thread:$0]  %s14, 16, %s140, [#allocation15]
    $region61: #{network_forward.1} parent=1 // pred_fallthru
      _
    // Predicated region
    $region62: #{network_forward.1} parent=1 // pred_check
      _
    $region63: #{network_forward.1} parent=1 // pred_check_branch
      %144 = sbr.rel (0) target = $region65
    $region64: #{network_forward.1} parent=1 // pred_region
      _
    $region65: #{network_forward.1} parent=1 // pred_fallthru
      _
    // Predicated region
    $region66: #{network_forward.1} parent=1 // pred_check
      _
    $region67: #{network_forward.1} parent=1 // pred_check_branch
      %146 = sbr.rel (0) target = $region69
    $region68: #{network_forward.1} parent=1 // pred_region
      %s148 = ssub.s32 16, 16
      %149 = vsyncadd [#allocation18], %s148
      %s151 = sshll.u32 [#allocation17], 4
      %s152 = int_to_ptr.vmem [resolvable:$true] %s151
      %154 = dma.hbm_to_vmem [thread:$0]  %s16, 16, %s152, [#allocation18]
    $region69: #{network_forward.1} parent=1 // pred_fallthru
      _
    // Predicated region
    $region70: #{network_forward.1} parent=1 // pred_check
      _
    $region71: #{network_forward.1} parent=1 // pred_check_branch
      %156 = sbr.rel (0) target = $region73
    $region72: #{network_forward.1} parent=1 // pred_region
      _
    $region73: #{network_forward.1} parent=1 // pred_fallthru
      _
    // Predicated region
    $region74: #{network_forward.1} parent=1 // pred_check
      _
    $region75: #{network_forward.1} parent=1 // pred_check_branch
      %158 = sbr.rel (0) target = $region77
    $region76: #{network_forward.1} parent=1 // pred_region
      %s160 = ssub.s32 16, 16
      %161 = vsyncadd [#allocation18], %s160
      %s163 = sshll.u32 [#allocation19], 4
      %s164 = int_to_ptr.vmem [resolvable:$true] %s163
      %166 = dma.hbm_to_vmem [thread:$0]  %s18, 16, %s164, [#allocation18]
    $region77: #{network_forward.1} parent=1 // pred_fallthru
      _
    // Predicated region
    $region78: #{network_forward.1} parent=1 // pred_check
      _
    $region79: #{network_forward.1} parent=1 // pred_check_branch
      %168 = sbr.rel (0) target = $region81
    $region80: #{network_forward.1} parent=1 // pred_region
      %169 = dma.done [#allocation3], 32
    $region81: #{network_forward.1} parent=1 // pred_fallthru
      _
    // Predicated region
    $region82: #{network_forward.1} parent=1 // pred_check
      _
    $region83: #{network_forward.1} parent=1 // pred_check_branch
      %171 = sbr.rel (0) target = $region85
    $region84: #{network_forward.1} parent=1 // pred_region
      %172 = dma.done [#allocation6], 256
    $region85: #{network_forward.1} parent=1 // pred_fallthru
      _
    // Predicated region
    $region86: #{network_forward.1} parent=1 // pred_check
      _
    $region87: #{network_forward.1} parent=1 // pred_check_branch
      %174 = sbr.rel (0) target = $region89
    $region88: #{network_forward.1} parent=1 // pred_region
      %175 = dma.done [#allocation6], 256
    $region89: #{network_forward.1} parent=1 // pred_fallthru
      _
    // Predicated region
    $region90: #{network_forward.1} parent=1 // pred_check
      _
    $region91: #{network_forward.1} parent=1 // pred_check_branch
      %177 = sbr.rel (0) target = $region93
    $region92: #{network_forward.1} parent=1 // pred_region
      %178 = dma.done [#allocation9], 2304
    $region93: #{network_forward.1} parent=1 // pred_fallthru
      _
    // Predicated region
    $region94: #{network_forward.1} parent=1 // pred_check
      _
    $region95: #{network_forward.1} parent=1 // pred_check_branch
      %180 = sbr.rel (0) target = $region97
    $region96: #{network_forward.1} parent=1 // pred_region
      %181 = dma.done [#allocation9], 2304
    $region97: #{network_forward.1} parent=1 // pred_fallthru
      _
    // Predicated region
    $region98: #{network_forward.1} parent=1 // pred_check
      _
    $region99: #{network_forward.1} parent=1 // pred_check_branch
      %183 = sbr.rel (0) target = $region101
    $region100: #{network_forward.1} parent=1 // pred_region
      %184 = dma.done [#allocation12], 16
    $region101: #{network_forward.1} parent=1 // pred_fallthru
      _
    // Predicated region
    $region102: #{network_forward.1} parent=1 // pred_check
      _
    $region103: #{network_forward.1} parent=1 // pred_check_branch
      %186 = sbr.rel (0) target = $region105
    $region104: #{network_forward.1} parent=1 // pred_region
      %187 = dma.done [#allocation12], 64
    $region105: #{network_forward.1} parent=1 // pred_fallthru
      _
    // Predicated region
    $region106: #{network_forward.1} parent=1 // pred_check
      _
    $region107: #{network_forward.1} parent=1 // pred_check_branch
      %189 = sbr.rel (0) target = $region109
    $region108: #{network_forward.1} parent=1 // pred_region
      %190 = dma.done [#allocation15], 3072
    $region109: #{network_forward.1} parent=1 // pred_fallthru
      _
    // Predicated region
    $region110: #{network_forward.1} parent=1 // pred_check
      _
    $region111: #{network_forward.1} parent=1 // pred_check_branch
      %192 = sbr.rel (0) target = $region113
    $region112: #{network_forward.1} parent=1 // pred_region
      %193 = dma.done [#allocation15], 16
    $region113: #{network_forward.1} parent=1 // pred_fallthru
      _
    // Predicated region
    $region114: #{network_forward.1} parent=1 // pred_check
      _
    $region115: #{network_forward.1} parent=1 // pred_check_branch
      %195 = sbr.rel (0) target = $region117
    $region116: #{network_forward.1} parent=1 // pred_region
      %196 = dma.done [#allocation18], 16
    $region117: #{network_forward.1} parent=1 // pred_fallthru
      _
    // Predicated region
    $region118: #{network_forward.1} parent=1 // pred_check
      _
    $region119: #{network_forward.1} parent=1 // pred_check_branch
      %198 = sbr.rel (0) target = $region121
    $region120: #{network_forward.1} parent=1 // pred_region
      %199 = dma.done [#allocation18], 16
    $region121: #{network_forward.1} parent=1 // pred_fallthru
      _
    %v200 = vld [vmem:[%s0] sm:$0xff]
    %v201 = vld [vmem:[%s0 + $0x8] sm:$0xff]
    %v202 = vld [vmem:[%s0 + $0x10] sm:$0xff]
    %v203 = vld [vmem:[%s0 + $0x18] sm:$0xf]
    %v204 = vld [vmem:[%s1] sm:$0xff]
    %v205 = vld [vmem:[%s1 + $0x8] sm:$0xff]
    %v206 = vld [vmem:[%s1 + $0x10] sm:$0xff]
    %v207 = vld [vmem:[%s1 + $0x18] sm:$0xff]
    %v208 = vld [vmem:[%s1 + $0x20] sm:$0xff]
    %v209 = vld [vmem:[%s1 + $0x28] sm:$0xff]
    %v210 = vld [vmem:[%s1 + $0x30] sm:$0xf]
    %v211 = vld [vmem:[%s1 + $0x38] sm:$0xf]
    %s212 = scalar_lea.vmem %s1, 64
    %v213 = vld [vmem:[%s212] sm:$0xff]
    %v214 = vld [vmem:[%s212 + $0x8] sm:$0xff]
    %v215 = vld [vmem:[%s212 + $0x10] sm:$0xff]
    %v216 = vld [vmem:[%s212 + $0x18] sm:$0xff]
    %v217 = vld [vmem:[%s212 + $0x20] sm:$0xff]
    %v218 = vld [vmem:[%s212 + $0x28] sm:$0xff]
    %v219 = vld [vmem:[%s212 + $0x30] sm:$0xf]
    %v220 = vld [vmem:[%s212 + $0x38] sm:$0xf]
    %vm225 = vcmask 1046528
    %v226 = vrot.slane %v200, 1
    %v227 = vrot.slane %v201, 1
    %v228 = vsel %vm225, %v226, %v227
    %v229 = vrot.slane %v202, 1
    %v230 = vsel %vm225, %v227, %v229
    %v231 = vrot.slane %v203, 1
    %v232 = vsel %vm225, %v229, %v231
    %vm233 = vcmask 228352
    %v234 = vsel %vm233, %v228, 0
    %v236 = vsel %vm233, %v230, 0
    %v238 = vsel %vm233, %v232, 0
    %vm240 = vcmask 1043456
    %v242 = vsel %vm240, %v219, 0
    %v245 = vsel %vm240, %v220, 0
    %247 = vmatprep.subr.mxu0 %v214
    %248 = vmatpush1.msra.mxu0 %v213
    %249 = vmatprep.subr.mxu0 %v216
    %250 = vmatpush1.msra.mxu0 %v215
    %251 = vmatprep.subr.mxu0 %v218
    %252 = vmatpush1.msra.mxu0 %v217
    %253 = vmatprep.subr.mxu0 %v245
    %254 = vmatpush1.msra.mxu0 %v242
    %255 = vmatprep.subr.mxu0 0.0
    %256 = vmatpush1.msra.mxu0 0.0
    %257 = vmatprep.subr.mxu0 0.0
    %258 = vmatpush1.msra.mxu0 0.0
    %259 = vmatprep.subr.mxu0 0.0
    %260 = vmatpush1.msra.mxu0 0.0
    %261 = vmatprep.subr.mxu0 0.0
    %262 = vmatpush1.msra.mxu0 0.0
    %263 = vmatprep.subr.mxu0 0.0
    %264 = vmatpush1.msra.mxu0 0.0
    %265 = vmatprep.subr.mxu0 0.0
    %266 = vmatpush1.msra.mxu0 0.0
    %267 = vmatprep.subr.mxu0 0.0
    %268 = vmatpush1.msra.mxu0 0.0
    %269 = vmatprep.subr.mxu0 0.0
    %270 = vmatpush1.msra.mxu0 0.0
    %271 = vmatprep.subr.mxu0 0.0
    %272 = vmatpush1.msra.mxu0 0.0
    %273 = vmatprep.subr.mxu0 0.0
    %274 = vmatpush1.msra.mxu0 0.0
    %275 = vmatprep.subr.mxu0 0.0
    %276 = vmatpush1.msra.mxu0 0.0
    %277 = vmatprep.subr.mxu0 0.0
    %278 = vmatpush1.msra.mxu0 0.0
    %279 = vmatprep.subr.mxu0 0.0
    %280 = vmatpush1.msra.mxu0 0.0
    %281 = vmatprep.subr.mxu0 0.0
    %282 = vmatpush1.msra.mxu0 0.0
    %283 = vmatprep.subr.mxu0 0.0
    %284 = vmatpush1.msra.mxu0 0.0
    %285 = vmatprep.subr.mxu0 0.0
    %286 = vmatpush1.msra.mxu0 0.0
    %287 = vmatprep.subr.mxu0 0.0
    %288 = vmatpush1.msra.mxu0 0.0
    %289 = vmatprep.subr.mxu0 0.0
    %290 = vmatpush1.msra.mxu0 0.0
    %291 = vmatprep.subr.mxu0 0.0
    %292 = vmatpush1.msra.mxu0 0.0
    %293 = vmatprep.subr.mxu0 0.0
    %294 = vmatpush1.msra.mxu0 0.0
    %295 = vmatprep.subr.mxu0 0.0
    %296 = vmatpush1.msra.mxu0 0.0
    %297 = vmatprep.subr.mxu0 0.0
    %298 = vmatpush1.msra.mxu0 0.0
    %299 = vmatprep.subr.mxu0 0.0
    %300 = vmatpush1.msra.mxu0 0.0
    %301 = vmatprep.subr.mxu0 0.0
    %302 = vmatpush1.msra.mxu0 0.0
    %303 = vmatprep.subr.mxu0 0.0
    %304 = vmatpush1.msra.mxu0 0.0
    %305 = vmatprep.subr.mxu0 0.0
    %306 = vmatpush1.msra.mxu0 0.0
    %307 = vmatprep.subr.mxu0 0.0
    %308 = vmatpush1.msra.mxu0 0.0
    %309 = vmatprep.subr.mxu0 0.0
    %310 = vmatpush1.msra.mxu0 0.0
    %311 = vmatprep.mubr.f32.mxu0 0.0
    %312 = vmatmul.mubr.f32.gmra.mrb[0].mxu0 %v234
    %v313 = vpop.f32.mrb[0].mxu0
    %v314 = vadd.f32 0.0, %v313
    %v315 = vpop.f32.mrb[0].mxu0
    %v316 = vadd.f32 0.0, %v315
    %317 = vmatprep.mubr.f32.mxu0 0.0
    %318 = vmatmul.mubr.f32.gmra.mrb[0].mxu0 %v236
    %v319 = vpop.f32.mrb[0].mxu0
    %v320 = vadd.f32 0.0, %v319
    %v321 = vpop.f32.mrb[0].mxu0
    %v322 = vadd.f32 0.0, %v321
    %323 = vmatprep.mubr.f32.mxu0 0.0
    %324 = vmatmul.mubr.f32.gmra.mrb[0].mxu0 %v238
    %v325 = vpop.f32.mrb[0].mxu0
    %v326 = vadd.f32 0.0, %v325
    %v327 = vpop.f32.mrb[0].mxu0
    %v328 = vadd.f32 0.0, %v327
    %329 = vdwg.mxu0
    %v330 = vsel %vm233, %v200, 0
    %v332 = vsel %vm233, %v201, 0
    %v334 = vsel %vm233, %v202, 0
    %v337 = vsel %vm240, %v210, 0
    %v340 = vsel %vm240, %v211, 0
    %342 = vmatprep.subr.mxu0 %v205
    %343 = vmatpush1.msra.mxu0 %v204
    %344 = vmatprep.subr.mxu0 %v207
    %345 = vmatpush1.msra.mxu0 %v206
    %346 = vmatprep.subr.mxu0 %v209
    %347 = vmatpush1.msra.mxu0 %v208
    %348 = vmatprep.subr.mxu0 %v340
    %349 = vmatpush1.msra.mxu0 %v337
    %350 = vmatprep.subr.mxu0 0.0
    %351 = vmatpush1.msra.mxu0 0.0
    %352 = vmatprep.subr.mxu0 0.0
    %353 = vmatpush1.msra.mxu0 0.0
    %354 = vmatprep.subr.mxu0 0.0
    %355 = vmatpush1.msra.mxu0 0.0
    %356 = vmatprep.subr.mxu0 0.0
    %357 = vmatpush1.msra.mxu0 0.0
    %358 = vmatprep.subr.mxu0 0.0
    %359 = vmatpush1.msra.mxu0 0.0
    %360 = vmatprep.subr.mxu0 0.0
    %361 = vmatpush1.msra.mxu0 0.0
    %362 = vmatprep.subr.mxu0 0.0
    %363 = vmatpush1.msra.mxu0 0.0
    %364 = vmatprep.subr.mxu0 0.0
    %365 = vmatpush1.msra.mxu0 0.0
    %366 = vmatprep.subr.mxu0 0.0
    %367 = vmatpush1.msra.mxu0 0.0
    %368 = vmatprep.subr.mxu0 0.0
    %369 = vmatpush1.msra.mxu0 0.0
    %370 = vmatprep.subr.mxu0 0.0
    %371 = vmatpush1.msra.mxu0 0.0
    %372 = vmatprep.subr.mxu0 0.0
    %373 = vmatpush1.msra.mxu0 0.0
    %374 = vmatprep.subr.mxu0 0.0
    %375 = vmatpush1.msra.mxu0 0.0
    %376 = vmatprep.subr.mxu0 0.0
    %377 = vmatpush1.msra.mxu0 0.0
    %378 = vmatprep.subr.mxu0 0.0
    %379 = vmatpush1.msra.mxu0 0.0
    %380 = vmatprep.subr.mxu0 0.0
    %381 = vmatpush1.msra.mxu0 0.0
    %382 = vmatprep.subr.mxu0 0.0
    %383 = vmatpush1.msra.mxu0 0.0
    %384 = vmatprep.subr.mxu0 0.0
    %385 = vmatpush1.msra.mxu0 0.0
    %386 = vmatprep.subr.mxu0 0.0
    %387 = vmatpush1.msra.mxu0 0.0
    %388 = vmatprep.subr.mxu0 0.0
    %389 = vmatpush1.msra.mxu0 0.0
    %390 = vmatprep.subr.mxu0 0.0
    %391 = vmatpush1.msra.mxu0 0.0
    %392 = vmatprep.subr.mxu0 0.0
    %393 = vmatpush1.msra.mxu0 0.0
    %394 = vmatprep.subr.mxu0 0.0
    %395 = vmatpush1.msra.mxu0 0.0
    %396 = vmatprep.subr.mxu0 0.0
    %397 = vmatpush1.msra.mxu0 0.0
    %398 = vmatprep.subr.mxu0 0.0
    %399 = vmatpush1.msra.mxu0 0.0
    %400 = vmatprep.subr.mxu0 0.0
    %401 = vmatpush1.msra.mxu0 0.0
    %402 = vmatprep.subr.mxu0 0.0
    %403 = vmatpush1.msra.mxu0 0.0
    %404 = vmatprep.subr.mxu0 0.0
    %405 = vmatpush1.msra.mxu0 0.0
    %406 = vmatprep.mubr.f32.mxu0 0.0
    %407 = vmatmul.mubr.f32.gmra.mrb[0].mxu0 %v330
    %v408 = vpop.f32.mrb[0].mxu0
    %v409 = vadd.f32 %v314, %v408
    %v410 = vpop.f32.mrb[0].mxu0
    %v411 = vadd.f32 %v316, %v410
    %412 = vmatprep.mubr.f32.mxu0 0.0
    %413 = vmatmul.mubr.f32.gmra.mrb[0].mxu0 %v332
    %v414 = vpop.f32.mrb[0].mxu0
    %v415 = vadd.f32 %v320, %v414
    %v416 = vpop.f32.mrb[0].mxu0
    %v417 = vadd.f32 %v322, %v416
    %418 = vmatprep.mubr.f32.mxu0 0.0
    %419 = vmatmul.mubr.f32.gmra.mrb[0].mxu0 %v334
    %v420 = vpop.f32.mrb[0].mxu0
    %v421 = vadd.f32 %v326, %v420
    %v422 = vpop.f32.mrb[0].mxu0
    %v423 = vadd.f32 %v328, %v422
    %424 = vdwg.mxu0
    %s425 = scalar_lea.vmem %s1, 128
    %v426 = vld [vmem:[%s425] sm:$0xff]
    %v427 = vld [vmem:[%s425 + $0x8] sm:$0xff]
    %v428 = vld [vmem:[%s425 + $0x10] sm:$0xff]
    %v429 = vld [vmem:[%s425 + $0x18] sm:$0xff]
    %v430 = vld [vmem:[%s425 + $0x20] sm:$0xff]
    %v431 = vld [vmem:[%s425 + $0x28] sm:$0xff]
    %v432 = vld [vmem:[%s425 + $0x30] sm:$0xf]
    %v433 = vld [vmem:[%s425 + $0x38] sm:$0xf]
    %vm434 = vcmask 1045504
    %v435 = vrot.slane %v200, 2
    %v436 = vrot.slane %v201, 2
    %v437 = vsel %vm434, %v435, %v436
    %v438 = vrot.slane %v202, 2
    %v439 = vsel %vm434, %v436, %v438
    %v440 = vrot.slane %v203, 2
    %v441 = vsel %vm434, %v438, %v440
    %v442 = vsel %vm233, %v437, 0
    %v444 = vsel %vm233, %v439, 0
    %v446 = vsel %vm233, %v441, 0
    %v449 = vsel %vm240, %v432, 0
    %v452 = vsel %vm240, %v433, 0
    %454 = vmatprep.subr.mxu0 %v427
    %455 = vmatpush1.msra.mxu0 %v426
    %456 = vmatprep.subr.mxu0 %v429
    %457 = vmatpush1.msra.mxu0 %v428
    %458 = vmatprep.subr.mxu0 %v431
    %459 = vmatpush1.msra.mxu0 %v430
    %460 = vmatprep.subr.mxu0 %v452
    %461 = vmatpush1.msra.mxu0 %v449
    %462 = vmatprep.subr.mxu0 0.0
    %463 = vmatpush1.msra.mxu0 0.0
    %464 = vmatprep.subr.mxu0 0.0
    %465 = vmatpush1.msra.mxu0 0.0
    %466 = vmatprep.subr.mxu0 0.0
    %467 = vmatpush1.msra.mxu0 0.0
    %468 = vmatprep.subr.mxu0 0.0
    %469 = vmatpush1.msra.mxu0 0.0
    %470 = vmatprep.subr.mxu0 0.0
    %471 = vmatpush1.msra.mxu0 0.0
    %472 = vmatprep.subr.mxu0 0.0
    %473 = vmatpush1.msra.mxu0 0.0
    %474 = vmatprep.subr.mxu0 0.0
    %475 = vmatpush1.msra.mxu0 0.0
    %476 = vmatprep.subr.mxu0 0.0
    %477 = vmatpush1.msra.mxu0 0.0
    %478 = vmatprep.subr.mxu0 0.0
    %479 = vmatpush1.msra.mxu0 0.0
    %480 = vmatprep.subr.mxu0 0.0
    %481 = vmatpush1.msra.mxu0 0.0
    %482 = vmatprep.subr.mxu0 0.0
    %483 = vmatpush1.msra.mxu0 0.0
    %484 = vmatprep.subr.mxu0 0.0
    %485 = vmatpush1.msra.mxu0 0.0
    %486 = vmatprep.subr.mxu0 0.0
    %487 = vmatpush1.msra.mxu0 0.0
    %488 = vmatprep.subr.mxu0 0.0
    %489 = vmatpush1.msra.mxu0 0.0
    %490 = vmatprep.subr.mxu0 0.0
    %491 = vmatpush1.msra.mxu0 0.0
    %492 = vmatprep.subr.mxu0 0.0
    %493 = vmatpush1.msra.mxu0 0.0
    %494 = vmatprep.subr.mxu0 0.0
    %495 = vmatpush1.msra.mxu0 0.0
    %496 = vmatprep.subr.mxu0 0.0
    %497 = vmatpush1.msra.mxu0 0.0
    %498 = vmatprep.subr.mxu0 0.0
    %499 = vmatpush1.msra.mxu0 0.0
    %500 = vmatprep.subr.mxu0 0.0
    %501 = vmatpush1.msra.mxu0 0.0
    %502 = vmatprep.subr.mxu0 0.0
    %503 = vmatpush1.msra.mxu0 0.0
    %504 = vmatprep.subr.mxu0 0.0
    %505 = vmatpush1.msra.mxu0 0.0
    %506 = vmatprep.subr.mxu0 0.0
    %507 = vmatpush1.msra.mxu0 0.0
    %508 = vmatprep.subr.mxu0 0.0
    %509 = vmatpush1.msra.mxu0 0.0
    %510 = vmatprep.subr.mxu0 0.0
    %511 = vmatpush1.msra.mxu0 0.0
    %512 = vmatprep.subr.mxu0 0.0
    %513 = vmatpush1.msra.mxu0 0.0
    %514 = vmatprep.subr.mxu0 0.0
    %515 = vmatpush1.msra.mxu0 0.0
    %516 = vmatprep.subr.mxu0 0.0
    %517 = vmatpush1.msra.mxu0 0.0
    %518 = vmatprep.mubr.f32.mxu0 0.0
    %519 = vmatmul.mubr.f32.gmra.mrb[0].mxu0 %v442
    %v520 = vpop.f32.mrb[0].mxu0
    %v521 = vadd.f32 0.0, %v520
    %v522 = vpop.f32.mrb[0].mxu0
    %v523 = vadd.f32 0.0, %v522
    %524 = vmatprep.mubr.f32.mxu0 0.0
    %525 = vmatmul.mubr.f32.gmra.mrb[0].mxu0 %v444
    %v526 = vpop.f32.mrb[0].mxu0
    %v527 = vadd.f32 0.0, %v526
    %v528 = vpop.f32.mrb[0].mxu0
    %v529 = vadd.f32 0.0, %v528
    %530 = vmatprep.mubr.f32.mxu0 0.0
    %531 = vmatmul.mubr.f32.gmra.mrb[0].mxu0 %v446
    %v532 = vpop.f32.mrb[0].mxu0
    %v533 = vadd.f32 0.0, %v532
    %v534 = vpop.f32.mrb[0].mxu0
    %v535 = vadd.f32 0.0, %v534
    %536 = vdwg.mxu0
    %v537 = vadd.f32 %v409, %v521
    %v538 = vadd.f32 %v411, %v523
    %v539 = vadd.f32 %v415, %v527
    %v540 = vadd.f32 %v417, %v529
    %v541 = vadd.f32 %v421, %v533
    %v542 = vadd.f32 %v423, %v535
    %s543 = scalar_lea.vmem %s1, 192
    %v544 = vld [vmem:[%s543] sm:$0xff]
    %v545 = vld [vmem:[%s543 + $0x8] sm:$0xff]
    %v546 = vld [vmem:[%s543 + $0x10] sm:$0xff]
    %v547 = vld [vmem:[%s543 + $0x18] sm:$0xff]
    %v548 = vld [vmem:[%s543 + $0x20] sm:$0xff]
    %v549 = vld [vmem:[%s543 + $0x28] sm:$0xff]
    %v550 = vld [vmem:[%s543 + $0x30] sm:$0xf]
    %v551 = vld [vmem:[%s543 + $0x38] sm:$0xf]
    %vm552 = vcmask 1044480
    %v553 = vrot.slane %v200, 3
    %v554 = vrot.slane %v201, 3
    %v555 = vsel %vm552, %v553, %v554
    %v556 = vrot.slane %v202, 3
    %v557 = vsel %vm552, %v554, %v556
    %v558 = vrot.slane %v203, 3
    %v559 = vsel %vm552, %v556, %v558
    %v560 = vsel %vm233, %v555, 0
    %v562 = vsel %vm233, %v557, 0
    %v564 = vsel %vm233, %v559, 0
    %v567 = vsel %vm240, %v550, 0
    %v570 = vsel %vm240, %v551, 0
    %572 = vmatprep.subr.mxu0 %v545
    %573 = vmatpush1.msra.mxu0 %v544
    %574 = vmatprep.subr.mxu0 %v547
    %575 = vmatpush1.msra.mxu0 %v546
    %576 = vmatprep.subr.mxu0 %v549
    %577 = vmatpush1.msra.mxu0 %v548
    %578 = vmatprep.subr.mxu0 %v570
    %579 = vmatpush1.msra.mxu0 %v567
    %580 = vmatprep.subr.mxu0 0.0
    %581 = vmatpush1.msra.mxu0 0.0
    %582 = vmatprep.subr.mxu0 0.0
    %583 = vmatpush1.msra.mxu0 0.0
    %584 = vmatprep.subr.mxu0 0.0
    %585 = vmatpush1.msra.mxu0 0.0
    %586 = vmatprep.subr.mxu0 0.0
    %587 = vmatpush1.msra.mxu0 0.0
    %588 = vmatprep.subr.mxu0 0.0
    %589 = vmatpush1.msra.mxu0 0.0
    %590 = vmatprep.subr.mxu0 0.0
    %591 = vmatpush1.msra.mxu0 0.0
    %592 = vmatprep.subr.mxu0 0.0
    %593 = vmatpush1.msra.mxu0 0.0
    %594 = vmatprep.subr.mxu0 0.0
    %595 = vmatpush1.msra.mxu0 0.0
    %596 = vmatprep.subr.mxu0 0.0
    %597 = vmatpush1.msra.mxu0 0.0
    %598 = vmatprep.subr.mxu0 0.0
    %599 = vmatpush1.msra.mxu0 0.0
    %600 = vmatprep.subr.mxu0 0.0
    %601 = vmatpush1.msra.mxu0 0.0
    %602 = vmatprep.subr.mxu0 0.0
    %603 = vmatpush1.msra.mxu0 0.0
    %604 = vmatprep.subr.mxu0 0.0
    %605 = vmatpush1.msra.mxu0 0.0
    %606 = vmatprep.subr.mxu0 0.0
    %607 = vmatpush1.msra.mxu0 0.0
    %608 = vmatprep.subr.mxu0 0.0
    %609 = vmatpush1.msra.mxu0 0.0
    %610 = vmatprep.subr.mxu0 0.0
    %611 = vmatpush1.msra.mxu0 0.0
    %612 = vmatprep.subr.mxu0 0.0
    %613 = vmatpush1.msra.mxu0 0.0
    %614 = vmatprep.subr.mxu0 0.0
    %615 = vmatpush1.msra.mxu0 0.0
    %616 = vmatprep.subr.mxu0 0.0
    %617 = vmatpush1.msra.mxu0 0.0
    %618 = vmatprep.subr.mxu0 0.0
    %619 = vmatpush1.msra.mxu0 0.0
    %620 = vmatprep.subr.mxu0 0.0
    %621 = vmatpush1.msra.mxu0 0.0
    %622 = vmatprep.subr.mxu0 0.0
    %623 = vmatpush1.msra.mxu0 0.0
    %624 = vmatprep.subr.mxu0 0.0
    %625 = vmatpush1.msra.mxu0 0.0
    %626 = vmatprep.subr.mxu0 0.0
    %627 = vmatpush1.msra.mxu0 0.0
    %628 = vmatprep.subr.mxu0 0.0
    %629 = vmatpush1.msra.mxu0 0.0
    %630 = vmatprep.subr.mxu0 0.0
    %631 = vmatpush1.msra.mxu0 0.0
    %632 = vmatprep.subr.mxu0 0.0
    %633 = vmatpush1.msra.mxu0 0.0
    %634 = vmatprep.subr.mxu0 0.0
    %635 = vmatpush1.msra.mxu0 0.0
    %636 = vmatprep.mubr.f32.mxu0 0.0
    %637 = vmatmul.mubr.f32.gmra.mrb[0].mxu0 %v560
    %v638 = vpop.f32.mrb[0].mxu0
    %v639 = vadd.f32 0.0, %v638
    %v640 = vpop.f32.mrb[0].mxu0
    %v641 = vadd.f32 0.0, %v640
    %642 = vmatprep.mubr.f32.mxu0 0.0
    %643 = vmatmul.mubr.f32.gmra.mrb[0].mxu0 %v562
    %v644 = vpop.f32.mrb[0].mxu0
    %v645 = vadd.f32 0.0, %v644
    %v646 = vpop.f32.mrb[0].mxu0
    %v647 = vadd.f32 0.0, %v646
    %648 = vmatprep.mubr.f32.mxu0 0.0
    %649 = vmatmul.mubr.f32.gmra.mrb[0].mxu0 %v564
    %v650 = vpop.f32.mrb[0].mxu0
    %v651 = vadd.f32 0.0, %v650
    %v652 = vpop.f32.mrb[0].mxu0
    %v653 = vadd.f32 0.0, %v652
    %654 = vdwg.mxu0
    %v655 = vadd.f32 %v537, %v639
    %v656 = vadd.f32 %v538, %v641
    %v657 = vadd.f32 %v539, %v645
    %v658 = vadd.f32 %v540, %v647
    %v659 = vadd.f32 %v541, %v651
    %v660 = vadd.f32 %v542, %v653
    %s661 = scalar_lea.vmem %s1, 256
    %v662 = vld [vmem:[%s661] sm:$0xff]
    %v663 = vld [vmem:[%s661 + $0x8] sm:$0xff]
    %v664 = vld [vmem:[%s661 + $0x10] sm:$0xff]
    %v665 = vld [vmem:[%s661 + $0x18] sm:$0xff]
    %v666 = vld [vmem:[%s661 + $0x20] sm:$0xff]
    %v667 = vld [vmem:[%s661 + $0x28] sm:$0xff]
    %v668 = vld [vmem:[%s661 + $0x30] sm:$0xf]
    %v669 = vld [vmem:[%s661 + $0x38] sm:$0xf]
    %v670 = vrot.slane %v200, 4
    %v671 = vrot.slane %v201, 4
    %v672 = vsel %vm240, %v670, %v671
    %v673 = vrot.slane %v202, 4
    %v674 = vsel %vm240, %v671, %v673
    %v675 = vrot.slane %v203, 4
    %v676 = vsel %vm240, %v673, %v675
    %v677 = vsel %vm233, %v672, 0
    %v679 = vsel %vm233, %v674, 0
    %v681 = vsel %vm233, %v676, 0
    %v684 = vsel %vm240, %v668, 0
    %v687 = vsel %vm240, %v669, 0
    %689 = vmatprep.subr.mxu0 %v663
    %690 = vmatpush1.msra.mxu0 %v662
    %691 = vmatprep.subr.mxu0 %v665
    %692 = vmatpush1.msra.mxu0 %v664
    %693 = vmatprep.subr.mxu0 %v667
    %694 = vmatpush1.msra.mxu0 %v666
    %695 = vmatprep.subr.mxu0 %v687
    %696 = vmatpush1.msra.mxu0 %v684
    %697 = vmatprep.subr.mxu0 0.0
    %698 = vmatpush1.msra.mxu0 0.0
    %699 = vmatprep.subr.mxu0 0.0
    %700 = vmatpush1.msra.mxu0 0.0
    %701 = vmatprep.subr.mxu0 0.0
    %702 = vmatpush1.msra.mxu0 0.0
    %703 = vmatprep.subr.mxu0 0.0
    %704 = vmatpush1.msra.mxu0 0.0
    %705 = vmatprep.subr.mxu0 0.0
    %706 = vmatpush1.msra.mxu0 0.0
    %707 = vmatprep.subr.mxu0 0.0
    %708 = vmatpush1.msra.mxu0 0.0
    %709 = vmatprep.subr.mxu0 0.0
    %710 = vmatpush1.msra.mxu0 0.0
    %711 = vmatprep.subr.mxu0 0.0
    %712 = vmatpush1.msra.mxu0 0.0
    %713 = vmatprep.subr.mxu0 0.0
    %714 = vmatpush1.msra.mxu0 0.0
    %715 = vmatprep.subr.mxu0 0.0
    %716 = vmatpush1.msra.mxu0 0.0
    %717 = vmatprep.subr.mxu0 0.0
    %718 = vmatpush1.msra.mxu0 0.0
    %719 = vmatprep.subr.mxu0 0.0
    %720 = vmatpush1.msra.mxu0 0.0
    %721 = vmatprep.subr.mxu0 0.0
    %722 = vmatpush1.msra.mxu0 0.0
    %723 = vmatprep.subr.mxu0 0.0
    %724 = vmatpush1.msra.mxu0 0.0
    %725 = vmatprep.subr.mxu0 0.0
    %726 = vmatpush1.msra.mxu0 0.0
    %727 = vmatprep.subr.mxu0 0.0
    %728 = vmatpush1.msra.mxu0 0.0
    %729 = vmatprep.subr.mxu0 0.0
    %730 = vmatpush1.msra.mxu0 0.0
    %731 = vmatprep.subr.mxu0 0.0
    %732 = vmatpush1.msra.mxu0 0.0
    %733 = vmatprep.subr.mxu0 0.0
    %734 = vmatpush1.msra.mxu0 0.0
    %735 = vmatprep.subr.mxu0 0.0
    %736 = vmatpush1.msra.mxu0 0.0
    %737 = vmatprep.subr.mxu0 0.0
    %738 = vmatpush1.msra.mxu0 0.0
    %739 = vmatprep.subr.mxu0 0.0
    %740 = vmatpush1.msra.mxu0 0.0
    %741 = vmatprep.subr.mxu0 0.0
    %742 = vmatpush1.msra.mxu0 0.0
    %743 = vmatprep.subr.mxu0 0.0
    %744 = vmatpush1.msra.mxu0 0.0
    %745 = vmatprep.subr.mxu0 0.0
    %746 = vmatpush1.msra.mxu0 0.0
    %747 = vmatprep.subr.mxu0 0.0
    %748 = vmatpush1.msra.mxu0 0.0
    %749 = vmatprep.subr.mxu0 0.0
    %750 = vmatpush1.msra.mxu0 0.0
    %751 = vmatprep.subr.mxu0 0.0
    %752 = vmatpush1.msra.mxu0 0.0
    %753 = vmatprep.mubr.f32.mxu0 0.0
    %754 = vmatmul.mubr.f32.gmra.mrb[0].mxu0 %v677
    %v755 = vpop.f32.mrb[0].mxu0
    %v756 = vadd.f32 0.0, %v755
    %v757 = vpop.f32.mrb[0].mxu0
    %v758 = vadd.f32 0.0, %v757
    %759 = vmatprep.mubr.f32.mxu0 0.0
    %760 = vmatmul.mubr.f32.gmra.mrb[0].mxu0 %v679
    %v761 = vpop.f32.mrb[0].mxu0
    %v762 = vadd.f32 0.0, %v761
    %v763 = vpop.f32.mrb[0].mxu0
    %v764 = vadd.f32 0.0, %v763
    %765 = vmatprep.mubr.f32.mxu0 0.0
    %766 = vmatmul.mubr.f32.gmra.mrb[0].mxu0 %v681
    %v767 = vpop.f32.mrb[0].mxu0
    %v768 = vadd.f32 0.0, %v767
    %v769 = vpop.f32.mrb[0].mxu0
    %v770 = vadd.f32 0.0, %v769
    %771 = vdwg.mxu0
    %v772 = vadd.f32 %v655, %v756
    %v773 = vadd.f32 %v656, %v758
    %v774 = vadd.f32 %v657, %v762
    %v775 = vadd.f32 %v658, %v764
    %v776 = vadd.f32 %v659, %v768
    %v777 = vadd.f32 %v660, %v770
    %v778 = vld [vmem:[#allocation2] sm:$0x3]
    %v780 = vlaneseq
    %v781 = vshrl.u32 %v780, 7
    %v782 = vsub.s32 0, %v781
    %v783 = vrot.slane %v778, %v782
    %v784 = vlaneseq
    %v785 = vshrl.u32 %v784, 7
    %v786 = vsub.s32 1, %v785
    %v787 = vrot.slane %v778, %v786
    %v790 = vadd.f32 %v772, %v783
    %v791 = vadd.f32 %v773, %v787
    %v792 = vadd.f32 %v774, %v783
    %v793 = vadd.f32 %v775, %v787
    %v794 = vadd.f32 %v776, %v783
    %v795 = vadd.f32 %v777, %v787
    %v796 = vmax.f32 %v790, 0.0
    %v797 = vmax.f32 %v791, 0.0
    %v798 = vmax.f32 %v792, 0.0
    %v799 = vmax.f32 %v793, 0.0
    %v800 = vmax.f32 %v794, 0.0
    %v801 = vmax.f32 %v795, 0.0
    %v802 = vld [vmem:[#allocation5] sm:$0xff]
    %v803 = vld [vmem:[#allocation5 + $0x8] sm:$0xf]
    %vm804 = vcmask 195584
    %v806 = vsel %vm804, %v802, 0
    %v809 = vsel %vm804, %v803, 0
    %811 = vmatprep.subr.mxu0 %v797
    %812 = vmatpush1.msra.mxu0 %v796
    %813 = vmatprep.subr.mxu0 %v799
    %814 = vmatpush1.msra.mxu0 %v798
    %815 = vmatprep.subr.mxu0 %v801
    %816 = vmatpush1.msra.mxu0 %v800
    %817 = vmatprep.subr.mxu0 0.0
    %818 = vmatpush1.msra.mxu0 0.0
    %819 = vmatprep.subr.mxu0 0.0
    %820 = vmatpush1.msra.mxu0 0.0
    %821 = vmatprep.subr.mxu0 0.0
    %822 = vmatpush1.msra.mxu0 0.0
    %823 = vmatprep.subr.mxu0 0.0
    %824 = vmatpush1.msra.mxu0 0.0
    %825 = vmatprep.subr.mxu0 0.0
    %826 = vmatpush1.msra.mxu0 0.0
    %827 = vmatprep.subr.mxu0 0.0
    %828 = vmatpush1.msra.mxu0 0.0
    %829 = vmatprep.subr.mxu0 0.0
    %830 = vmatpush1.msra.mxu0 0.0
    %831 = vmatprep.subr.mxu0 0.0
    %832 = vmatpush1.msra.mxu0 0.0
    %833 = vmatprep.subr.mxu0 0.0
    %834 = vmatpush1.msra.mxu0 0.0
    %835 = vmatprep.subr.mxu0 0.0
    %836 = vmatpush1.msra.mxu0 0.0
    %837 = vmatprep.subr.mxu0 0.0
    %838 = vmatpush1.msra.mxu0 0.0
    %839 = vmatprep.subr.mxu0 0.0
    %840 = vmatpush1.msra.mxu0 0.0
    %841 = vmatprep.subr.mxu0 0.0
    %842 = vmatpush1.msra.mxu0 0.0
    %843 = vmatprep.subr.mxu0 0.0
    %844 = vmatpush1.msra.mxu0 0.0
    %845 = vmatprep.subr.mxu0 0.0
    %846 = vmatpush1.msra.mxu0 0.0
    %847 = vmatprep.subr.mxu0 0.0
    %848 = vmatpush1.msra.mxu0 0.0
    %849 = vmatprep.subr.mxu0 0.0
    %850 = vmatpush1.msra.mxu0 0.0
    %851 = vmatprep.subr.mxu0 0.0
    %852 = vmatpush1.msra.mxu0 0.0
    %853 = vmatprep.subr.mxu0 0.0
    %854 = vmatpush1.msra.mxu0 0.0
    %855 = vmatprep.subr.mxu0 0.0
    %856 = vmatpush1.msra.mxu0 0.0
    %857 = vmatprep.subr.mxu0 0.0
    %858 = vmatpush1.msra.mxu0 0.0
    %859 = vmatprep.subr.mxu0 0.0
    %860 = vmatpush1.msra.mxu0 0.0
    %861 = vmatprep.subr.mxu0 0.0
    %862 = vmatpush1.msra.mxu0 0.0
    %863 = vmatprep.subr.mxu0 0.0
    %864 = vmatpush1.msra.mxu0 0.0
    %865 = vmatprep.subr.mxu0 0.0
    %866 = vmatpush1.msra.mxu0 0.0
    %867 = vmatprep.subr.mxu0 0.0
    %868 = vmatpush1.msra.mxu0 0.0
    %869 = vmatprep.subr.mxu0 0.0
    %870 = vmatpush1.msra.mxu0 0.0
    %871 = vmatprep.subr.mxu0 0.0
    %872 = vmatpush1.msra.mxu0 0.0
    %873 = vmatprep.subr.mxu0 0.0
    %874 = vmatpush1.msra.mxu0 0.0
    %875 = vmatprep.mubr.f32.mxu0 0.0
    %876 = vmatmul.mubr.f32.gmra.mrb[0].mxu0 %v806
    %v877 = vpop.f32.mrb[0].mxu0
    %v878 = vadd.f32 0.0, %v877
    %v879 = vpop.f32.mrb[0].mxu0
    %v880 = vadd.f32 0.0, %v879
    %881 = vmatprep.mubr.f32.mxu0 0.0
    %882 = vmatmul.mubr.f32.gmra.mrb[0].mxu0 %v809
    %v883 = vpop.f32.mrb[0].mxu0
    %v884 = vadd.f32 0.0, %v883
    %v885 = vpop.f32.mrb[0].mxu0
    %v886 = vadd.f32 0.0, %v885
    %887 = vdwg.mxu0
    %v888 = vld [vmem:[#allocation7] sm:$0xff]
    %v889 = vld [vmem:[#allocation7 + $0x8] sm:$0xf]
    %v891 = vsel %vm804, %v888, 0
    %v894 = vsel %vm804, %v889, 0
    %896 = vmatprep.subr.mxu0 %v797
    %897 = vmatpush1.msra.mxu0 %v796
    %898 = vmatprep.subr.mxu0 %v799
    %899 = vmatpush1.msra.mxu0 %v798
    %900 = vmatprep.subr.mxu0 %v801
    %901 = vmatpush1.msra.mxu0 %v800
    %902 = vmatprep.subr.mxu0 0.0
    %903 = vmatpush1.msra.mxu0 0.0
    %904 = vmatprep.subr.mxu0 0.0
    %905 = vmatpush1.msra.mxu0 0.0
    %906 = vmatprep.subr.mxu0 0.0
    %907 = vmatpush1.msra.mxu0 0.0
    %908 = vmatprep.subr.mxu0 0.0
    %909 = vmatpush1.msra.mxu0 0.0
    %910 = vmatprep.subr.mxu0 0.0
    %911 = vmatpush1.msra.mxu0 0.0
    %912 = vmatprep.subr.mxu0 0.0
    %913 = vmatpush1.msra.mxu0 0.0
    %914 = vmatprep.subr.mxu0 0.0
    %915 = vmatpush1.msra.mxu0 0.0
    %916 = vmatprep.subr.mxu0 0.0
    %917 = vmatpush1.msra.mxu0 0.0
    %918 = vmatprep.subr.mxu0 0.0
    %919 = vmatpush1.msra.mxu0 0.0
    %920 = vmatprep.subr.mxu0 0.0
    %921 = vmatpush1.msra.mxu0 0.0
    %922 = vmatprep.subr.mxu0 0.0
    %923 = vmatpush1.msra.mxu0 0.0
    %924 = vmatprep.subr.mxu0 0.0
    %925 = vmatpush1.msra.mxu0 0.0
    %926 = vmatprep.subr.mxu0 0.0
    %927 = vmatpush1.msra.mxu0 0.0
    %928 = vmatprep.subr.mxu0 0.0
    %929 = vmatpush1.msra.mxu0 0.0
    %930 = vmatprep.subr.mxu0 0.0
    %931 = vmatpush1.msra.mxu0 0.0
    %932 = vmatprep.subr.mxu0 0.0
    %933 = vmatpush1.msra.mxu0 0.0
    %934 = vmatprep.subr.mxu0 0.0
    %935 = vmatpush1.msra.mxu0 0.0
    %936 = vmatprep.subr.mxu0 0.0
    %937 = vmatpush1.msra.mxu0 0.0
    %938 = vmatprep.subr.mxu0 0.0
    %939 = vmatpush1.msra.mxu0 0.0
    %940 = vmatprep.subr.mxu0 0.0
    %941 = vmatpush1.msra.mxu0 0.0
    %942 = vmatprep.subr.mxu0 0.0
    %943 = vmatpush1.msra.mxu0 0.0
    %944 = vmatprep.subr.mxu0 0.0
    %945 = vmatpush1.msra.mxu0 0.0
    %946 = vmatprep.subr.mxu0 0.0
    %947 = vmatpush1.msra.mxu0 0.0
    %948 = vmatprep.subr.mxu0 0.0
    %949 = vmatpush1.msra.mxu0 0.0
    %950 = vmatprep.subr.mxu0 0.0
    %951 = vmatpush1.msra.mxu0 0.0
    %952 = vmatprep.subr.mxu0 0.0
    %953 = vmatpush1.msra.mxu0 0.0
    %954 = vmatprep.subr.mxu0 0.0
    %955 = vmatpush1.msra.mxu0 0.0
    %956 = vmatprep.subr.mxu0 0.0
    %957 = vmatpush1.msra.mxu0 0.0
    %958 = vmatprep.subr.mxu0 0.0
    %959 = vmatpush1.msra.mxu0 0.0
    %960 = vmatprep.mubr.f32.mxu0 0.0
    %961 = vmatmul.mubr.f32.gmra.mrb[0].mxu0 %v891
    %v962 = vpop.f32.mrb[0].mxu0
    %v963 = vadd.f32 0.0, %v962
    %v964 = vpop.f32.mrb[0].mxu0
    %v965 = vadd.f32 0.0, %v964
    %966 = vmatprep.mubr.f32.mxu0 0.0
    %967 = vmatmul.mubr.f32.gmra.mrb[0].mxu0 %v894
    %v968 = vpop.f32.mrb[0].mxu0
    %v969 = vadd.f32 0.0, %v968
    %v970 = vpop.f32.mrb[0].mxu0
    %v971 = vadd.f32 0.0, %v970
    %972 = vdwg.mxu0
    %v973 = vmax.f32 %v878, %v963
    %v974 = vmax.f32 %v880, %v965
    %v975 = vmax.f32 %v884, %v969
    %v976 = vmax.f32 %v886, %v971
    %v977 = vld [vmem:[#allocation8] sm:$0xff]
    %v978 = vld [vmem:[#allocation8 + $0x8] sm:$0xff]
    %v979 = vld [vmem:[#allocation8 + $0x10] sm:$0xff]
    %v980 = vld [vmem:[#allocation8 + $0x18] sm:$0xff]
    %v981 = vld [vmem:[#allocation8 + $0x20] sm:$0xff]
    %v982 = vld [vmem:[#allocation8 + $0x28] sm:$0xff]
    %v983 = vld [vmem:[#allocation8 + $0x30] sm:$0xff]
    %v984 = vld [vmem:[#allocation8 + $0x38] sm:$0xff]
    %v985 = vld [vmem:[#allocation8 + $0x40] sm:$0xff]
    %v986 = vld [vmem:[#allocation8 + $0x48] sm:$0xff]
    %v987 = vld [vmem:[#allocation8 + $0x50] sm:$0xff]
    %v988 = vld [vmem:[#allocation8 + $0x58] sm:$0xff]
    %v989 = vld [vmem:[#allocation8 + $0x60] sm:$0xff]
    %v990 = vld [vmem:[#allocation8 + $0x68] sm:$0xff]
    %v991 = vld [vmem:[#allocation8 + $0x70] sm:$0xff]
    %v992 = vld [vmem:[#allocation8 + $0x78] sm:$0xff]
    %v993 = vld [vmem:[#allocation8 + $0x80] sm:$0xff]
    %v994 = vld [vmem:[#allocation8 + $0x88] sm:$0xff]
    %vm995 = vcmask 130048
    %v997 = vsel %vm995, %v974, 0
    %v1000 = vsel %vm995, %v976, 0
    %1002 = vmatprep.subr.mxu0 0.0
    %1003 = vmatpush1.msra.mxu0 %v977
    %1004 = vmatprep.subr.mxu0 0.0
    %1005 = vmatpush1.msra.mxu0 %v978
    %1006 = vmatprep.subr.mxu0 0.0
    %1007 = vmatpush1.msra.mxu0 %v979
    %1008 = vmatprep.subr.mxu0 0.0
    %1009 = vmatpush1.msra.mxu0 %v980
    %1010 = vmatprep.subr.mxu0 0.0
    %1011 = vmatpush1.msra.mxu0 %v981
    %1012 = vmatprep.subr.mxu0 0.0
    %1013 = vmatpush1.msra.mxu0 %v982
    %1014 = vmatprep.subr.mxu0 0.0
    %1015 = vmatpush1.msra.mxu0 %v983
    %1016 = vmatprep.subr.mxu0 0.0
    %1017 = vmatpush1.msra.mxu0 %v984
    %1018 = vmatprep.subr.mxu0 0.0
    %1019 = vmatpush1.msra.mxu0 %v985
    %1020 = vmatprep.subr.mxu0 0.0
    %1021 = vmatpush1.msra.mxu0 %v986
    %1022 = vmatprep.subr.mxu0 0.0
    %1023 = vmatpush1.msra.mxu0 %v987
    %1024 = vmatprep.subr.mxu0 0.0
    %1025 = vmatpush1.msra.mxu0 %v988
    %1026 = vmatprep.subr.mxu0 0.0
    %1027 = vmatpush1.msra.mxu0 %v989
    %1028 = vmatprep.subr.mxu0 0.0
    %1029 = vmatpush1.msra.mxu0 %v990
    %1030 = vmatprep.subr.mxu0 0.0
    %1031 = vmatpush1.msra.mxu0 %v991
    %1032 = vmatprep.subr.mxu0 0.0
    %1033 = vmatpush1.msra.mxu0 %v992
    %1034 = vmatprep.subr.mxu0 0.0
    %1035 = vmatpush1.msra.mxu0 %v993
    %1036 = vmatprep.subr.mxu0 0.0
    %1037 = vmatpush1.msra.mxu0 %v994
    %1038 = vmatprep.subr.mxu0 0.0
    %1039 = vmatpush1.msra.mxu0 0.0
    %1040 = vmatprep.subr.mxu0 0.0
    %1041 = vmatpush1.msra.mxu0 0.0
    %1042 = vmatprep.subr.mxu0 0.0
    %1043 = vmatpush1.msra.mxu0 0.0
    %1044 = vmatprep.subr.mxu0 0.0
    %1045 = vmatpush1.msra.mxu0 0.0
    %1046 = vmatprep.subr.mxu0 0.0
    %1047 = vmatpush1.msra.mxu0 0.0
    %1048 = vmatprep.subr.mxu0 0.0
    %1049 = vmatpush1.msra.mxu0 0.0
    %1050 = vmatprep.subr.mxu0 0.0
    %1051 = vmatpush1.msra.mxu0 0.0
    %1052 = vmatprep.subr.mxu0 0.0
    %1053 = vmatpush1.msra.mxu0 0.0
    %1054 = vmatprep.subr.mxu0 0.0
    %1055 = vmatpush1.msra.mxu0 0.0
    %1056 = vmatprep.subr.mxu0 0.0
    %1057 = vmatpush1.msra.mxu0 0.0
    %1058 = vmatprep.subr.mxu0 0.0
    %1059 = vmatpush1.msra.mxu0 0.0
    %1060 = vmatprep.subr.mxu0 0.0
    %1061 = vmatpush1.msra.mxu0 0.0
    %1062 = vmatprep.subr.mxu0 0.0
    %1063 = vmatpush1.msra.mxu0 0.0
    %1064 = vmatprep.subr.mxu0 0.0
    %1065 = vmatpush1.msra.mxu0 0.0
    %1066 = vmatprep.mubr.f32.mxu0 %v997
    %1067 = vmatmul.mubr.f32.gmra.mrb[0].mxu0 %v973
    %v1068 = vpop.f32.mrb[0].mxu0
    %v1069 = vadd.f32 0.0, %v1068
    %v1070 = vpop.f32.mrb[0].mxu0
    %1071 = vmatprep.mubr.f32.mxu0 %v1000
    %1072 = vmatmul.mubr.f32.gmra.mrb[0].mxu0 %v975
    %v1073 = vpop.f32.mrb[0].mxu0
    %v1074 = vadd.f32 0.0, %v1073
    %v1075 = vpop.f32.mrb[0].mxu0
    %1076 = vdwg.mxu0
    %v1077 = vld [vmem:[#allocation10] sm:$0xff]
    %v1078 = vld [vmem:[#allocation10 + $0x8] sm:$0xff]
    %v1079 = vld [vmem:[#allocation10 + $0x10] sm:$0xff]
    %v1080 = vld [vmem:[#allocation10 + $0x18] sm:$0xff]
    %v1081 = vld [vmem:[#allocation10 + $0x20] sm:$0xff]
    %v1082 = vld [vmem:[#allocation10 + $0x28] sm:$0xff]
    %v1083 = vld [vmem:[#allocation10 + $0x30] sm:$0xff]
    %v1084 = vld [vmem:[#allocation10 + $0x38] sm:$0xff]
    %v1085 = vld [vmem:[#allocation10 + $0x40] sm:$0xff]
    %v1086 = vld [vmem:[#allocation10 + $0x48] sm:$0xff]
    %v1087 = vld [vmem:[#allocation10 + $0x50] sm:$0xff]
    %v1088 = vld [vmem:[#allocation10 + $0x58] sm:$0xff]
    %v1089 = vld [vmem:[#allocation10 + $0x60] sm:$0xff]
    %v1090 = vld [vmem:[#allocation10 + $0x68] sm:$0xff]
    %v1091 = vld [vmem:[#allocation10 + $0x70] sm:$0xff]
    %v1092 = vld [vmem:[#allocation10 + $0x78] sm:$0xff]
    %v1093 = vld [vmem:[#allocation10 + $0x80] sm:$0xff]
    %v1094 = vld [vmem:[#allocation10 + $0x88] sm:$0xff]
    %1095 = vmatprep.subr.mxu0 0.0
    %1096 = vmatpush1.msra.mxu0 %v1077
    %1097 = vmatprep.subr.mxu0 0.0
    %1098 = vmatpush1.msra.mxu0 %v1078
    %1099 = vmatprep.subr.mxu0 0.0
    %1100 = vmatpush1.msra.mxu0 %v1079
    %1101 = vmatprep.subr.mxu0 0.0
    %1102 = vmatpush1.msra.mxu0 %v1080
    %1103 = vmatprep.subr.mxu0 0.0
    %1104 = vmatpush1.msra.mxu0 %v1081
    %1105 = vmatprep.subr.mxu0 0.0
    %1106 = vmatpush1.msra.mxu0 %v1082
    %1107 = vmatprep.subr.mxu0 0.0
    %1108 = vmatpush1.msra.mxu0 %v1083
    %1109 = vmatprep.subr.mxu0 0.0
    %1110 = vmatpush1.msra.mxu0 %v1084
    %1111 = vmatprep.subr.mxu0 0.0
    %1112 = vmatpush1.msra.mxu0 %v1085
    %1113 = vmatprep.subr.mxu0 0.0
    %1114 = vmatpush1.msra.mxu0 %v1086
    %1115 = vmatprep.subr.mxu0 0.0
    %1116 = vmatpush1.msra.mxu0 %v1087
    %1117 = vmatprep.subr.mxu0 0.0
    %1118 = vmatpush1.msra.mxu0 %v1088
    %1119 = vmatprep.subr.mxu0 0.0
    %1120 = vmatpush1.msra.mxu0 %v1089
    %1121 = vmatprep.subr.mxu0 0.0
    %1122 = vmatpush1.msra.mxu0 %v1090
    %1123 = vmatprep.subr.mxu0 0.0
    %1124 = vmatpush1.msra.mxu0 %v1091
    %1125 = vmatprep.subr.mxu0 0.0
    %1126 = vmatpush1.msra.mxu0 %v1092
    %1127 = vmatprep.subr.mxu0 0.0
    %1128 = vmatpush1.msra.mxu0 %v1093
    %1129 = vmatprep.subr.mxu0 0.0
    %1130 = vmatpush1.msra.mxu0 %v1094
    %1131 = vmatprep.subr.mxu0 0.0
    %1132 = vmatpush1.msra.mxu0 0.0
    %1133 = vmatprep.subr.mxu0 0.0
    %1134 = vmatpush1.msra.mxu0 0.0
    %1135 = vmatprep.subr.mxu0 0.0
    %1136 = vmatpush1.msra.mxu0 0.0
    %1137 = vmatprep.subr.mxu0 0.0
    %1138 = vmatpush1.msra.mxu0 0.0
    %1139 = vmatprep.subr.mxu0 0.0
    %1140 = vmatpush1.msra.mxu0 0.0
    %1141 = vmatprep.subr.mxu0 0.0
    %1142 = vmatpush1.msra.mxu0 0.0
    %1143 = vmatprep.subr.mxu0 0.0
    %1144 = vmatpush1.msra.mxu0 0.0
    %1145 = vmatprep.subr.mxu0 0.0
    %1146 = vmatpush1.msra.mxu0 0.0
    %1147 = vmatprep.subr.mxu0 0.0
    %1148 = vmatpush1.msra.mxu0 0.0
    %1149 = vmatprep.subr.mxu0 0.0
    %1150 = vmatpush1.msra.mxu0 0.0
    %1151 = vmatprep.subr.mxu0 0.0
    %1152 = vmatpush1.msra.mxu0 0.0
    %1153 = vmatprep.subr.mxu0 0.0
    %1154 = vmatpush1.msra.mxu0 0.0
    %1155 = vmatprep.subr.mxu0 0.0
    %1156 = vmatpush1.msra.mxu0 0.0
    %1157 = vmatprep.subr.mxu0 0.0
    %1158 = vmatpush1.msra.mxu0 0.0
    %1159 = vmatprep.mubr.f32.mxu0 %v997
    %1160 = vmatmul.mubr.f32.gmra.mrb[0].mxu0 %v973
    %v1161 = vpop.f32.mrb[0].mxu0
    %v1162 = vadd.f32 0.0, %v1161
    %v1163 = vpop.f32.mrb[0].mxu0
    %1164 = vmatprep.mubr.f32.mxu0 %v1000
    %1165 = vmatmul.mubr.f32.gmra.mrb[0].mxu0 %v975
    %v1166 = vpop.f32.mrb[0].mxu0
    %v1167 = vadd.f32 0.0, %v1166
    %v1168 = vpop.f32.mrb[0].mxu0
    %1169 = vdwg.mxu0
    %v1170 = vmax.f32 %v1069, %v1162
    %v1171 = vmax.f32 %v1074, %v1167
    %v1172 = vld [vmem:[%s7] sm:$0xff]
    %v1173 = vld [vmem:[%s7 + $0x8] sm:$0xff]
    %v1174 = vld [vmem:[%s7 + $0x10] sm:$0xff]
    %v1175 = vld [vmem:[%s7 + $0x18] sm:$0xff]
    %v1176 = vld [vmem:[%s7 + $0x20] sm:$0xff]
    %v1177 = vld [vmem:[%s7 + $0x28] sm:$0xff]
    %v1178 = vld [vmem:[%s7 + $0x30] sm:$0xff]
    %v1179 = vld [vmem:[%s7 + $0x38] sm:$0xff]
    %v1180 = vld [vmem:[%s7 + $0x40] sm:$0xff]
    %s1181 = scalar_lea.vmem %s7, 72
    %v1182 = vld [vmem:[%s1181] sm:$0xff]
    %v1183 = vld [vmem:[%s1181 + $0x8] sm:$0xff]
    %v1184 = vld [vmem:[%s1181 + $0x10] sm:$0xff]
    %v1185 = vld [vmem:[%s1181 + $0x18] sm:$0xff]
    %v1186 = vld [vmem:[%s1181 + $0x20] sm:$0xff]
    %v1187 = vld [vmem:[%s1181 + $0x28] sm:$0xff]
    %v1188 = vld [vmem:[%s1181 + $0x30] sm:$0xff]
    %v1189 = vld [vmem:[%s1181 + $0x38] sm:$0xff]
    %v1190 = vld [vmem:[%s1181 + $0x40] sm:$0xff]
    %v1193 = vrot.slane %v1170, 1
    %v1194 = vrot.slane %v1171, 1
    %v1195 = vsel %vm225, %v1193, %v1194
    %vm1196 = vcmask 588800
    %v1197 = vsel %vm1196, %v1195, 0
    %1199 = vmatprep.subr.mxu0 0.0
    %1200 = vmatpush1.msra.mxu0 %v1182
    %1201 = vmatprep.subr.mxu0 0.0
    %1202 = vmatpush1.msra.mxu0 %v1183
    %1203 = vmatprep.subr.mxu0 0.0
    %1204 = vmatpush1.msra.mxu0 %v1184
    %1205 = vmatprep.subr.mxu0 0.0
    %1206 = vmatpush1.msra.mxu0 %v1185
    %1207 = vmatprep.subr.mxu0 0.0
    %1208 = vmatpush1.msra.mxu0 %v1186
    %1209 = vmatprep.subr.mxu0 0.0
    %1210 = vmatpush1.msra.mxu0 %v1187
    %1211 = vmatprep.subr.mxu0 0.0
    %1212 = vmatpush1.msra.mxu0 %v1188
    %1213 = vmatprep.subr.mxu0 0.0
    %1214 = vmatpush1.msra.mxu0 %v1189
    %1215 = vmatprep.subr.mxu0 0.0
    %1216 = vmatpush1.msra.mxu0 %v1190
    %1217 = vmatprep.subr.mxu0 0.0
    %1218 = vmatpush1.msra.mxu0 0.0
    %1219 = vmatprep.subr.mxu0 0.0
    %1220 = vmatpush1.msra.mxu0 0.0
    %1221 = vmatprep.subr.mxu0 0.0
    %1222 = vmatpush1.msra.mxu0 0.0
    %1223 = vmatprep.subr.mxu0 0.0
    %1224 = vmatpush1.msra.mxu0 0.0
    %1225 = vmatprep.subr.mxu0 0.0
    %1226 = vmatpush1.msra.mxu0 0.0
    %1227 = vmatprep.subr.mxu0 0.0
    %1228 = vmatpush1.msra.mxu0 0.0
    %1229 = vmatprep.subr.mxu0 0.0
    %1230 = vmatpush1.msra.mxu0 0.0
    %1231 = vmatprep.subr.mxu0 0.0
    %1232 = vmatpush1.msra.mxu0 0.0
    %1233 = vmatprep.subr.mxu0 0.0
    %1234 = vmatpush1.msra.mxu0 0.0
    %1235 = vmatprep.subr.mxu0 0.0
    %1236 = vmatpush1.msra.mxu0 0.0
    %1237 = vmatprep.subr.mxu0 0.0
    %1238 = vmatpush1.msra.mxu0 0.0
    %1239 = vmatprep.subr.mxu0 0.0
    %1240 = vmatpush1.msra.mxu0 0.0
    %1241 = vmatprep.subr.mxu0 0.0
    %1242 = vmatpush1.msra.mxu0 0.0
    %1243 = vmatprep.subr.mxu0 0.0
    %1244 = vmatpush1.msra.mxu0 0.0
    %1245 = vmatprep.subr.mxu0 0.0
    %1246 = vmatpush1.msra.mxu0 0.0
    %1247 = vmatprep.subr.mxu0 0.0
    %1248 = vmatpush1.msra.mxu0 0.0
    %1249 = vmatprep.subr.mxu0 0.0
    %1250 = vmatpush1.msra.mxu0 0.0
    %1251 = vmatprep.subr.mxu0 0.0
    %1252 = vmatpush1.msra.mxu0 0.0
    %1253 = vmatprep.subr.mxu0 0.0
    %1254 = vmatpush1.msra.mxu0 0.0
    %1255 = vmatprep.subr.mxu0 0.0
    %1256 = vmatpush1.msra.mxu0 0.0
    %1257 = vmatprep.subr.mxu0 0.0
    %1258 = vmatpush1.msra.mxu0 0.0
    %1259 = vmatprep.subr.mxu0 0.0
    %1260 = vmatpush1.msra.mxu0 0.0
    %1261 = vmatprep.subr.mxu0 0.0
    %1262 = vmatpush1.msra.mxu0 0.0
    %1263 = vmatprep.mubr.f32.mxu0 0.0
    %1264 = vmatmul.mubr.f32.gmra.mrb[0].mxu0 %v1197
    %v1265 = vpop.f32.mrb[0].mxu0
    %v1266 = vadd.f32 0.0, %v1265
    %v1267 = vpop.f32.mrb[0].mxu0
    %1268 = vdwg.mxu0
    %v1269 = vsel %vm1196, %v1170, 0
    %1271 = vmatprep.subr.mxu0 0.0
    %1272 = vmatpush1.msra.mxu0 %v1172
    %1273 = vmatprep.subr.mxu0 0.0
    %1274 = vmatpush1.msra.mxu0 %v1173
    %1275 = vmatprep.subr.mxu0 0.0
    %1276 = vmatpush1.msra.mxu0 %v1174
    %1277 = vmatprep.subr.mxu0 0.0
    %1278 = vmatpush1.msra.mxu0 %v1175
    %1279 = vmatprep.subr.mxu0 0.0
    %1280 = vmatpush1.msra.mxu0 %v1176
    %1281 = vmatprep.subr.mxu0 0.0
    %1282 = vmatpush1.msra.mxu0 %v1177
    %1283 = vmatprep.subr.mxu0 0.0
    %1284 = vmatpush1.msra.mxu0 %v1178
    %1285 = vmatprep.subr.mxu0 0.0
    %1286 = vmatpush1.msra.mxu0 %v1179
    %1287 = vmatprep.subr.mxu0 0.0
    %1288 = vmatpush1.msra.mxu0 %v1180
    %1289 = vmatprep.subr.mxu0 0.0
    %1290 = vmatpush1.msra.mxu0 0.0
    %1291 = vmatprep.subr.mxu0 0.0
    %1292 = vmatpush1.msra.mxu0 0.0
    %1293 = vmatprep.subr.mxu0 0.0
    %1294 = vmatpush1.msra.mxu0 0.0
    %1295 = vmatprep.subr.mxu0 0.0
    %1296 = vmatpush1.msra.mxu0 0.0
    %1297 = vmatprep.subr.mxu0 0.0
    %1298 = vmatpush1.msra.mxu0 0.0
    %1299 = vmatprep.subr.mxu0 0.0
    %1300 = vmatpush1.msra.mxu0 0.0
    %1301 = vmatprep.subr.mxu0 0.0
    %1302 = vmatpush1.msra.mxu0 0.0
    %1303 = vmatprep.subr.mxu0 0.0
    %1304 = vmatpush1.msra.mxu0 0.0
    %1305 = vmatprep.subr.mxu0 0.0
    %1306 = vmatpush1.msra.mxu0 0.0
    %1307 = vmatprep.subr.mxu0 0.0
    %1308 = vmatpush1.msra.mxu0 0.0
    %1309 = vmatprep.subr.mxu0 0.0
    %1310 = vmatpush1.msra.mxu0 0.0
    %1311 = vmatprep.subr.mxu0 0.0
    %1312 = vmatpush1.msra.mxu0 0.0
    %1313 = vmatprep.subr.mxu0 0.0
    %1314 = vmatpush1.msra.mxu0 0.0
    %1315 = vmatprep.subr.mxu0 0.0
    %1316 = vmatpush1.msra.mxu0 0.0
    %1317 = vmatprep.subr.mxu0 0.0
    %1318 = vmatpush1.msra.mxu0 0.0
    %1319 = vmatprep.subr.mxu0 0.0
    %1320 = vmatpush1.msra.mxu0 0.0
    %1321 = vmatprep.subr.mxu0 0.0
    %1322 = vmatpush1.msra.mxu0 0.0
    %1323 = vmatprep.subr.mxu0 0.0
    %1324 = vmatpush1.msra.mxu0 0.0
    %1325 = vmatprep.subr.mxu0 0.0
    %1326 = vmatpush1.msra.mxu0 0.0
    %1327 = vmatprep.subr.mxu0 0.0
    %1328 = vmatpush1.msra.mxu0 0.0
    %1329 = vmatprep.subr.mxu0 0.0
    %1330 = vmatpush1.msra.mxu0 0.0
    %1331 = vmatprep.subr.mxu0 0.0
    %1332 = vmatpush1.msra.mxu0 0.0
    %1333 = vmatprep.subr.mxu0 0.0
    %1334 = vmatpush1.msra.mxu0 0.0
    %1335 = vmatprep.mubr.f32.mxu0 0.0
    %1336 = vmatmul.mubr.f32.gmra.mrb[0].mxu0 %v1269
    %v1337 = vpop.f32.mrb[0].mxu0
    %v1338 = vadd.f32 %v1266, %v1337
    %v1339 = vpop.f32.mrb[0].mxu0
    %1340 = vdwg.mxu0
    %s1341 = scalar_lea.vmem %s7, 144
    %v1342 = vld [vmem:[%s1341] sm:$0xff]
    %v1343 = vld [vmem:[%s1341 + $0x8] sm:$0xff]
    %v1344 = vld [vmem:[%s1341 + $0x10] sm:$0xff]
    %v1345 = vld [vmem:[%s1341 + $0x18] sm:$0xff]
    %v1346 = vld [vmem:[%s1341 + $0x20] sm:$0xff]
    %v1347 = vld [vmem:[%s1341 + $0x28] sm:$0xff]
    %v1348 = vld [vmem:[%s1341 + $0x30] sm:$0xff]
    %v1349 = vld [vmem:[%s1341 + $0x38] sm:$0xff]
    %v1350 = vld [vmem:[%s1341 + $0x40] sm:$0xff]
    %v1351 = vrot.slane %v1170, 2
    %v1352 = vrot.slane %v1171, 2
    %v1353 = vsel %vm434, %v1351, %v1352
    %v1354 = vsel %vm1196, %v1353, 0
    %1356 = vmatprep.subr.mxu0 0.0
    %1357 = vmatpush1.msra.mxu0 %v1342
    %1358 = vmatprep.subr.mxu0 0.0
    %1359 = vmatpush1.msra.mxu0 %v1343
    %1360 = vmatprep.subr.mxu0 0.0
    %1361 = vmatpush1.msra.mxu0 %v1344
    %1362 = vmatprep.subr.mxu0 0.0
    %1363 = vmatpush1.msra.mxu0 %v1345
    %1364 = vmatprep.subr.mxu0 0.0
    %1365 = vmatpush1.msra.mxu0 %v1346
    %1366 = vmatprep.subr.mxu0 0.0
    %1367 = vmatpush1.msra.mxu0 %v1347
    %1368 = vmatprep.subr.mxu0 0.0
    %1369 = vmatpush1.msra.mxu0 %v1348
    %1370 = vmatprep.subr.mxu0 0.0
    %1371 = vmatpush1.msra.mxu0 %v1349
    %1372 = vmatprep.subr.mxu0 0.0
    %1373 = vmatpush1.msra.mxu0 %v1350
    %1374 = vmatprep.subr.mxu0 0.0
    %1375 = vmatpush1.msra.mxu0 0.0
    %1376 = vmatprep.subr.mxu0 0.0
    %1377 = vmatpush1.msra.mxu0 0.0
    %1378 = vmatprep.subr.mxu0 0.0
    %1379 = vmatpush1.msra.mxu0 0.0
    %1380 = vmatprep.subr.mxu0 0.0
    %1381 = vmatpush1.msra.mxu0 0.0
    %1382 = vmatprep.subr.mxu0 0.0
    %1383 = vmatpush1.msra.mxu0 0.0
    %1384 = vmatprep.subr.mxu0 0.0
    %1385 = vmatpush1.msra.mxu0 0.0
    %1386 = vmatprep.subr.mxu0 0.0
    %1387 = vmatpush1.msra.mxu0 0.0
    %1388 = vmatprep.subr.mxu0 0.0
    %1389 = vmatpush1.msra.mxu0 0.0
    %1390 = vmatprep.subr.mxu0 0.0
    %1391 = vmatpush1.msra.mxu0 0.0
    %1392 = vmatprep.subr.mxu0 0.0
    %1393 = vmatpush1.msra.mxu0 0.0
    %1394 = vmatprep.subr.mxu0 0.0
    %1395 = vmatpush1.msra.mxu0 0.0
    %1396 = vmatprep.subr.mxu0 0.0
    %1397 = vmatpush1.msra.mxu0 0.0
    %1398 = vmatprep.subr.mxu0 0.0
    %1399 = vmatpush1.msra.mxu0 0.0
    %1400 = vmatprep.subr.mxu0 0.0
    %1401 = vmatpush1.msra.mxu0 0.0
    %1402 = vmatprep.subr.mxu0 0.0
    %1403 = vmatpush1.msra.mxu0 0.0
    %1404 = vmatprep.subr.mxu0 0.0
    %1405 = vmatpush1.msra.mxu0 0.0
    %1406 = vmatprep.subr.mxu0 0.0
    %1407 = vmatpush1.msra.mxu0 0.0
    %1408 = vmatprep.subr.mxu0 0.0
    %1409 = vmatpush1.msra.mxu0 0.0
    %1410 = vmatprep.subr.mxu0 0.0
    %1411 = vmatpush1.msra.mxu0 0.0
    %1412 = vmatprep.subr.mxu0 0.0
    %1413 = vmatpush1.msra.mxu0 0.0
    %1414 = vmatprep.subr.mxu0 0.0
    %1415 = vmatpush1.msra.mxu0 0.0
    %1416 = vmatprep.subr.mxu0 0.0
    %1417 = vmatpush1.msra.mxu0 0.0
    %1418 = vmatprep.subr.mxu0 0.0
    %1419 = vmatpush1.msra.mxu0 0.0
    %1420 = vmatprep.mubr.f32.mxu0 0.0
    %1421 = vmatmul.mubr.f32.gmra.mrb[0].mxu0 %v1354
    %v1422 = vpop.f32.mrb[0].mxu0
    %v1423 = vadd.f32 0.0, %v1422
    %v1424 = vpop.f32.mrb[0].mxu0
    %1425 = vdwg.mxu0
    %v1426 = vadd.f32 %v1338, %v1423
    %s1427 = scalar_lea.vmem %s7, 216
    %v1428 = vld [vmem:[%s1427] sm:$0xff]
    %v1429 = vld [vmem:[%s1427 + $0x8] sm:$0xff]
    %v1430 = vld [vmem:[%s1427 + $0x10] sm:$0xff]
    %v1431 = vld [vmem:[%s1427 + $0x18] sm:$0xff]
    %v1432 = vld [vmem:[%s1427 + $0x20] sm:$0xff]
    %v1433 = vld [vmem:[%s1427 + $0x28] sm:$0xff]
    %v1434 = vld [vmem:[%s1427 + $0x30] sm:$0xff]
    %v1435 = vld [vmem:[%s1427 + $0x38] sm:$0xff]
    %v1436 = vld [vmem:[%s1427 + $0x40] sm:$0xff]
    %v1437 = vrot.slane %v1170, 3
    %v1438 = vrot.slane %v1171, 3
    %v1439 = vsel %vm552, %v1437, %v1438
    %v1440 = vsel %vm1196, %v1439, 0
    %1442 = vmatprep.subr.mxu0 0.0
    %1443 = vmatpush1.msra.mxu0 %v1428
    %1444 = vmatprep.subr.mxu0 0.0
    %1445 = vmatpush1.msra.mxu0 %v1429
    %1446 = vmatprep.subr.mxu0 0.0
    %1447 = vmatpush1.msra.mxu0 %v1430
    %1448 = vmatprep.subr.mxu0 0.0
    %1449 = vmatpush1.msra.mxu0 %v1431
    %1450 = vmatprep.subr.mxu0 0.0
    %1451 = vmatpush1.msra.mxu0 %v1432
    %1452 = vmatprep.subr.mxu0 0.0
    %1453 = vmatpush1.msra.mxu0 %v1433
    %1454 = vmatprep.subr.mxu0 0.0
    %1455 = vmatpush1.msra.mxu0 %v1434
    %1456 = vmatprep.subr.mxu0 0.0
    %1457 = vmatpush1.msra.mxu0 %v1435
    %1458 = vmatprep.subr.mxu0 0.0
    %1459 = vmatpush1.msra.mxu0 %v1436
    %1460 = vmatprep.subr.mxu0 0.0
    %1461 = vmatpush1.msra.mxu0 0.0
    %1462 = vmatprep.subr.mxu0 0.0
    %1463 = vmatpush1.msra.mxu0 0.0
    %1464 = vmatprep.subr.mxu0 0.0
    %1465 = vmatpush1.msra.mxu0 0.0
    %1466 = vmatprep.subr.mxu0 0.0
    %1467 = vmatpush1.msra.mxu0 0.0
    %1468 = vmatprep.subr.mxu0 0.0
    %1469 = vmatpush1.msra.mxu0 0.0
    %1470 = vmatprep.subr.mxu0 0.0
    %1471 = vmatpush1.msra.mxu0 0.0
    %1472 = vmatprep.subr.mxu0 0.0
    %1473 = vmatpush1.msra.mxu0 0.0
    %1474 = vmatprep.subr.mxu0 0.0
    %1475 = vmatpush1.msra.mxu0 0.0
    %1476 = vmatprep.subr.mxu0 0.0
    %1477 = vmatpush1.msra.mxu0 0.0
    %1478 = vmatprep.subr.mxu0 0.0
    %1479 = vmatpush1.msra.mxu0 0.0
    %1480 = vmatprep.subr.mxu0 0.0
    %1481 = vmatpush1.msra.mxu0 0.0
    %1482 = vmatprep.subr.mxu0 0.0
    %1483 = vmatpush1.msra.mxu0 0.0
    %1484 = vmatprep.subr.mxu0 0.0
    %1485 = vmatpush1.msra.mxu0 0.0
    %1486 = vmatprep.subr.mxu0 0.0
    %1487 = vmatpush1.msra.mxu0 0.0
    %1488 = vmatprep.subr.mxu0 0.0
    %1489 = vmatpush1.msra.mxu0 0.0
    %1490 = vmatprep.subr.mxu0 0.0
    %1491 = vmatpush1.msra.mxu0 0.0
    %1492 = vmatprep.subr.mxu0 0.0
    %1493 = vmatpush1.msra.mxu0 0.0
    %1494 = vmatprep.subr.mxu0 0.0
    %1495 = vmatpush1.msra.mxu0 0.0
    %1496 = vmatprep.subr.mxu0 0.0
    %1497 = vmatpush1.msra.mxu0 0.0
    %1498 = vmatprep.subr.mxu0 0.0
    %1499 = vmatpush1.msra.mxu0 0.0
    %1500 = vmatprep.subr.mxu0 0.0
    %1501 = vmatpush1.msra.mxu0 0.0
    %1502 = vmatprep.subr.mxu0 0.0
    %1503 = vmatpush1.msra.mxu0 0.0
    %1504 = vmatprep.subr.mxu0 0.0
    %1505 = vmatpush1.msra.mxu0 0.0
    %1506 = vmatprep.mubr.f32.mxu0 0.0
    %1507 = vmatmul.mubr.f32.gmra.mrb[0].mxu0 %v1440
    %v1508 = vpop.f32.mrb[0].mxu0
    %v1509 = vadd.f32 0.0, %v1508
    %v1510 = vpop.f32.mrb[0].mxu0
    %1511 = vdwg.mxu0
    %v1512 = vadd.f32 %v1426, %v1509
    %s1513 = scalar_lea.vmem %s7, 288
    %v1514 = vld [vmem:[%s1513] sm:$0xff]
    %v1515 = vld [vmem:[%s1513 + $0x8] sm:$0xff]
    %v1516 = vld [vmem:[%s1513 + $0x10] sm:$0xff]
    %v1517 = vld [vmem:[%s1513 + $0x18] sm:$0xff]
    %v1518 = vld [vmem:[%s1513 + $0x20] sm:$0xff]
    %v1519 = vld [vmem:[%s1513 + $0x28] sm:$0xff]
    %v1520 = vld [vmem:[%s1513 + $0x30] sm:$0xff]
    %v1521 = vld [vmem:[%s1513 + $0x38] sm:$0xff]
    %v1522 = vld [vmem:[%s1513 + $0x40] sm:$0xff]
    %v1523 = vrot.slane %v1170, 4
    %v1524 = vrot.slane %v1171, 4
    %v1525 = vsel %vm240, %v1523, %v1524
    %v1526 = vsel %vm1196, %v1525, 0
    %1528 = vmatprep.subr.mxu0 0.0
    %1529 = vmatpush1.msra.mxu0 %v1514
    %1530 = vmatprep.subr.mxu0 0.0
    %1531 = vmatpush1.msra.mxu0 %v1515
    %1532 = vmatprep.subr.mxu0 0.0
    %1533 = vmatpush1.msra.mxu0 %v1516
    %1534 = vmatprep.subr.mxu0 0.0
    %1535 = vmatpush1.msra.mxu0 %v1517
    %1536 = vmatprep.subr.mxu0 0.0
    %1537 = vmatpush1.msra.mxu0 %v1518
    %1538 = vmatprep.subr.mxu0 0.0
    %1539 = vmatpush1.msra.mxu0 %v1519
    %1540 = vmatprep.subr.mxu0 0.0
    %1541 = vmatpush1.msra.mxu0 %v1520
    %1542 = vmatprep.subr.mxu0 0.0
    %1543 = vmatpush1.msra.mxu0 %v1521
    %1544 = vmatprep.subr.mxu0 0.0
    %1545 = vmatpush1.msra.mxu0 %v1522
    %1546 = vmatprep.subr.mxu0 0.0
    %1547 = vmatpush1.msra.mxu0 0.0
    %1548 = vmatprep.subr.mxu0 0.0
    %1549 = vmatpush1.msra.mxu0 0.0
    %1550 = vmatprep.subr.mxu0 0.0
    %1551 = vmatpush1.msra.mxu0 0.0
    %1552 = vmatprep.subr.mxu0 0.0
    %1553 = vmatpush1.msra.mxu0 0.0
    %1554 = vmatprep.subr.mxu0 0.0
    %1555 = vmatpush1.msra.mxu0 0.0
    %1556 = vmatprep.subr.mxu0 0.0
    %1557 = vmatpush1.msra.mxu0 0.0
    %1558 = vmatprep.subr.mxu0 0.0
    %1559 = vmatpush1.msra.mxu0 0.0
    %1560 = vmatprep.subr.mxu0 0.0
    %1561 = vmatpush1.msra.mxu0 0.0
    %1562 = vmatprep.subr.mxu0 0.0
    %1563 = vmatpush1.msra.mxu0 0.0
    %1564 = vmatprep.subr.mxu0 0.0
    %1565 = vmatpush1.msra.mxu0 0.0
    %1566 = vmatprep.subr.mxu0 0.0
    %1567 = vmatpush1.msra.mxu0 0.0
    %1568 = vmatprep.subr.mxu0 0.0
    %1569 = vmatpush1.msra.mxu0 0.0
    %1570 = vmatprep.subr.mxu0 0.0
    %1571 = vmatpush1.msra.mxu0 0.0
    %1572 = vmatprep.subr.mxu0 0.0
    %1573 = vmatpush1.msra.mxu0 0.0
    %1574 = vmatprep.subr.mxu0 0.0
    %1575 = vmatpush1.msra.mxu0 0.0
    %1576 = vmatprep.subr.mxu0 0.0
    %1577 = vmatpush1.msra.mxu0 0.0
    %1578 = vmatprep.subr.mxu0 0.0
    %1579 = vmatpush1.msra.mxu0 0.0
    %1580 = vmatprep.subr.mxu0 0.0
    %1581 = vmatpush1.msra.mxu0 0.0
    %1582 = vmatprep.subr.mxu0 0.0
    %1583 = vmatpush1.msra.mxu0 0.0
    %1584 = vmatprep.subr.mxu0 0.0
    %1585 = vmatpush1.msra.mxu0 0.0
    %1586 = vmatprep.subr.mxu0 0.0
    %1587 = vmatpush1.msra.mxu0 0.0
    %1588 = vmatprep.subr.mxu0 0.0
    %1589 = vmatpush1.msra.mxu0 0.0
    %1590 = vmatprep.subr.mxu0 0.0
    %1591 = vmatpush1.msra.mxu0 0.0
    %1592 = vmatprep.mubr.f32.mxu0 0.0
    %1593 = vmatmul.mubr.f32.gmra.mrb[0].mxu0 %v1526
    %v1594 = vpop.f32.mrb[0].mxu0
    %v1595 = vadd.f32 0.0, %v1594
    %v1596 = vpop.f32.mrb[0].mxu0
    %1597 = vdwg.mxu0
    %v1598 = vadd.f32 %v1512, %v1595
    %v1599 = vld [vmem:[#allocation11] sm:$0x1]
    %v1601 = vlaneseq
    %v1602 = vshrl.u32 %v1601, 7
    %v1603 = vsub.s32 0, %v1602
    %v1604 = vrot.slane %v1599, %v1603
    %v1606 = vadd.f32 %v1598, %v1604
    %v1607 = vmax.f32 %v1606, 0.0
    %v1608 = vld [vmem:[%s9] sm:$0xf]
    %vm1609 = vcmask 64512
    %v1611 = vsel %vm1609, %v1608, 0
    %1613 = vmatprep.subr.mxu0 0.0
    %1614 = vmatpush1.msra.mxu0 %v1607
    %1615 = vmatprep.subr.mxu0 0.0
    %1616 = vmatpush1.msra.mxu0 0.0
    %1617 = vmatprep.subr.mxu0 0.0
    %1618 = vmatpush1.msra.mxu0 0.0
    %1619 = vmatprep.subr.mxu0 0.0
    %1620 = vmatpush1.msra.mxu0 0.0
    %1621 = vmatprep.subr.mxu0 0.0
    %1622 = vmatpush1.msra.mxu0 0.0
    %1623 = vmatprep.subr.mxu0 0.0
    %1624 = vmatpush1.msra.mxu0 0.0
    %1625 = vmatprep.subr.mxu0 0.0
    %1626 = vmatpush1.msra.mxu0 0.0
    %1627 = vmatprep.subr.mxu0 0.0
    %1628 = vmatpush1.msra.mxu0 0.0
    %1629 = vmatprep.subr.mxu0 0.0
    %1630 = vmatpush1.msra.mxu0 0.0
    %1631 = vmatprep.subr.mxu0 0.0
    %1632 = vmatpush1.msra.mxu0 0.0
    %1633 = vmatprep.subr.mxu0 0.0
    %1634 = vmatpush1.msra.mxu0 0.0
    %1635 = vmatprep.subr.mxu0 0.0
    %1636 = vmatpush1.msra.mxu0 0.0
    %1637 = vmatprep.subr.mxu0 0.0
    %1638 = vmatpush1.msra.mxu0 0.0
    %1639 = vmatprep.subr.mxu0 0.0
    %1640 = vmatpush1.msra.mxu0 0.0
    %1641 = vmatprep.subr.mxu0 0.0
    %1642 = vmatpush1.msra.mxu0 0.0
    %1643 = vmatprep.subr.mxu0 0.0
    %1644 = vmatpush1.msra.mxu0 0.0
    %1645 = vmatprep.subr.mxu0 0.0
    %1646 = vmatpush1.msra.mxu0 0.0
    %1647 = vmatprep.subr.mxu0 0.0
    %1648 = vmatpush1.msra.mxu0 0.0
    %1649 = vmatprep.subr.mxu0 0.0
    %1650 = vmatpush1.msra.mxu0 0.0
    %1651 = vmatprep.subr.mxu0 0.0
    %1652 = vmatpush1.msra.mxu0 0.0
    %1653 = vmatprep.subr.mxu0 0.0
    %1654 = vmatpush1.msra.mxu0 0.0
    %1655 = vmatprep.subr.mxu0 0.0
    %1656 = vmatpush1.msra.mxu0 0.0
    %1657 = vmatprep.subr.mxu0 0.0
    %1658 = vmatpush1.msra.mxu0 0.0
    %1659 = vmatprep.subr.mxu0 0.0
    %1660 = vmatpush1.msra.mxu0 0.0
    %1661 = vmatprep.subr.mxu0 0.0
    %1662 = vmatpush1.msra.mxu0 0.0
    %1663 = vmatprep.subr.mxu0 0.0
    %1664 = vmatpush1.msra.mxu0 0.0
    %1665 = vmatprep.subr.mxu0 0.0
    %1666 = vmatpush1.msra.mxu0 0.0
    %1667 = vmatprep.subr.mxu0 0.0
    %1668 = vmatpush1.msra.mxu0 0.0
    %1669 = vmatprep.subr.mxu0 0.0
    %1670 = vmatpush1.msra.mxu0 0.0
    %1671 = vmatprep.subr.mxu0 0.0
    %1672 = vmatpush1.msra.mxu0 0.0
    %1673 = vmatprep.subr.mxu0 0.0
    %1674 = vmatpush1.msra.mxu0 0.0
    %1675 = vmatprep.subr.mxu0 0.0
    %1676 = vmatpush1.msra.mxu0 0.0
    %1677 = vmatprep.mubr.f32.mxu0 0.0
    %1678 = vmatmul.mubr.f32.gmra.mrb[0].mxu0 %v1611
    %v1679 = vpop.f32.mrb[0].mxu0
    %v1680 = vadd.f32 0.0, %v1679
    %v1681 = vpop.f32.mrb[0].mxu0
    %1682 = vdwg.mxu0
    %v1683 = vld [vmem:[#allocation13] sm:$0xf]
    %v1685 = vsel %vm1609, %v1683, 0
    %1687 = vmatprep.subr.mxu0 0.0
    %1688 = vmatpush1.msra.mxu0 %v1607
    %1689 = vmatprep.subr.mxu0 0.0
    %1690 = vmatpush1.msra.mxu0 0.0
    %1691 = vmatprep.subr.mxu0 0.0
    %1692 = vmatpush1.msra.mxu0 0.0
    %1693 = vmatprep.subr.mxu0 0.0
    %1694 = vmatpush1.msra.mxu0 0.0
    %1695 = vmatprep.subr.mxu0 0.0
    %1696 = vmatpush1.msra.mxu0 0.0
    %1697 = vmatprep.subr.mxu0 0.0
    %1698 = vmatpush1.msra.mxu0 0.0
    %1699 = vmatprep.subr.mxu0 0.0
    %1700 = vmatpush1.msra.mxu0 0.0
    %1701 = vmatprep.subr.mxu0 0.0
    %1702 = vmatpush1.msra.mxu0 0.0
    %1703 = vmatprep.subr.mxu0 0.0
    %1704 = vmatpush1.msra.mxu0 0.0
    %1705 = vmatprep.subr.mxu0 0.0
    %1706 = vmatpush1.msra.mxu0 0.0
    %1707 = vmatprep.subr.mxu0 0.0
    %1708 = vmatpush1.msra.mxu0 0.0
    %1709 = vmatprep.subr.mxu0 0.0
    %1710 = vmatpush1.msra.mxu0 0.0
    %1711 = vmatprep.subr.mxu0 0.0
    %1712 = vmatpush1.msra.mxu0 0.0
    %1713 = vmatprep.subr.mxu0 0.0
    %1714 = vmatpush1.msra.mxu0 0.0
    %1715 = vmatprep.subr.mxu0 0.0
    %1716 = vmatpush1.msra.mxu0 0.0
    %1717 = vmatprep.subr.mxu0 0.0
    %1718 = vmatpush1.msra.mxu0 0.0
    %1719 = vmatprep.subr.mxu0 0.0
    %1720 = vmatpush1.msra.mxu0 0.0
    %1721 = vmatprep.subr.mxu0 0.0
    %1722 = vmatpush1.msra.mxu0 0.0
    %1723 = vmatprep.subr.mxu0 0.0
    %1724 = vmatpush1.msra.mxu0 0.0
    %1725 = vmatprep.subr.mxu0 0.0
    %1726 = vmatpush1.msra.mxu0 0.0
    %1727 = vmatprep.subr.mxu0 0.0
    %1728 = vmatpush1.msra.mxu0 0.0
    %1729 = vmatprep.subr.mxu0 0.0
    %1730 = vmatpush1.msra.mxu0 0.0
    %1731 = vmatprep.subr.mxu0 0.0
    %1732 = vmatpush1.msra.mxu0 0.0
    %1733 = vmatprep.subr.mxu0 0.0
    %1734 = vmatpush1.msra.mxu0 0.0
    %1735 = vmatprep.subr.mxu0 0.0
    %1736 = vmatpush1.msra.mxu0 0.0
    %1737 = vmatprep.subr.mxu0 0.0
    %1738 = vmatpush1.msra.mxu0 0.0
    %1739 = vmatprep.subr.mxu0 0.0
    %1740 = vmatpush1.msra.mxu0 0.0
    %1741 = vmatprep.subr.mxu0 0.0
    %1742 = vmatpush1.msra.mxu0 0.0
    %1743 = vmatprep.subr.mxu0 0.0
    %1744 = vmatpush1.msra.mxu0 0.0
    %1745 = vmatprep.subr.mxu0 0.0
    %1746 = vmatpush1.msra.mxu0 0.0
    %1747 = vmatprep.subr.mxu0 0.0
    %1748 = vmatpush1.msra.mxu0 0.0
    %1749 = vmatprep.subr.mxu0 0.0
    %1750 = vmatpush1.msra.mxu0 0.0
    %1751 = vmatprep.mubr.f32.mxu0 0.0
    %1752 = vmatmul.mubr.f32.gmra.mrb[0].mxu0 %v1685
    %v1753 = vpop.f32.mrb[0].mxu0
    %v1754 = vadd.f32 0.0, %v1753
    %v1755 = vpop.f32.mrb[0].mxu0
    %1756 = vdwg.mxu0
    %v1757 = vmax.f32 %v1680, %v1754
    %v1758 = vld [vmem:[%s11] sm:$0xff]
    %v1759 = vld [vmem:[%s11 + $0x8] sm:$0xff]
    %v1760 = vld [vmem:[%s11 + $0x10] sm:$0xff]
    %v1761 = vld [vmem:[%s11 + $0x18] sm:$0xff]
    %v1762 = vld [vmem:[%s11 + $0x20] sm:$0xff]
    %v1763 = vld [vmem:[%s11 + $0x28] sm:$0xff]
    %v1764 = vld [vmem:[%s11 + $0x30] sm:$0xff]
    %v1765 = vld [vmem:[%s11 + $0x38] sm:$0xff]
    %v1766 = vld [vmem:[%s11 + $0x40] sm:$0xff]
    %v1767 = vld [vmem:[%s11 + $0x48] sm:$0xff]
    %v1768 = vld [vmem:[%s11 + $0x50] sm:$0xff]
    %v1769 = vld [vmem:[%s11 + $0x58] sm:$0xff]
    %vm1770 = vcmask 785408
    %v1772 = vsel %vm1770, %v1757, 0
    %1774 = vmatprep.subr.mxu0 0.0
    %1775 = vmatpush1.msra.mxu0 %v1758
    %1776 = vmatprep.subr.mxu0 0.0
    %1777 = vmatpush1.msra.mxu0 %v1759
    %1778 = vmatprep.subr.mxu0 0.0
    %1779 = vmatpush1.msra.mxu0 %v1760
    %1780 = vmatprep.subr.mxu0 0.0
    %1781 = vmatpush1.msra.mxu0 %v1761
    %1782 = vmatprep.subr.mxu0 0.0
    %1783 = vmatpush1.msra.mxu0 %v1762
    %1784 = vmatprep.subr.mxu0 0.0
    %1785 = vmatpush1.msra.mxu0 %v1763
    %1786 = vmatprep.subr.mxu0 0.0
    %1787 = vmatpush1.msra.mxu0 %v1764
    %1788 = vmatprep.subr.mxu0 0.0
    %1789 = vmatpush1.msra.mxu0 %v1765
    %1790 = vmatprep.subr.mxu0 0.0
    %1791 = vmatpush1.msra.mxu0 %v1766
    %1792 = vmatprep.subr.mxu0 0.0
    %1793 = vmatpush1.msra.mxu0 %v1767
    %1794 = vmatprep.subr.mxu0 0.0
    %1795 = vmatpush1.msra.mxu0 %v1768
    %1796 = vmatprep.subr.mxu0 0.0
    %1797 = vmatpush1.msra.mxu0 %v1769
    %1798 = vmatprep.subr.mxu0 0.0
    %1799 = vmatpush1.msra.mxu0 0.0
    %1800 = vmatprep.subr.mxu0 0.0
    %1801 = vmatpush1.msra.mxu0 0.0
    %1802 = vmatprep.subr.mxu0 0.0
    %1803 = vmatpush1.msra.mxu0 0.0
    %1804 = vmatprep.subr.mxu0 0.0
    %1805 = vmatpush1.msra.mxu0 0.0
    %1806 = vmatprep.subr.mxu0 0.0
    %1807 = vmatpush1.msra.mxu0 0.0
    %1808 = vmatprep.subr.mxu0 0.0
    %1809 = vmatpush1.msra.mxu0 0.0
    %1810 = vmatprep.subr.mxu0 0.0
    %1811 = vmatpush1.msra.mxu0 0.0
    %1812 = vmatprep.subr.mxu0 0.0
    %1813 = vmatpush1.msra.mxu0 0.0
    %1814 = vmatprep.subr.mxu0 0.0
    %1815 = vmatpush1.msra.mxu0 0.0
    %1816 = vmatprep.subr.mxu0 0.0
    %1817 = vmatpush1.msra.mxu0 0.0
    %1818 = vmatprep.subr.mxu0 0.0
    %1819 = vmatpush1.msra.mxu0 0.0
    %1820 = vmatprep.subr.mxu0 0.0
    %1821 = vmatpush1.msra.mxu0 0.0
    %1822 = vmatprep.subr.mxu0 0.0
    %1823 = vmatpush1.msra.mxu0 0.0
    %1824 = vmatprep.subr.mxu0 0.0
    %1825 = vmatpush1.msra.mxu0 0.0
    %1826 = vmatprep.subr.mxu0 0.0
    %1827 = vmatpush1.msra.mxu0 0.0
    %1828 = vmatprep.subr.mxu0 0.0
    %1829 = vmatpush1.msra.mxu0 0.0
    %1830 = vmatprep.subr.mxu0 0.0
    %1831 = vmatpush1.msra.mxu0 0.0
    %1832 = vmatprep.subr.mxu0 0.0
    %1833 = vmatpush1.msra.mxu0 0.0
    %1834 = vmatprep.subr.mxu0 0.0
    %1835 = vmatpush1.msra.mxu0 0.0
    %1836 = vmatprep.subr.mxu0 0.0
    %1837 = vmatpush1.msra.mxu0 0.0
    %1838 = vmatprep.mubr.f32.mxu0 0.0
    %1839 = vmatmul.mubr.f32.gmra.mrb[0].mxu0 %v1772
    %v1840 = vpop.f32.mrb[0].mxu0
    %v1841 = vadd.f32 0.0, %v1840
    %v1842 = vpop.f32.mrb[0].mxu0
    %1843 = vdwg.mxu0
    %v1844 = vld [vmem:[%s12] sm:$0xff]
    %v1845 = vld [vmem:[%s12 + $0x8] sm:$0xff]
    %v1846 = vld [vmem:[%s12 + $0x10] sm:$0xff]
    %v1847 = vld [vmem:[%s12 + $0x18] sm:$0xff]
    %v1848 = vld [vmem:[%s12 + $0x20] sm:$0xff]
    %v1849 = vld [vmem:[%s12 + $0x28] sm:$0xff]
    %v1850 = vld [vmem:[%s12 + $0x30] sm:$0xff]
    %v1851 = vld [vmem:[%s12 + $0x38] sm:$0xff]
    %v1852 = vld [vmem:[%s12 + $0x40] sm:$0xff]
    %v1853 = vld [vmem:[%s12 + $0x48] sm:$0xff]
    %v1854 = vld [vmem:[%s12 + $0x50] sm:$0xff]
    %v1855 = vld [vmem:[%s12 + $0x58] sm:$0xff]
    %1856 = vmatprep.subr.mxu0 0.0
    %1857 = vmatpush1.msra.mxu0 %v1844
    %1858 = vmatprep.subr.mxu0 0.0
    %1859 = vmatpush1.msra.mxu0 %v1845
    %1860 = vmatprep.subr.mxu0 0.0
    %1861 = vmatpush1.msra.mxu0 %v1846
    %1862 = vmatprep.subr.mxu0 0.0
    %1863 = vmatpush1.msra.mxu0 %v1847
    %1864 = vmatprep.subr.mxu0 0.0
    %1865 = vmatpush1.msra.mxu0 %v1848
    %1866 = vmatprep.subr.mxu0 0.0
    %1867 = vmatpush1.msra.mxu0 %v1849
    %1868 = vmatprep.subr.mxu0 0.0
    %1869 = vmatpush1.msra.mxu0 %v1850
    %1870 = vmatprep.subr.mxu0 0.0
    %1871 = vmatpush1.msra.mxu0 %v1851
    %1872 = vmatprep.subr.mxu0 0.0
    %1873 = vmatpush1.msra.mxu0 %v1852
    %1874 = vmatprep.subr.mxu0 0.0
    %1875 = vmatpush1.msra.mxu0 %v1853
    %1876 = vmatprep.subr.mxu0 0.0
    %1877 = vmatpush1.msra.mxu0 %v1854
    %1878 = vmatprep.subr.mxu0 0.0
    %1879 = vmatpush1.msra.mxu0 %v1855
    %1880 = vmatprep.subr.mxu0 0.0
    %1881 = vmatpush1.msra.mxu0 0.0
    %1882 = vmatprep.subr.mxu0 0.0
    %1883 = vmatpush1.msra.mxu0 0.0
    %1884 = vmatprep.subr.mxu0 0.0
    %1885 = vmatpush1.msra.mxu0 0.0
    %1886 = vmatprep.subr.mxu0 0.0
    %1887 = vmatpush1.msra.mxu0 0.0
    %1888 = vmatprep.subr.mxu0 0.0
    %1889 = vmatpush1.msra.mxu0 0.0
    %1890 = vmatprep.subr.mxu0 0.0
    %1891 = vmatpush1.msra.mxu0 0.0
    %1892 = vmatprep.subr.mxu0 0.0
    %1893 = vmatpush1.msra.mxu0 0.0
    %1894 = vmatprep.subr.mxu0 0.0
    %1895 = vmatpush1.msra.mxu0 0.0
    %1896 = vmatprep.subr.mxu0 0.0
    %1897 = vmatpush1.msra.mxu0 0.0
    %1898 = vmatprep.subr.mxu0 0.0
    %1899 = vmatpush1.msra.mxu0 0.0
    %1900 = vmatprep.subr.mxu0 0.0
    %1901 = vmatpush1.msra.mxu0 0.0
    %1902 = vmatprep.subr.mxu0 0.0
    %1903 = vmatpush1.msra.mxu0 0.0
    %1904 = vmatprep.subr.mxu0 0.0
    %1905 = vmatpush1.msra.mxu0 0.0
    %1906 = vmatprep.subr.mxu0 0.0
    %1907 = vmatpush1.msra.mxu0 0.0
    %1908 = vmatprep.subr.mxu0 0.0
    %1909 = vmatpush1.msra.mxu0 0.0
    %1910 = vmatprep.subr.mxu0 0.0
    %1911 = vmatpush1.msra.mxu0 0.0
    %1912 = vmatprep.subr.mxu0 0.0
    %1913 = vmatpush1.msra.mxu0 0.0
    %1914 = vmatprep.subr.mxu0 0.0
    %1915 = vmatpush1.msra.mxu0 0.0
    %1916 = vmatprep.subr.mxu0 0.0
    %1917 = vmatpush1.msra.mxu0 0.0
    %1918 = vmatprep.subr.mxu0 0.0
    %1919 = vmatpush1.msra.mxu0 0.0
    %1920 = vmatprep.mubr.f32.mxu0 0.0
    %1921 = vmatmul.mubr.f32.gmra.mrb[0].mxu0 %v1772
    %v1922 = vpop.f32.mrb[0].mxu0
    %v1923 = vadd.f32 0.0, %v1922
    %v1924 = vpop.f32.mrb[0].mxu0
    %1925 = vdwg.mxu0
    %v1926 = vmax.f32 %v1841, %v1923
    %v1927 = vld [vmem:[#allocation16] sm:$0x1]
    %v1928 = vld [vmem:[#allocation14] sm:$0xff]
    %v1929 = vld [vmem:[#allocation14 + $0x8] sm:$0xff]
    %v1930 = vld [vmem:[#allocation14 + $0x10] sm:$0xff]
    %v1931 = vld [vmem:[#allocation14 + $0x18] sm:$0xff]
    %v1932 = vld [vmem:[#allocation14 + $0x20] sm:$0xff]
    %v1933 = vld [vmem:[#allocation14 + $0x28] sm:$0xff]
    %vm1934 = vcmask 392192
    %v1936 = vsel %vm1934, %v1926, 0
    %1938 = vmatprep.subr.mxu0 0.0
    %1939 = vmatpush1.msra.mxu0 %v1928
    %1940 = vmatprep.subr.mxu0 0.0
    %1941 = vmatpush1.msra.mxu0 %v1929
    %1942 = vmatprep.subr.mxu0 0.0
    %1943 = vmatpush1.msra.mxu0 %v1930
    %1944 = vmatprep.subr.mxu0 0.0
    %1945 = vmatpush1.msra.mxu0 %v1931
    %1946 = vmatprep.subr.mxu0 0.0
    %1947 = vmatpush1.msra.mxu0 %v1932
    %1948 = vmatprep.subr.mxu0 0.0
    %1949 = vmatpush1.msra.mxu0 %v1933
    %1950 = vmatprep.subr.mxu0 0.0
    %1951 = vmatpush1.msra.mxu0 0.0
    %1952 = vmatprep.subr.mxu0 0.0
    %1953 = vmatpush1.msra.mxu0 0.0
    %1954 = vmatprep.subr.mxu0 0.0
    %1955 = vmatpush1.msra.mxu0 0.0
    %1956 = vmatprep.subr.mxu0 0.0
    %1957 = vmatpush1.msra.mxu0 0.0
    %1958 = vmatprep.subr.mxu0 0.0
    %1959 = vmatpush1.msra.mxu0 0.0
    %1960 = vmatprep.subr.mxu0 0.0
    %1961 = vmatpush1.msra.mxu0 0.0
    %1962 = vmatprep.subr.mxu0 0.0
    %1963 = vmatpush1.msra.mxu0 0.0
    %1964 = vmatprep.subr.mxu0 0.0
    %1965 = vmatpush1.msra.mxu0 0.0
    %1966 = vmatprep.subr.mxu0 0.0
    %1967 = vmatpush1.msra.mxu0 0.0
    %1968 = vmatprep.subr.mxu0 0.0
    %1969 = vmatpush1.msra.mxu0 0.0
    %1970 = vmatprep.subr.mxu0 0.0
    %1971 = vmatpush1.msra.mxu0 0.0
    %1972 = vmatprep.subr.mxu0 0.0
    %1973 = vmatpush1.msra.mxu0 0.0
    %1974 = vmatprep.subr.mxu0 0.0
    %1975 = vmatpush1.msra.mxu0 0.0
    %1976 = vmatprep.subr.mxu0 0.0
    %1977 = vmatpush1.msra.mxu0 0.0
    %1978 = vmatprep.subr.mxu0 0.0
    %1979 = vmatpush1.msra.mxu0 0.0
    %1980 = vmatprep.subr.mxu0 0.0
    %1981 = vmatpush1.msra.mxu0 0.0
    %1982 = vmatprep.subr.mxu0 0.0
    %1983 = vmatpush1.msra.mxu0 0.0
    %1984 = vmatprep.subr.mxu0 0.0
    %1985 = vmatpush1.msra.mxu0 0.0
    %1986 = vmatprep.subr.mxu0 0.0
    %1987 = vmatpush1.msra.mxu0 0.0
    %1988 = vmatprep.subr.mxu0 0.0
    %1989 = vmatpush1.msra.mxu0 0.0
    %1990 = vmatprep.subr.mxu0 0.0
    %1991 = vmatpush1.msra.mxu0 0.0
    %1992 = vmatprep.subr.mxu0 0.0
    %1993 = vmatpush1.msra.mxu0 0.0
    %1994 = vmatprep.subr.mxu0 0.0
    %1995 = vmatpush1.msra.mxu0 0.0
    %1996 = vmatprep.subr.mxu0 0.0
    %1997 = vmatpush1.msra.mxu0 0.0
    %1998 = vmatprep.subr.mxu0 0.0
    %1999 = vmatpush1.msra.mxu0 0.0
    %2000 = vmatprep.subr.mxu0 0.0
    %2001 = vmatpush1.msra.mxu0 0.0
    %2002 = vmatprep.mubr.f32.mxu0 0.0
    %2003 = vmatmul.mubr.f32.gmra.mrb[0].mxu0 %v1936
    %v2004 = vpop.f32.mrb[0].mxu0
    %v2005 = vadd.f32 0.0, %v2004
    %v2006 = vpop.f32.mrb[0].mxu0
    %2007 = vdwg.mxu0
    %v2008 = vadd.f32 %v1927, %v2005
    %s2009 = scalar_lea.vmem [#allocation14], 48
    %v2010 = vld [vmem:[%s2009] sm:$0xff]
    %v2011 = vld [vmem:[%s2009 + $0x8] sm:$0xff]
    %v2012 = vld [vmem:[%s2009 + $0x10] sm:$0xff]
    %v2013 = vld [vmem:[%s2009 + $0x18] sm:$0xff]
    %v2014 = vld [vmem:[%s2009 + $0x20] sm:$0xff]
    %v2015 = vld [vmem:[%s2009 + $0x28] sm:$0xff]
    %v2016 = vrot.slane %v1926, 1
    %v2017 = vsel %vm1934, %v2016, 0
    %2019 = vmatprep.subr.mxu0 0.0
    %2020 = vmatpush1.msra.mxu0 %v2010
    %2021 = vmatprep.subr.mxu0 0.0
    %2022 = vmatpush1.msra.mxu0 %v2011
    %2023 = vmatprep.subr.mxu0 0.0
    %2024 = vmatpush1.msra.mxu0 %v2012
    %2025 = vmatprep.subr.mxu0 0.0
    %2026 = vmatpush1.msra.mxu0 %v2013
    %2027 = vmatprep.subr.mxu0 0.0
    %2028 = vmatpush1.msra.mxu0 %v2014
    %2029 = vmatprep.subr.mxu0 0.0
    %2030 = vmatpush1.msra.mxu0 %v2015
    %2031 = vmatprep.subr.mxu0 0.0
    %2032 = vmatpush1.msra.mxu0 0.0
    %2033 = vmatprep.subr.mxu0 0.0
    %2034 = vmatpush1.msra.mxu0 0.0
    %2035 = vmatprep.subr.mxu0 0.0
    %2036 = vmatpush1.msra.mxu0 0.0
    %2037 = vmatprep.subr.mxu0 0.0
    %2038 = vmatpush1.msra.mxu0 0.0
    %2039 = vmatprep.subr.mxu0 0.0
    %2040 = vmatpush1.msra.mxu0 0.0
    %2041 = vmatprep.subr.mxu0 0.0
    %2042 = vmatpush1.msra.mxu0 0.0
    %2043 = vmatprep.subr.mxu0 0.0
    %2044 = vmatpush1.msra.mxu0 0.0
    %2045 = vmatprep.subr.mxu0 0.0
    %2046 = vmatpush1.msra.mxu0 0.0
    %2047 = vmatprep.subr.mxu0 0.0
    %2048 = vmatpush1.msra.mxu0 0.0
    %2049 = vmatprep.subr.mxu0 0.0
    %2050 = vmatpush1.msra.mxu0 0.0
    %2051 = vmatprep.subr.mxu0 0.0
    %2052 = vmatpush1.msra.mxu0 0.0
    %2053 = vmatprep.subr.mxu0 0.0
    %2054 = vmatpush1.msra.mxu0 0.0
    %2055 = vmatprep.subr.mxu0 0.0
    %2056 = vmatpush1.msra.mxu0 0.0
    %2057 = vmatprep.subr.mxu0 0.0
    %2058 = vmatpush1.msra.mxu0 0.0
    %2059 = vmatprep.subr.mxu0 0.0
    %2060 = vmatpush1.msra.mxu0 0.0
    %2061 = vmatprep.subr.mxu0 0.0
    %2062 = vmatpush1.msra.mxu0 0.0
    %2063 = vmatprep.subr.mxu0 0.0
    %2064 = vmatpush1.msra.mxu0 0.0
    %2065 = vmatprep.subr.mxu0 0.0
    %2066 = vmatpush1.msra.mxu0 0.0
    %2067 = vmatprep.subr.mxu0 0.0
    %2068 = vmatpush1.msra.mxu0 0.0
    %2069 = vmatprep.subr.mxu0 0.0
    %2070 = vmatpush1.msra.mxu0 0.0
    %2071 = vmatprep.subr.mxu0 0.0
    %2072 = vmatpush1.msra.mxu0 0.0
    %2073 = vmatprep.subr.mxu0 0.0
    %2074 = vmatpush1.msra.mxu0 0.0
    %2075 = vmatprep.subr.mxu0 0.0
    %2076 = vmatpush1.msra.mxu0 0.0
    %2077 = vmatprep.subr.mxu0 0.0
    %2078 = vmatpush1.msra.mxu0 0.0
    %2079 = vmatprep.subr.mxu0 0.0
    %2080 = vmatpush1.msra.mxu0 0.0
    %2081 = vmatprep.subr.mxu0 0.0
    %2082 = vmatpush1.msra.mxu0 0.0
    %2083 = vmatprep.mubr.f32.mxu0 0.0
    %2084 = vmatmul.mubr.f32.gmra.mrb[0].mxu0 %v2017
    %v2085 = vpop.f32.mrb[0].mxu0
    %v2086 = vadd.f32 0.0, %v2085
    %v2087 = vpop.f32.mrb[0].mxu0
    %2088 = vdwg.mxu0
    %v2089 = vadd.f32 %v2008, %v2086
    %s2090 = scalar_lea.vmem [#allocation14], 96
    %v2091 = vld [vmem:[%s2090] sm:$0xff]
    %v2092 = vld [vmem:[%s2090 + $0x8] sm:$0xff]
    %v2093 = vld [vmem:[%s2090 + $0x10] sm:$0xff]
    %v2094 = vld [vmem:[%s2090 + $0x18] sm:$0xff]
    %v2095 = vld [vmem:[%s2090 + $0x20] sm:$0xff]
    %v2096 = vld [vmem:[%s2090 + $0x28] sm:$0xff]
    %v2097 = vrot.slane %v1926, 2
    %v2098 = vsel %vm1934, %v2097, 0
    %2100 = vmatprep.subr.mxu0 0.0
    %2101 = vmatpush1.msra.mxu0 %v2091
    %2102 = vmatprep.subr.mxu0 0.0
    %2103 = vmatpush1.msra.mxu0 %v2092
    %2104 = vmatprep.subr.mxu0 0.0
    %2105 = vmatpush1.msra.mxu0 %v2093
    %2106 = vmatprep.subr.mxu0 0.0
    %2107 = vmatpush1.msra.mxu0 %v2094
    %2108 = vmatprep.subr.mxu0 0.0
    %2109 = vmatpush1.msra.mxu0 %v2095
    %2110 = vmatprep.subr.mxu0 0.0
    %2111 = vmatpush1.msra.mxu0 %v2096
    %2112 = vmatprep.subr.mxu0 0.0
    %2113 = vmatpush1.msra.mxu0 0.0
    %2114 = vmatprep.subr.mxu0 0.0
    %2115 = vmatpush1.msra.mxu0 0.0
    %2116 = vmatprep.subr.mxu0 0.0
    %2117 = vmatpush1.msra.mxu0 0.0
    %2118 = vmatprep.subr.mxu0 0.0
    %2119 = vmatpush1.msra.mxu0 0.0
    %2120 = vmatprep.subr.mxu0 0.0
    %2121 = vmatpush1.msra.mxu0 0.0
    %2122 = vmatprep.subr.mxu0 0.0
    %2123 = vmatpush1.msra.mxu0 0.0
    %2124 = vmatprep.subr.mxu0 0.0
    %2125 = vmatpush1.msra.mxu0 0.0
    %2126 = vmatprep.subr.mxu0 0.0
    %2127 = vmatpush1.msra.mxu0 0.0
    %2128 = vmatprep.subr.mxu0 0.0
    %2129 = vmatpush1.msra.mxu0 0.0
    %2130 = vmatprep.subr.mxu0 0.0
    %2131 = vmatpush1.msra.mxu0 0.0
    %2132 = vmatprep.subr.mxu0 0.0
    %2133 = vmatpush1.msra.mxu0 0.0
    %2134 = vmatprep.subr.mxu0 0.0
    %2135 = vmatpush1.msra.mxu0 0.0
    %2136 = vmatprep.subr.mxu0 0.0
    %2137 = vmatpush1.msra.mxu0 0.0
    %2138 = vmatprep.subr.mxu0 0.0
    %2139 = vmatpush1.msra.mxu0 0.0
    %2140 = vmatprep.subr.mxu0 0.0
    %2141 = vmatpush1.msra.mxu0 0.0
    %2142 = vmatprep.subr.mxu0 0.0
    %2143 = vmatpush1.msra.mxu0 0.0
    %2144 = vmatprep.subr.mxu0 0.0
    %2145 = vmatpush1.msra.mxu0 0.0
    %2146 = vmatprep.subr.mxu0 0.0
    %2147 = vmatpush1.msra.mxu0 0.0
    %2148 = vmatprep.subr.mxu0 0.0
    %2149 = vmatpush1.msra.mxu0 0.0
    %2150 = vmatprep.subr.mxu0 0.0
    %2151 = vmatpush1.msra.mxu0 0.0
    %2152 = vmatprep.subr.mxu0 0.0
    %2153 = vmatpush1.msra.mxu0 0.0
    %2154 = vmatprep.subr.mxu0 0.0
    %2155 = vmatpush1.msra.mxu0 0.0
    %2156 = vmatprep.subr.mxu0 0.0
    %2157 = vmatpush1.msra.mxu0 0.0
    %2158 = vmatprep.subr.mxu0 0.0
    %2159 = vmatpush1.msra.mxu0 0.0
    %2160 = vmatprep.subr.mxu0 0.0
    %2161 = vmatpush1.msra.mxu0 0.0
    %2162 = vmatprep.subr.mxu0 0.0
    %2163 = vmatpush1.msra.mxu0 0.0
    %2164 = vmatprep.mubr.f32.mxu0 0.0
    %2165 = vmatmul.mubr.f32.gmra.mrb[0].mxu0 %v2098
    %v2166 = vpop.f32.mrb[0].mxu0
    %v2167 = vadd.f32 0.0, %v2166
    %v2168 = vpop.f32.mrb[0].mxu0
    %2169 = vdwg.mxu0
    %v2170 = vadd.f32 %v2089, %v2167
    %s2171 = scalar_lea.vmem [#allocation14], 144
    %v2172 = vld [vmem:[%s2171] sm:$0xff]
    %v2173 = vld [vmem:[%s2171 + $0x8] sm:$0xff]
    %v2174 = vld [vmem:[%s2171 + $0x10] sm:$0xff]
    %v2175 = vld [vmem:[%s2171 + $0x18] sm:$0xff]
    %v2176 = vld [vmem:[%s2171 + $0x20] sm:$0xff]
    %v2177 = vld [vmem:[%s2171 + $0x28] sm:$0xff]
    %v2178 = vrot.slane %v1926, 3
    %v2179 = vsel %vm1934, %v2178, 0
    %2181 = vmatprep.subr.mxu0 0.0
    %2182 = vmatpush1.msra.mxu0 %v2172
    %2183 = vmatprep.subr.mxu0 0.0
    %2184 = vmatpush1.msra.mxu0 %v2173
    %2185 = vmatprep.subr.mxu0 0.0
    %2186 = vmatpush1.msra.mxu0 %v2174
    %2187 = vmatprep.subr.mxu0 0.0
    %2188 = vmatpush1.msra.mxu0 %v2175
    %2189 = vmatprep.subr.mxu0 0.0
    %2190 = vmatpush1.msra.mxu0 %v2176
    %2191 = vmatprep.subr.mxu0 0.0
    %2192 = vmatpush1.msra.mxu0 %v2177
    %2193 = vmatprep.subr.mxu0 0.0
    %2194 = vmatpush1.msra.mxu0 0.0
    %2195 = vmatprep.subr.mxu0 0.0
    %2196 = vmatpush1.msra.mxu0 0.0
    %2197 = vmatprep.subr.mxu0 0.0
    %2198 = vmatpush1.msra.mxu0 0.0
    %2199 = vmatprep.subr.mxu0 0.0
    %2200 = vmatpush1.msra.mxu0 0.0
    %2201 = vmatprep.subr.mxu0 0.0
    %2202 = vmatpush1.msra.mxu0 0.0
    %2203 = vmatprep.subr.mxu0 0.0
    %2204 = vmatpush1.msra.mxu0 0.0
    %2205 = vmatprep.subr.mxu0 0.0
    %2206 = vmatpush1.msra.mxu0 0.0
    %2207 = vmatprep.subr.mxu0 0.0
    %2208 = vmatpush1.msra.mxu0 0.0
    %2209 = vmatprep.subr.mxu0 0.0
    %2210 = vmatpush1.msra.mxu0 0.0
    %2211 = vmatprep.subr.mxu0 0.0
    %2212 = vmatpush1.msra.mxu0 0.0
    %2213 = vmatprep.subr.mxu0 0.0
    %2214 = vmatpush1.msra.mxu0 0.0
    %2215 = vmatprep.subr.mxu0 0.0
    %2216 = vmatpush1.msra.mxu0 0.0
    %2217 = vmatprep.subr.mxu0 0.0
    %2218 = vmatpush1.msra.mxu0 0.0
    %2219 = vmatprep.subr.mxu0 0.0
    %2220 = vmatpush1.msra.mxu0 0.0
    %2221 = vmatprep.subr.mxu0 0.0
    %2222 = vmatpush1.msra.mxu0 0.0
    %2223 = vmatprep.subr.mxu0 0.0
    %2224 = vmatpush1.msra.mxu0 0.0
    %2225 = vmatprep.subr.mxu0 0.0
    %2226 = vmatpush1.msra.mxu0 0.0
    %2227 = vmatprep.subr.mxu0 0.0
    %2228 = vmatpush1.msra.mxu0 0.0
    %2229 = vmatprep.subr.mxu0 0.0
    %2230 = vmatpush1.msra.mxu0 0.0
    %2231 = vmatprep.subr.mxu0 0.0
    %2232 = vmatpush1.msra.mxu0 0.0
    %2233 = vmatprep.subr.mxu0 0.0
    %2234 = vmatpush1.msra.mxu0 0.0
    %2235 = vmatprep.subr.mxu0 0.0
    %2236 = vmatpush1.msra.mxu0 0.0
    %2237 = vmatprep.subr.mxu0 0.0
    %2238 = vmatpush1.msra.mxu0 0.0
    %2239 = vmatprep.subr.mxu0 0.0
    %2240 = vmatpush1.msra.mxu0 0.0
    %2241 = vmatprep.subr.mxu0 0.0
    %2242 = vmatpush1.msra.mxu0 0.0
    %2243 = vmatprep.subr.mxu0 0.0
    %2244 = vmatpush1.msra.mxu0 0.0
    %2245 = vmatprep.mubr.f32.mxu0 0.0
    %2246 = vmatmul.mubr.f32.gmra.mrb[0].mxu0 %v2179
    %v2247 = vpop.f32.mrb[0].mxu0
    %v2248 = vadd.f32 0.0, %v2247
    %v2249 = vpop.f32.mrb[0].mxu0
    %2250 = vdwg.mxu0
    %v2251 = vadd.f32 %v2170, %v2248
    %v2252 = vmax.f32 %v2251, 0.0
    %v2253 = vld [vmem:[%s15] sm:$0xff]
    %v2254 = vld [vmem:[%s15 + $0x8] sm:$0xff]
    %v2255 = vld [vmem:[%s15 + $0x10] sm:$0xff]
    %v2256 = vld [vmem:[%s15 + $0x18] sm:$0xff]
    %v2257 = vld [vmem:[%s15 + $0x20] sm:$0xff]
    %v2258 = vld [vmem:[%s15 + $0x28] sm:$0xff]
    %v2259 = vld [vmem:[%s15 + $0x30] sm:$0xff]
    %v2260 = vld [vmem:[%s15 + $0x38] sm:$0xff]
    %v2261 = vld [vmem:[%s15 + $0x40] sm:$0xff]
    %v2262 = vld [vmem:[%s15 + $0x48] sm:$0xff]
    %v2263 = vld [vmem:[%s15 + $0x50] sm:$0xff]
    %v2264 = vld [vmem:[%s15 + $0x58] sm:$0xff]
    %v2265 = vld [vmem:[%s15 + $0x60] sm:$0xff]
    %v2266 = vld [vmem:[%s15 + $0x68] sm:$0xff]
    %v2267 = vld [vmem:[%s15 + $0x70] sm:$0xff]
    %v2268 = vld [vmem:[#allocation17] sm:$0x1]
    %vm2269 = vcmask 982016
    %v2271 = vsel %vm2269, %v2252, 0
    %2273 = vmatprep.subr.mxu0 0.0
    %2274 = vmatpush1.msra.mxu0 %v2253
    %2275 = vmatprep.subr.mxu0 0.0
    %2276 = vmatpush1.msra.mxu0 %v2254
    %2277 = vmatprep.subr.mxu0 0.0
    %2278 = vmatpush1.msra.mxu0 %v2255
    %2279 = vmatprep.subr.mxu0 0.0
    %2280 = vmatpush1.msra.mxu0 %v2256
    %2281 = vmatprep.subr.mxu0 0.0
    %2282 = vmatpush1.msra.mxu0 %v2257
    %2283 = vmatprep.subr.mxu0 0.0
    %2284 = vmatpush1.msra.mxu0 %v2258
    %2285 = vmatprep.subr.mxu0 0.0
    %2286 = vmatpush1.msra.mxu0 %v2259
    %2287 = vmatprep.subr.mxu0 0.0
    %2288 = vmatpush1.msra.mxu0 %v2260
    %2289 = vmatprep.subr.mxu0 0.0
    %2290 = vmatpush1.msra.mxu0 %v2261
    %2291 = vmatprep.subr.mxu0 0.0
    %2292 = vmatpush1.msra.mxu0 %v2262
    %2293 = vmatprep.subr.mxu0 0.0
    %2294 = vmatpush1.msra.mxu0 %v2263
    %2295 = vmatprep.subr.mxu0 0.0
    %2296 = vmatpush1.msra.mxu0 %v2264
    %2297 = vmatprep.subr.mxu0 0.0
    %2298 = vmatpush1.msra.mxu0 %v2265
    %2299 = vmatprep.subr.mxu0 0.0
    %2300 = vmatpush1.msra.mxu0 %v2266
    %2301 = vmatprep.subr.mxu0 0.0
    %2302 = vmatpush1.msra.mxu0 %v2267
    %2303 = vmatprep.subr.mxu0 0.0
    %2304 = vmatpush1.msra.mxu0 0.0
    %2305 = vmatprep.subr.mxu0 0.0
    %2306 = vmatpush1.msra.mxu0 0.0
    %2307 = vmatprep.subr.mxu0 0.0
    %2308 = vmatpush1.msra.mxu0 0.0
    %2309 = vmatprep.subr.mxu0 0.0
    %2310 = vmatpush1.msra.mxu0 0.0
    %2311 = vmatprep.subr.mxu0 0.0
    %2312 = vmatpush1.msra.mxu0 0.0
    %2313 = vmatprep.subr.mxu0 0.0
    %2314 = vmatpush1.msra.mxu0 0.0
    %2315 = vmatprep.subr.mxu0 0.0
    %2316 = vmatpush1.msra.mxu0 0.0
    %2317 = vmatprep.subr.mxu0 0.0
    %2318 = vmatpush1.msra.mxu0 0.0
    %2319 = vmatprep.subr.mxu0 0.0
    %2320 = vmatpush1.msra.mxu0 0.0
    %2321 = vmatprep.subr.mxu0 0.0
    %2322 = vmatpush1.msra.mxu0 0.0
    %2323 = vmatprep.subr.mxu0 0.0
    %2324 = vmatpush1.msra.mxu0 0.0
    %2325 = vmatprep.subr.mxu0 0.0
    %2326 = vmatpush1.msra.mxu0 0.0
    %2327 = vmatprep.subr.mxu0 0.0
    %2328 = vmatpush1.msra.mxu0 0.0
    %2329 = vmatprep.subr.mxu0 0.0
    %2330 = vmatpush1.msra.mxu0 0.0
    %2331 = vmatprep.subr.mxu0 0.0
    %2332 = vmatpush1.msra.mxu0 0.0
    %2333 = vmatprep.subr.mxu0 0.0
    %2334 = vmatpush1.msra.mxu0 0.0
    %2335 = vmatprep.subr.mxu0 0.0
    %2336 = vmatpush1.msra.mxu0 0.0
    %2337 = vmatprep.mubr.f32.mxu0 0.0
    %2338 = vmatmul.mubr.f32.gmra.mrb[0].mxu0 %v2271
    %v2339 = vpop.f32.mrb[0].mxu0
    %v2340 = vadd.f32 %v2268, %v2339
    %v2341 = vpop.f32.mrb[0].mxu0
    %2342 = vdwg.mxu0
    %v2343 = vmax.f32 %v2340, 0.0
    %v2344 = vld [vmem:[%s17] sm:$0xff]
    %v2345 = vld [vmem:[%s17 + $0x8] sm:$0xff]
    %v2346 = vld [vmem:[%s17 + $0x10] sm:$0xff]
    %v2347 = vld [vmem:[%s17 + $0x18] sm:$0xff]
    %v2348 = vld [vmem:[%s17 + $0x20] sm:$0xff]
    %v2349 = vld [vmem:[%s17 + $0x28] sm:$0xff]
    %v2350 = vld [vmem:[%s17 + $0x30] sm:$0xff]
    %v2351 = vld [vmem:[%s17 + $0x38] sm:$0xf]
    %v2352 = vld [vmem:[#allocation19] sm:$0x1]
    %vm2353 = vcmask 490496
    %v2355 = vsel %vm2353, %v2343, 0
    %v2358 = vsel %vm240, %v2351, 0
    %2360 = vmatprep.subr.mxu0 0.0
    %2361 = vmatpush1.msra.mxu0 %v2344
    %2362 = vmatprep.subr.mxu0 0.0
    %2363 = vmatpush1.msra.mxu0 %v2345
    %2364 = vmatprep.subr.mxu0 0.0
    %2365 = vmatpush1.msra.mxu0 %v2346
    %2366 = vmatprep.subr.mxu0 0.0
    %2367 = vmatpush1.msra.mxu0 %v2347
    %2368 = vmatprep.subr.mxu0 0.0
    %2369 = vmatpush1.msra.mxu0 %v2348
    %2370 = vmatprep.subr.mxu0 0.0
    %2371 = vmatpush1.msra.mxu0 %v2349
    %2372 = vmatprep.subr.mxu0 0.0
    %2373 = vmatpush1.msra.mxu0 %v2350
    %2374 = vmatprep.subr.mxu0 0.0
    %2375 = vmatpush1.msra.mxu0 %v2358
    %2376 = vmatprep.subr.mxu0 0.0
    %2377 = vmatpush1.msra.mxu0 0.0
    %2378 = vmatprep.subr.mxu0 0.0
    %2379 = vmatpush1.msra.mxu0 0.0
    %2380 = vmatprep.subr.mxu0 0.0
    %2381 = vmatpush1.msra.mxu0 0.0
    %2382 = vmatprep.subr.mxu0 0.0
    %2383 = vmatpush1.msra.mxu0 0.0
    %2384 = vmatprep.subr.mxu0 0.0
    %2385 = vmatpush1.msra.mxu0 0.0
    %2386 = vmatprep.subr.mxu0 0.0
    %2387 = vmatpush1.msra.mxu0 0.0
    %2388 = vmatprep.subr.mxu0 0.0
    %2389 = vmatpush1.msra.mxu0 0.0
    %2390 = vmatprep.subr.mxu0 0.0
    %2391 = vmatpush1.msra.mxu0 0.0
    %2392 = vmatprep.subr.mxu0 0.0
    %2393 = vmatpush1.msra.mxu0 0.0
    %2394 = vmatprep.subr.mxu0 0.0
    %2395 = vmatpush1.msra.mxu0 0.0
    %2396 = vmatprep.subr.mxu0 0.0
    %2397 = vmatpush1.msra.mxu0 0.0
    %2398 = vmatprep.subr.mxu0 0.0
    %2399 = vmatpush1.msra.mxu0 0.0
    %2400 = vmatprep.subr.mxu0 0.0
    %2401 = vmatpush1.msra.mxu0 0.0
    %2402 = vmatprep.subr.mxu0 0.0
    %2403 = vmatpush1.msra.mxu0 0.0
    %2404 = vmatprep.subr.mxu0 0.0
    %2405 = vmatpush1.msra.mxu0 0.0
    %2406 = vmatprep.subr.mxu0 0.0
    %2407 = vmatpush1.msra.mxu0 0.0
    %2408 = vmatprep.subr.mxu0 0.0
    %2409 = vmatpush1.msra.mxu0 0.0
    %2410 = vmatprep.subr.mxu0 0.0
    %2411 = vmatpush1.msra.mxu0 0.0
    %2412 = vmatprep.subr.mxu0 0.0
    %2413 = vmatpush1.msra.mxu0 0.0
    %2414 = vmatprep.subr.mxu0 0.0
    %2415 = vmatpush1.msra.mxu0 0.0
    %2416 = vmatprep.subr.mxu0 0.0
    %2417 = vmatpush1.msra.mxu0 0.0
    %2418 = vmatprep.subr.mxu0 0.0
    %2419 = vmatpush1.msra.mxu0 0.0
    %2420 = vmatprep.subr.mxu0 0.0
    %2421 = vmatpush1.msra.mxu0 0.0
    %2422 = vmatprep.subr.mxu0 0.0
    %2423 = vmatpush1.msra.mxu0 0.0
    %2424 = vmatprep.mubr.f32.mxu0 0.0
    %2425 = vmatmul.mubr.f32.gmra.mrb[0].mxu0 %v2355
    %v2426 = vpop.f32.mrb[0].mxu0
    %v2427 = vadd.f32 %v2352, %v2426
    %v2428 = vpop.f32.mrb[0].mxu0
    %2429 = vdwg.mxu0
    %vm2430 = vcmask 73728
    %2431 = vst.msk [vmem:[#allocation20] sm:$0x1] %vm2430, %v2427
    %s2432 = scalar_lea.vmem %s0, 32
    %v2433 = vld [vmem:[%s2432] sm:$0xff]
    %v2434 = vld [vmem:[%s2432 + $0x8] sm:$0xff]
    %v2435 = vld [vmem:[%s2432 + $0x10] sm:$0xff]
    %v2436 = vld [vmem:[%s2432 + $0x18] sm:$0xf]
    %v2437 = vld [vmem:[%s1] sm:$0xff]
    %v2438 = vld [vmem:[%s1 + $0x8] sm:$0xff]
    %v2439 = vld [vmem:[%s1 + $0x10] sm:$0xff]
    %v2440 = vld [vmem:[%s1 + $0x18] sm:$0xff]
    %v2441 = vld [vmem:[%s1 + $0x20] sm:$0xff]
    %v2442 = vld [vmem:[%s1 + $0x28] sm:$0xff]
    %v2443 = vld [vmem:[%s1 + $0x30] sm:$0xf]
    %v2444 = vld [vmem:[%s1 + $0x38] sm:$0xf]
    %v2445 = vld [vmem:[%s212] sm:$0xff]
    %v2446 = vld [vmem:[%s212 + $0x8] sm:$0xff]
    %v2447 = vld [vmem:[%s212 + $0x10] sm:$0xff]
    %v2448 = vld [vmem:[%s212 + $0x18] sm:$0xff]
    %v2449 = vld [vmem:[%s212 + $0x20] sm:$0xff]
    %v2450 = vld [vmem:[%s212 + $0x28] sm:$0xff]
    %v2451 = vld [vmem:[%s212 + $0x30] sm:$0xf]
    %v2452 = vld [vmem:[%s212 + $0x38] sm:$0xf]
    %v2457 = vrot.slane %v2433, 1
    %v2458 = vrot.slane %v2434, 1
    %v2459 = vsel %vm225, %v2457, %v2458
    %v2460 = vrot.slane %v2435, 1
    %v2461 = vsel %vm225, %v2458, %v2460
    %v2462 = vrot.slane %v2436, 1
    %v2463 = vsel %vm225, %v2460, %v2462
    %v2464 = vsel %vm233, %v2459, 0
    %v2466 = vsel %vm233, %v2461, 0
    %v2468 = vsel %vm233, %v2463, 0
    %v2471 = vsel %vm240, %v2451, 0
    %v2474 = vsel %vm240, %v2452, 0
    %2476 = vmatprep.subr.mxu0 %v2446
    %2477 = vmatpush1.msra.mxu0 %v2445
    %2478 = vmatprep.subr.mxu0 %v2448
    %2479 = vmatpush1.msra.mxu0 %v2447
    %2480 = vmatprep.subr.mxu0 %v2450
    %2481 = vmatpush1.msra.mxu0 %v2449
    %2482 = vmatprep.subr.mxu0 %v2474
    %2483 = vmatpush1.msra.mxu0 %v2471
    %2484 = vmatprep.subr.mxu0 0.0
    %2485 = vmatpush1.msra.mxu0 0.0
    %2486 = vmatprep.subr.mxu0 0.0
    %2487 = vmatpush1.msra.mxu0 0.0
    %2488 = vmatprep.subr.mxu0 0.0
    %2489 = vmatpush1.msra.mxu0 0.0
    %2490 = vmatprep.subr.mxu0 0.0
    %2491 = vmatpush1.msra.mxu0 0.0
    %2492 = vmatprep.subr.mxu0 0.0
    %2493 = vmatpush1.msra.mxu0 0.0
    %2494 = vmatprep.subr.mxu0 0.0
    %2495 = vmatpush1.msra.mxu0 0.0
    %2496 = vmatprep.subr.mxu0 0.0
    %2497 = vmatpush1.msra.mxu0 0.0
    %2498 = vmatprep.subr.mxu0 0.0
    %2499 = vmatpush1.msra.mxu0 0.0
    %2500 = vmatprep.subr.mxu0 0.0
    %2501 = vmatpush1.msra.mxu0 0.0
    %2502 = vmatprep.subr.mxu0 0.0
    %2503 = vmatpush1.msra.mxu0 0.0
    %2504 = vmatprep.subr.mxu0 0.0
    %2505 = vmatpush1.msra.mxu0 0.0
    %2506 = vmatprep.subr.mxu0 0.0
    %2507 = vmatpush1.msra.mxu0 0.0
    %2508 = vmatprep.subr.mxu0 0.0
    %2509 = vmatpush1.msra.mxu0 0.0
    %2510 = vmatprep.subr.mxu0 0.0
    %2511 = vmatpush1.msra.mxu0 0.0
    %2512 = vmatprep.subr.mxu0 0.0
    %2513 = vmatpush1.msra.mxu0 0.0
    %2514 = vmatprep.subr.mxu0 0.0
    %2515 = vmatpush1.msra.mxu0 0.0
    %2516 = vmatprep.subr.mxu0 0.0
    %2517 = vmatpush1.msra.mxu0 0.0
    %2518 = vmatprep.subr.mxu0 0.0
    %2519 = vmatpush1.msra.mxu0 0.0
    %2520 = vmatprep.subr.mxu0 0.0
    %2521 = vmatpush1.msra.mxu0 0.0
    %2522 = vmatprep.subr.mxu0 0.0
    %2523 = vmatpush1.msra.mxu0 0.0
    %2524 = vmatprep.subr.mxu0 0.0
    %2525 = vmatpush1.msra.mxu0 0.0
    %2526 = vmatprep.subr.mxu0 0.0
    %2527 = vmatpush1.msra.mxu0 0.0
    %2528 = vmatprep.subr.mxu0 0.0
    %2529 = vmatpush1.msra.mxu0 0.0
    %2530 = vmatprep.subr.mxu0 0.0
    %2531 = vmatpush1.msra.mxu0 0.0
    %2532 = vmatprep.subr.mxu0 0.0
    %2533 = vmatpush1.msra.mxu0 0.0
    %2534 = vmatprep.subr.mxu0 0.0
    %2535 = vmatpush1.msra.mxu0 0.0
    %2536 = vmatprep.subr.mxu0 0.0
    %2537 = vmatpush1.msra.mxu0 0.0
    %2538 = vmatprep.subr.mxu0 0.0
    %2539 = vmatpush1.msra.mxu0 0.0
    %2540 = vmatprep.mubr.f32.mxu0 0.0
    %2541 = vmatmul.mubr.f32.gmra.mrb[0].mxu0 %v2464
    %v2542 = vpop.f32.mrb[0].mxu0
    %v2543 = vadd.f32 0.0, %v2542
    %v2544 = vpop.f32.mrb[0].mxu0
    %v2545 = vadd.f32 0.0, %v2544
    %2546 = vmatprep.mubr.f32.mxu0 0.0
    %2547 = vmatmul.mubr.f32.gmra.mrb[0].mxu0 %v2466
    %v2548 = vpop.f32.mrb[0].mxu0
    %v2549 = vadd.f32 0.0, %v2548
    %v2550 = vpop.f32.mrb[0].mxu0
    %v2551 = vadd.f32 0.0, %v2550
    %2552 = vmatprep.mubr.f32.mxu0 0.0
    %2553 = vmatmul.mubr.f32.gmra.mrb[0].mxu0 %v2468
    %v2554 = vpop.f32.mrb[0].mxu0
    %v2555 = vadd.f32 0.0, %v2554
    %v2556 = vpop.f32.mrb[0].mxu0
    %v2557 = vadd.f32 0.0, %v2556
    %2558 = vdwg.mxu0
    %v2559 = vsel %vm233, %v2433, 0
    %v2561 = vsel %vm233, %v2434, 0
    %v2563 = vsel %vm233, %v2435, 0
    %v2566 = vsel %vm240, %v2443, 0
    %v2569 = vsel %vm240, %v2444, 0
    %2571 = vmatprep.subr.mxu0 %v2438
    %2572 = vmatpush1.msra.mxu0 %v2437
    %2573 = vmatprep.subr.mxu0 %v2440
    %2574 = vmatpush1.msra.mxu0 %v2439
    %2575 = vmatprep.subr.mxu0 %v2442
    %2576 = vmatpush1.msra.mxu0 %v2441
    %2577 = vmatprep.subr.mxu0 %v2569
    %2578 = vmatpush1.msra.mxu0 %v2566
    %2579 = vmatprep.subr.mxu0 0.0
    %2580 = vmatpush1.msra.mxu0 0.0
    %2581 = vmatprep.subr.mxu0 0.0
    %2582 = vmatpush1.msra.mxu0 0.0
    %2583 = vmatprep.subr.mxu0 0.0
    %2584 = vmatpush1.msra.mxu0 0.0
    %2585 = vmatprep.subr.mxu0 0.0
    %2586 = vmatpush1.msra.mxu0 0.0
    %2587 = vmatprep.subr.mxu0 0.0
    %2588 = vmatpush1.msra.mxu0 0.0
    %2589 = vmatprep.subr.mxu0 0.0
    %2590 = vmatpush1.msra.mxu0 0.0
    %2591 = vmatprep.subr.mxu0 0.0
    %2592 = vmatpush1.msra.mxu0 0.0
    %2593 = vmatprep.subr.mxu0 0.0
    %2594 = vmatpush1.msra.mxu0 0.0
    %2595 = vmatprep.subr.mxu0 0.0
    %2596 = vmatpush1.msra.mxu0 0.0
    %2597 = vmatprep.subr.mxu0 0.0
    %2598 = vmatpush1.msra.mxu0 0.0
    %2599 = vmatprep.subr.mxu0 0.0
    %2600 = vmatpush1.msra.mxu0 0.0
    %2601 = vmatprep.subr.mxu0 0.0
    %2602 = vmatpush1.msra.mxu0 0.0
    %2603 = vmatprep.subr.mxu0 0.0
    %2604 = vmatpush1.msra.mxu0 0.0
    %2605 = vmatprep.subr.mxu0 0.0
    %2606 = vmatpush1.msra.mxu0 0.0
    %2607 = vmatprep.subr.mxu0 0.0
    %2608 = vmatpush1.msra.mxu0 0.0
    %2609 = vmatprep.subr.mxu0 0.0
    %2610 = vmatpush1.msra.mxu0 0.0
    %2611 = vmatprep.subr.mxu0 0.0
    %2612 = vmatpush1.msra.mxu0 0.0
    %2613 = vmatprep.subr.mxu0 0.0
    %2614 = vmatpush1.msra.mxu0 0.0
    %2615 = vmatprep.subr.mxu0 0.0
    %2616 = vmatpush1.msra.mxu0 0.0
    %2617 = vmatprep.subr.mxu0 0.0
    %2618 = vmatpush1.msra.mxu0 0.0
    %2619 = vmatprep.subr.mxu0 0.0
    %2620 = vmatpush1.msra.mxu0 0.0
    %2621 = vmatprep.subr.mxu0 0.0
    %2622 = vmatpush1.msra.mxu0 0.0
    %2623 = vmatprep.subr.mxu0 0.0
    %2624 = vmatpush1.msra.mxu0 0.0
    %2625 = vmatprep.subr.mxu0 0.0
    %2626 = vmatpush1.msra.mxu0 0.0
    %2627 = vmatprep.subr.mxu0 0.0
    %2628 = vmatpush1.msra.mxu0 0.0
    %2629 = vmatprep.subr.mxu0 0.0
    %2630 = vmatpush1.msra.mxu0 0.0
    %2631 = vmatprep.subr.mxu0 0.0
    %2632 = vmatpush1.msra.mxu0 0.0
    %2633 = vmatprep.subr.mxu0 0.0
    %2634 = vmatpush1.msra.mxu0 0.0
    %2635 = vmatprep.mubr.f32.mxu0 0.0
    %2636 = vmatmul.mubr.f32.gmra.mrb[0].mxu0 %v2559
    %v2637 = vpop.f32.mrb[0].mxu0
    %v2638 = vadd.f32 %v2543, %v2637
    %v2639 = vpop.f32.mrb[0].mxu0
    %v2640 = vadd.f32 %v2545, %v2639
    %2641 = vmatprep.mubr.f32.mxu0 0.0
    %2642 = vmatmul.mubr.f32.gmra.mrb[0].mxu0 %v2561
    %v2643 = vpop.f32.mrb[0].mxu0
    %v2644 = vadd.f32 %v2549, %v2643
    %v2645 = vpop.f32.mrb[0].mxu0
    %v2646 = vadd.f32 %v2551, %v2645
    %2647 = vmatprep.mubr.f32.mxu0 0.0
    %2648 = vmatmul.mubr.f32.gmra.mrb[0].mxu0 %v2563
    %v2649 = vpop.f32.mrb[0].mxu0
    %v2650 = vadd.f32 %v2555, %v2649
    %v2651 = vpop.f32.mrb[0].mxu0
    %v2652 = vadd.f32 %v2557, %v2651
    %2653 = vdwg.mxu0
    %v2654 = vld [vmem:[%s425] sm:$0xff]
    %v2655 = vld [vmem:[%s425 + $0x8] sm:$0xff]
    %v2656 = vld [vmem:[%s425 + $0x10] sm:$0xff]
    %v2657 = vld [vmem:[%s425 + $0x18] sm:$0xff]
    %v2658 = vld [vmem:[%s425 + $0x20] sm:$0xff]
    %v2659 = vld [vmem:[%s425 + $0x28] sm:$0xff]
    %v2660 = vld [vmem:[%s425 + $0x30] sm:$0xf]
    %v2661 = vld [vmem:[%s425 + $0x38] sm:$0xf]
    %v2662 = vrot.slane %v2433, 2
    %v2663 = vrot.slane %v2434, 2
    %v2664 = vsel %vm434, %v2662, %v2663
    %v2665 = vrot.slane %v2435, 2
    %v2666 = vsel %vm434, %v2663, %v2665
    %v2667 = vrot.slane %v2436, 2
    %v2668 = vsel %vm434, %v2665, %v2667
    %v2669 = vsel %vm233, %v2664, 0
    %v2671 = vsel %vm233, %v2666, 0
    %v2673 = vsel %vm233, %v2668, 0
    %v2676 = vsel %vm240, %v2660, 0
    %v2679 = vsel %vm240, %v2661, 0
    %2681 = vmatprep.subr.mxu0 %v2655
    %2682 = vmatpush1.msra.mxu0 %v2654
    %2683 = vmatprep.subr.mxu0 %v2657
    %2684 = vmatpush1.msra.mxu0 %v2656
    %2685 = vmatprep.subr.mxu0 %v2659
    %2686 = vmatpush1.msra.mxu0 %v2658
    %2687 = vmatprep.subr.mxu0 %v2679
    %2688 = vmatpush1.msra.mxu0 %v2676
    %2689 = vmatprep.subr.mxu0 0.0
    %2690 = vmatpush1.msra.mxu0 0.0
    %2691 = vmatprep.subr.mxu0 0.0
    %2692 = vmatpush1.msra.mxu0 0.0
    %2693 = vmatprep.subr.mxu0 0.0
    %2694 = vmatpush1.msra.mxu0 0.0
    %2695 = vmatprep.subr.mxu0 0.0
    %2696 = vmatpush1.msra.mxu0 0.0
    %2697 = vmatprep.subr.mxu0 0.0
    %2698 = vmatpush1.msra.mxu0 0.0
    %2699 = vmatprep.subr.mxu0 0.0
    %2700 = vmatpush1.msra.mxu0 0.0
    %2701 = vmatprep.subr.mxu0 0.0
    %2702 = vmatpush1.msra.mxu0 0.0
    %2703 = vmatprep.subr.mxu0 0.0
    %2704 = vmatpush1.msra.mxu0 0.0
    %2705 = vmatprep.subr.mxu0 0.0
    %2706 = vmatpush1.msra.mxu0 0.0
    %2707 = vmatprep.subr.mxu0 0.0
    %2708 = vmatpush1.msra.mxu0 0.0
    %2709 = vmatprep.subr.mxu0 0.0
    %2710 = vmatpush1.msra.mxu0 0.0
    %2711 = vmatprep.subr.mxu0 0.0
    %2712 = vmatpush1.msra.mxu0 0.0
    %2713 = vmatprep.subr.mxu0 0.0
    %2714 = vmatpush1.msra.mxu0 0.0
    %2715 = vmatprep.subr.mxu0 0.0
    %2716 = vmatpush1.msra.mxu0 0.0
    %2717 = vmatprep.subr.mxu0 0.0
    %2718 = vmatpush1.msra.mxu0 0.0
    %2719 = vmatprep.subr.mxu0 0.0
    %2720 = vmatpush1.msra.mxu0 0.0
    %2721 = vmatprep.subr.mxu0 0.0
    %2722 = vmatpush1.msra.mxu0 0.0
    %2723 = vmatprep.subr.mxu0 0.0
    %2724 = vmatpush1.msra.mxu0 0.0
    %2725 = vmatprep.subr.mxu0 0.0
    %2726 = vmatpush1.msra.mxu0 0.0
    %2727 = vmatprep.subr.mxu0 0.0
    %2728 = vmatpush1.msra.mxu0 0.0
    %2729 = vmatprep.subr.mxu0 0.0
    %2730 = vmatpush1.msra.mxu0 0.0
    %2731 = vmatprep.subr.mxu0 0.0
    %2732 = vmatpush1.msra.mxu0 0.0
    %2733 = vmatprep.subr.mxu0 0.0
    %2734 = vmatpush1.msra.mxu0 0.0
    %2735 = vmatprep.subr.mxu0 0.0
    %2736 = vmatpush1.msra.mxu0 0.0
    %2737 = vmatprep.subr.mxu0 0.0
    %2738 = vmatpush1.msra.mxu0 0.0
    %2739 = vmatprep.subr.mxu0 0.0
    %2740 = vmatpush1.msra.mxu0 0.0
    %2741 = vmatprep.subr.mxu0 0.0
    %2742 = vmatpush1.msra.mxu0 0.0
    %2743 = vmatprep.subr.mxu0 0.0
    %2744 = vmatpush1.msra.mxu0 0.0
    %2745 = vmatprep.mubr.f32.mxu0 0.0
    %2746 = vmatmul.mubr.f32.gmra.mrb[0].mxu0 %v2669
    %v2747 = vpop.f32.mrb[0].mxu0
    %v2748 = vadd.f32 0.0, %v2747
    %v2749 = vpop.f32.mrb[0].mxu0
    %v2750 = vadd.f32 0.0, %v2749
    %2751 = vmatprep.mubr.f32.mxu0 0.0
    %2752 = vmatmul.mubr.f32.gmra.mrb[0].mxu0 %v2671
    %v2753 = vpop.f32.mrb[0].mxu0
    %v2754 = vadd.f32 0.0, %v2753
    %v2755 = vpop.f32.mrb[0].mxu0
    %v2756 = vadd.f32 0.0, %v2755
    %2757 = vmatprep.mubr.f32.mxu0 0.0
    %2758 = vmatmul.mubr.f32.gmra.mrb[0].mxu0 %v2673
    %v2759 = vpop.f32.mrb[0].mxu0
    %v2760 = vadd.f32 0.0, %v2759
    %v2761 = vpop.f32.mrb[0].mxu0
    %v2762 = vadd.f32 0.0, %v2761
    %2763 = vdwg.mxu0
    %v2764 = vadd.f32 %v2638, %v2748
    %v2765 = vadd.f32 %v2640, %v2750
    %v2766 = vadd.f32 %v2644, %v2754
    %v2767 = vadd.f32 %v2646, %v2756
    %v2768 = vadd.f32 %v2650, %v2760
    %v2769 = vadd.f32 %v2652, %v2762
    %v2770 = vld [vmem:[%s543] sm:$0xff]
    %v2771 = vld [vmem:[%s543 + $0x8] sm:$0xff]
    %v2772 = vld [vmem:[%s543 + $0x10] sm:$0xff]
    %v2773 = vld [vmem:[%s543 + $0x18] sm:$0xff]
    %v2774 = vld [vmem:[%s543 + $0x20] sm:$0xff]
    %v2775 = vld [vmem:[%s543 + $0x28] sm:$0xff]
    %v2776 = vld [vmem:[%s543 + $0x30] sm:$0xf]
    %v2777 = vld [vmem:[%s543 + $0x38] sm:$0xf]
    %v2778 = vrot.slane %v2433, 3
    %v2779 = vrot.slane %v2434, 3
    %v2780 = vsel %vm552, %v2778, %v2779
    %v2781 = vrot.slane %v2435, 3
    %v2782 = vsel %vm552, %v2779, %v2781
    %v2783 = vrot.slane %v2436, 3
    %v2784 = vsel %vm552, %v2781, %v2783
    %v2785 = vsel %vm233, %v2780, 0
    %v2787 = vsel %vm233, %v2782, 0
    %v2789 = vsel %vm233, %v2784, 0
    %v2792 = vsel %vm240, %v2776, 0
    %v2795 = vsel %vm240, %v2777, 0
    %2797 = vmatprep.subr.mxu0 %v2771
    %2798 = vmatpush1.msra.mxu0 %v2770
    %2799 = vmatprep.subr.mxu0 %v2773
    %2800 = vmatpush1.msra.mxu0 %v2772
    %2801 = vmatprep.subr.mxu0 %v2775
    %2802 = vmatpush1.msra.mxu0 %v2774
    %2803 = vmatprep.subr.mxu0 %v2795
    %2804 = vmatpush1.msra.mxu0 %v2792
    %2805 = vmatprep.subr.mxu0 0.0
    %2806 = vmatpush1.msra.mxu0 0.0
    %2807 = vmatprep.subr.mxu0 0.0
    %2808 = vmatpush1.msra.mxu0 0.0
    %2809 = vmatprep.subr.mxu0 0.0
    %2810 = vmatpush1.msra.mxu0 0.0
    %2811 = vmatprep.subr.mxu0 0.0
    %2812 = vmatpush1.msra.mxu0 0.0
    %2813 = vmatprep.subr.mxu0 0.0
    %2814 = vmatpush1.msra.mxu0 0.0
    %2815 = vmatprep.subr.mxu0 0.0
    %2816 = vmatpush1.msra.mxu0 0.0
    %2817 = vmatprep.subr.mxu0 0.0
    %2818 = vmatpush1.msra.mxu0 0.0
    %2819 = vmatprep.subr.mxu0 0.0
    %2820 = vmatpush1.msra.mxu0 0.0
    %2821 = vmatprep.subr.mxu0 0.0
    %2822 = vmatpush1.msra.mxu0 0.0
    %2823 = vmatprep.subr.mxu0 0.0
    %2824 = vmatpush1.msra.mxu0 0.0
    %2825 = vmatprep.subr.mxu0 0.0
    %2826 = vmatpush1.msra.mxu0 0.0
    %2827 = vmatprep.subr.mxu0 0.0
    %2828 = vmatpush1.msra.mxu0 0.0
    %2829 = vmatprep.subr.mxu0 0.0
    %2830 = vmatpush1.msra.mxu0 0.0
    %2831 = vmatprep.subr.mxu0 0.0
    %2832 = vmatpush1.msra.mxu0 0.0
    %2833 = vmatprep.subr.mxu0 0.0
    %2834 = vmatpush1.msra.mxu0 0.0
    %2835 = vmatprep.subr.mxu0 0.0
    %2836 = vmatpush1.msra.mxu0 0.0
    %2837 = vmatprep.subr.mxu0 0.0
    %2838 = vmatpush1.msra.mxu0 0.0
    %2839 = vmatprep.subr.mxu0 0.0
    %2840 = vmatpush1.msra.mxu0 0.0
    %2841 = vmatprep.subr.mxu0 0.0
    %2842 = vmatpush1.msra.mxu0 0.0
    %2843 = vmatprep.subr.mxu0 0.0
    %2844 = vmatpush1.msra.mxu0 0.0
    %2845 = vmatprep.subr.mxu0 0.0
    %2846 = vmatpush1.msra.mxu0 0.0
    %2847 = vmatprep.subr.mxu0 0.0
    %2848 = vmatpush1.msra.mxu0 0.0
    %2849 = vmatprep.subr.mxu0 0.0
    %2850 = vmatpush1.msra.mxu0 0.0
    %2851 = vmatprep.subr.mxu0 0.0
    %2852 = vmatpush1.msra.mxu0 0.0
    %2853 = vmatprep.subr.mxu0 0.0
    %2854 = vmatpush1.msra.mxu0 0.0
    %2855 = vmatprep.subr.mxu0 0.0
    %2856 = vmatpush1.msra.mxu0 0.0
    %2857 = vmatprep.subr.mxu0 0.0
    %2858 = vmatpush1.msra.mxu0 0.0
    %2859 = vmatprep.subr.mxu0 0.0
    %2860 = vmatpush1.msra.mxu0 0.0
    %2861 = vmatprep.mubr.f32.mxu0 0.0
    %2862 = vmatmul.mubr.f32.gmra.mrb[0].mxu0 %v2785
    %v2863 = vpop.f32.mrb[0].mxu0
    %v2864 = vadd.f32 0.0, %v2863
    %v2865 = vpop.f32.mrb[0].mxu0
    %v2866 = vadd.f32 0.0, %v2865
    %2867 = vmatprep.mubr.f32.mxu0 0.0
    %2868 = vmatmul.mubr.f32.gmra.mrb[0].mxu0 %v2787
    %v2869 = vpop.f32.mrb[0].mxu0
    %v2870 = vadd.f32 0.0, %v2869
    %v2871 = vpop.f32.mrb[0].mxu0
    %v2872 = vadd.f32 0.0, %v2871
    %2873 = vmatprep.mubr.f32.mxu0 0.0
    %2874 = vmatmul.mubr.f32.gmra.mrb[0].mxu0 %v2789
    %v2875 = vpop.f32.mrb[0].mxu0
    %v2876 = vadd.f32 0.0, %v2875
    %v2877 = vpop.f32.mrb[0].mxu0
    %v2878 = vadd.f32 0.0, %v2877
    %2879 = vdwg.mxu0
    %v2880 = vadd.f32 %v2764, %v2864
    %v2881 = vadd.f32 %v2765, %v2866
    %v2882 = vadd.f32 %v2766, %v2870
    %v2883 = vadd.f32 %v2767, %v2872
    %v2884 = vadd.f32 %v2768, %v2876
    %v2885 = vadd.f32 %v2769, %v2878
    %v2886 = vld [vmem:[%s661] sm:$0xff]
    %v2887 = vld [vmem:[%s661 + $0x8] sm:$0xff]
    %v2888 = vld [vmem:[%s661 + $0x10] sm:$0xff]
    %v2889 = vld [vmem:[%s661 + $0x18] sm:$0xff]
    %v2890 = vld [vmem:[%s661 + $0x20] sm:$0xff]
    %v2891 = vld [vmem:[%s661 + $0x28] sm:$0xff]
    %v2892 = vld [vmem:[%s661 + $0x30] sm:$0xf]
    %v2893 = vld [vmem:[%s661 + $0x38] sm:$0xf]
    %v2894 = vrot.slane %v2433, 4
    %v2895 = vrot.slane %v2434, 4
    %v2896 = vsel %vm240, %v2894, %v2895
    %v2897 = vrot.slane %v2435, 4
    %v2898 = vsel %vm240, %v2895, %v2897
    %v2899 = vrot.slane %v2436, 4
    %v2900 = vsel %vm240, %v2897, %v2899
    %v2901 = vsel %vm233, %v2896, 0
    %v2903 = vsel %vm233, %v2898, 0
    %v2905 = vsel %vm233, %v2900, 0
    %v2908 = vsel %vm240, %v2892, 0
    %v2911 = vsel %vm240, %v2893, 0
    %2913 = vmatprep.subr.mxu0 %v2887
    %2914 = vmatpush1.msra.mxu0 %v2886
    %2915 = vmatprep.subr.mxu0 %v2889
    %2916 = vmatpush1.msra.mxu0 %v2888
    %2917 = vmatprep.subr.mxu0 %v2891
    %2918 = vmatpush1.msra.mxu0 %v2890
    %2919 = vmatprep.subr.mxu0 %v2911
    %2920 = vmatpush1.msra.mxu0 %v2908
    %2921 = vmatprep.subr.mxu0 0.0
    %2922 = vmatpush1.msra.mxu0 0.0
    %2923 = vmatprep.subr.mxu0 0.0
    %2924 = vmatpush1.msra.mxu0 0.0
    %2925 = vmatprep.subr.mxu0 0.0
    %2926 = vmatpush1.msra.mxu0 0.0
    %2927 = vmatprep.subr.mxu0 0.0
    %2928 = vmatpush1.msra.mxu0 0.0
    %2929 = vmatprep.subr.mxu0 0.0
    %2930 = vmatpush1.msra.mxu0 0.0
    %2931 = vmatprep.subr.mxu0 0.0
    %2932 = vmatpush1.msra.mxu0 0.0
    %2933 = vmatprep.subr.mxu0 0.0
    %2934 = vmatpush1.msra.mxu0 0.0
    %2935 = vmatprep.subr.mxu0 0.0
    %2936 = vmatpush1.msra.mxu0 0.0
    %2937 = vmatprep.subr.mxu0 0.0
    %2938 = vmatpush1.msra.mxu0 0.0
    %2939 = vmatprep.subr.mxu0 0.0
    %2940 = vmatpush1.msra.mxu0 0.0
    %2941 = vmatprep.subr.mxu0 0.0
    %2942 = vmatpush1.msra.mxu0 0.0
    %2943 = vmatprep.subr.mxu0 0.0
    %2944 = vmatpush1.msra.mxu0 0.0
    %2945 = vmatprep.subr.mxu0 0.0
    %2946 = vmatpush1.msra.mxu0 0.0
    %2947 = vmatprep.subr.mxu0 0.0
    %2948 = vmatpush1.msra.mxu0 0.0
    %2949 = vmatprep.subr.mxu0 0.0
    %2950 = vmatpush1.msra.mxu0 0.0
    %2951 = vmatprep.subr.mxu0 0.0
    %2952 = vmatpush1.msra.mxu0 0.0
    %2953 = vmatprep.subr.mxu0 0.0
    %2954 = vmatpush1.msra.mxu0 0.0
    %2955 = vmatprep.subr.mxu0 0.0
    %2956 = vmatpush1.msra.mxu0 0.0
    %2957 = vmatprep.subr.mxu0 0.0
    %2958 = vmatpush1.msra.mxu0 0.0
    %2959 = vmatprep.subr.mxu0 0.0
    %2960 = vmatpush1.msra.mxu0 0.0
    %2961 = vmatprep.subr.mxu0 0.0
    %2962 = vmatpush1.msra.mxu0 0.0
    %2963 = vmatprep.subr.mxu0 0.0
    %2964 = vmatpush1.msra.mxu0 0.0
    %2965 = vmatprep.subr.mxu0 0.0
    %2966 = vmatpush1.msra.mxu0 0.0
    %2967 = vmatprep.subr.mxu0 0.0
    %2968 = vmatpush1.msra.mxu0 0.0
    %2969 = vmatprep.subr.mxu0 0.0
    %2970 = vmatpush1.msra.mxu0 0.0
    %2971 = vmatprep.subr.mxu0 0.0
    %2972 = vmatpush1.msra.mxu0 0.0
    %2973 = vmatprep.subr.mxu0 0.0
    %2974 = vmatpush1.msra.mxu0 0.0
    %2975 = vmatprep.subr.mxu0 0.0
    %2976 = vmatpush1.msra.mxu0 0.0
    %2977 = vmatprep.mubr.f32.mxu0 0.0
    %2978 = vmatmul.mubr.f32.gmra.mrb[0].mxu0 %v2901
    %v2979 = vpop.f32.mrb[0].mxu0
    %v2980 = vadd.f32 0.0, %v2979
    %v2981 = vpop.f32.mrb[0].mxu0
    %v2982 = vadd.f32 0.0, %v2981
    %2983 = vmatprep.mubr.f32.mxu0 0.0
    %2984 = vmatmul.mubr.f32.gmra.mrb[0].mxu0 %v2903
    %v2985 = vpop.f32.mrb[0].mxu0
    %v2986 = vadd.f32 0.0, %v2985
    %v2987 = vpop.f32.mrb[0].mxu0
    %v2988 = vadd.f32 0.0, %v2987
    %2989 = vmatprep.mubr.f32.mxu0 0.0
    %2990 = vmatmul.mubr.f32.gmra.mrb[0].mxu0 %v2905
    %v2991 = vpop.f32.mrb[0].mxu0
    %v2992 = vadd.f32 0.0, %v2991
    %v2993 = vpop.f32.mrb[0].mxu0
    %v2994 = vadd.f32 0.0, %v2993
    %2995 = vdwg.mxu0
    %v2996 = vadd.f32 %v2880, %v2980
    %v2997 = vadd.f32 %v2881, %v2982
    %v2998 = vadd.f32 %v2882, %v2986
    %v2999 = vadd.f32 %v2883, %v2988
    %v3000 = vadd.f32 %v2884, %v2992
    %v3001 = vadd.f32 %v2885, %v2994
    %v3002 = vld [vmem:[#allocation2] sm:$0x3]
    %v3004 = vlaneseq
    %v3005 = vshrl.u32 %v3004, 7
    %v3006 = vsub.s32 0, %v3005
    %v3007 = vrot.slane %v3002, %v3006
    %v3008 = vlaneseq
    %v3009 = vshrl.u32 %v3008, 7
    %v3010 = vsub.s32 1, %v3009
    %v3011 = vrot.slane %v3002, %v3010
    %v3014 = vadd.f32 %v2996, %v3007
    %v3015 = vadd.f32 %v2997, %v3011
    %v3016 = vadd.f32 %v2998, %v3007
    %v3017 = vadd.f32 %v2999, %v3011
    %v3018 = vadd.f32 %v3000, %v3007
    %v3019 = vadd.f32 %v3001, %v3011
    %v3020 = vmax.f32 %v3014, 0.0
    %v3021 = vmax.f32 %v3015, 0.0
    %v3022 = vmax.f32 %v3016, 0.0
    %v3023 = vmax.f32 %v3017, 0.0
    %v3024 = vmax.f32 %v3018, 0.0
    %v3025 = vmax.f32 %v3019, 0.0
    %v3026 = vld [vmem:[#allocation5] sm:$0xff]
    %v3027 = vld [vmem:[#allocation5 + $0x8] sm:$0xf]
    %v3029 = vsel %vm804, %v3026, 0
    %v3032 = vsel %vm804, %v3027, 0
    %3034 = vmatprep.subr.mxu0 %v3021
    %3035 = vmatpush1.msra.mxu0 %v3020
    %3036 = vmatprep.subr.mxu0 %v3023
    %3037 = vmatpush1.msra.mxu0 %v3022
    %3038 = vmatprep.subr.mxu0 %v3025
    %3039 = vmatpush1.msra.mxu0 %v3024
    %3040 = vmatprep.subr.mxu0 0.0
    %3041 = vmatpush1.msra.mxu0 0.0
    %3042 = vmatprep.subr.mxu0 0.0
    %3043 = vmatpush1.msra.mxu0 0.0
    %3044 = vmatprep.subr.mxu0 0.0
    %3045 = vmatpush1.msra.mxu0 0.0
    %3046 = vmatprep.subr.mxu0 0.0
    %3047 = vmatpush1.msra.mxu0 0.0
    %3048 = vmatprep.subr.mxu0 0.0
    %3049 = vmatpush1.msra.mxu0 0.0
    %3050 = vmatprep.subr.mxu0 0.0
    %3051 = vmatpush1.msra.mxu0 0.0
    %3052 = vmatprep.subr.mxu0 0.0
    %3053 = vmatpush1.msra.mxu0 0.0
    %3054 = vmatprep.subr.mxu0 0.0
    %3055 = vmatpush1.msra.mxu0 0.0
    %3056 = vmatprep.subr.mxu0 0.0
    %3057 = vmatpush1.msra.mxu0 0.0
    %3058 = vmatprep.subr.mxu0 0.0
    %3059 = vmatpush1.msra.mxu0 0.0
    %3060 = vmatprep.subr.mxu0 0.0
    %3061 = vmatpush1.msra.mxu0 0.0
    %3062 = vmatprep.subr.mxu0 0.0
    %3063 = vmatpush1.msra.mxu0 0.0
    %3064 = vmatprep.subr.mxu0 0.0
    %3065 = vmatpush1.msra.mxu0 0.0
    %3066 = vmatprep.subr.mxu0 0.0
    %3067 = vmatpush1.msra.mxu0 0.0
    %3068 = vmatprep.subr.mxu0 0.0
    %3069 = vmatpush1.msra.mxu0 0.0
    %3070 = vmatprep.subr.mxu0 0.0
    %3071 = vmatpush1.msra.mxu0 0.0
    %3072 = vmatprep.subr.mxu0 0.0
    %3073 = vmatpush1.msra.mxu0 0.0
    %3074 = vmatprep.subr.mxu0 0.0
    %3075 = vmatpush1.msra.mxu0 0.0
    %3076 = vmatprep.subr.mxu0 0.0
    %3077 = vmatpush1.msra.mxu0 0.0
    %3078 = vmatprep.subr.mxu0 0.0
    %3079 = vmatpush1.msra.mxu0 0.0
    %3080 = vmatprep.subr.mxu0 0.0
    %3081 = vmatpush1.msra.mxu0 0.0
    %3082 = vmatprep.subr.mxu0 0.0
    %3083 = vmatpush1.msra.mxu0 0.0
    %3084 = vmatprep.subr.mxu0 0.0
    %3085 = vmatpush1.msra.mxu0 0.0
    %3086 = vmatprep.subr.mxu0 0.0
    %3087 = vmatpush1.msra.mxu0 0.0
    %3088 = vmatprep.subr.mxu0 0.0
    %3089 = vmatpush1.msra.mxu0 0.0
    %3090 = vmatprep.subr.mxu0 0.0
    %3091 = vmatpush1.msra.mxu0 0.0
    %3092 = vmatprep.subr.mxu0 0.0
    %3093 = vmatpush1.msra.mxu0 0.0
    %3094 = vmatprep.subr.mxu0 0.0
    %3095 = vmatpush1.msra.mxu0 0.0
    %3096 = vmatprep.subr.mxu0 0.0
    %3097 = vmatpush1.msra.mxu0 0.0
    %3098 = vmatprep.mubr.f32.mxu0 0.0
    %3099 = vmatmul.mubr.f32.gmra.mrb[0].mxu0 %v3029
    %v3100 = vpop.f32.mrb[0].mxu0
    %v3101 = vadd.f32 0.0, %v3100
    %v3102 = vpop.f32.mrb[0].mxu0
    %v3103 = vadd.f32 0.0, %v3102
    %3104 = vmatprep.mubr.f32.mxu0 0.0
    %3105 = vmatmul.mubr.f32.gmra.mrb[0].mxu0 %v3032
    %v3106 = vpop.f32.mrb[0].mxu0
    %v3107 = vadd.f32 0.0, %v3106
    %v3108 = vpop.f32.mrb[0].mxu0
    %v3109 = vadd.f32 0.0, %v3108
    %3110 = vdwg.mxu0
    %v3111 = vld [vmem:[#allocation7] sm:$0xff]
    %v3112 = vld [vmem:[#allocation7 + $0x8] sm:$0xf]
    %v3114 = vsel %vm804, %v3111, 0
    %v3117 = vsel %vm804, %v3112, 0
    %3119 = vmatprep.subr.mxu0 %v3021
    %3120 = vmatpush1.msra.mxu0 %v3020
    %3121 = vmatprep.subr.mxu0 %v3023
    %3122 = vmatpush1.msra.mxu0 %v3022
    %3123 = vmatprep.subr.mxu0 %v3025
    %3124 = vmatpush1.msra.mxu0 %v3024
    %3125 = vmatprep.subr.mxu0 0.0
    %3126 = vmatpush1.msra.mxu0 0.0
    %3127 = vmatprep.subr.mxu0 0.0
    %3128 = vmatpush1.msra.mxu0 0.0
    %3129 = vmatprep.subr.mxu0 0.0
    %3130 = vmatpush1.msra.mxu0 0.0
    %3131 = vmatprep.subr.mxu0 0.0
    %3132 = vmatpush1.msra.mxu0 0.0
    %3133 = vmatprep.subr.mxu0 0.0
    %3134 = vmatpush1.msra.mxu0 0.0
    %3135 = vmatprep.subr.mxu0 0.0
    %3136 = vmatpush1.msra.mxu0 0.0
    %3137 = vmatprep.subr.mxu0 0.0
    %3138 = vmatpush1.msra.mxu0 0.0
    %3139 = vmatprep.subr.mxu0 0.0
    %3140 = vmatpush1.msra.mxu0 0.0
    %3141 = vmatprep.subr.mxu0 0.0
    %3142 = vmatpush1.msra.mxu0 0.0
    %3143 = vmatprep.subr.mxu0 0.0
    %3144 = vmatpush1.msra.mxu0 0.0
    %3145 = vmatprep.subr.mxu0 0.0
    %3146 = vmatpush1.msra.mxu0 0.0
    %3147 = vmatprep.subr.mxu0 0.0
    %3148 = vmatpush1.msra.mxu0 0.0
    %3149 = vmatprep.subr.mxu0 0.0
    %3150 = vmatpush1.msra.mxu0 0.0
    %3151 = vmatprep.subr.mxu0 0.0
    %3152 = vmatpush1.msra.mxu0 0.0
    %3153 = vmatprep.subr.mxu0 0.0
    %3154 = vmatpush1.msra.mxu0 0.0
    %3155 = vmatprep.subr.mxu0 0.0
    %3156 = vmatpush1.msra.mxu0 0.0
    %3157 = vmatprep.subr.mxu0 0.0
    %3158 = vmatpush1.msra.mxu0 0.0
    %3159 = vmatprep.subr.mxu0 0.0
    %3160 = vmatpush1.msra.mxu0 0.0
    %3161 = vmatprep.subr.mxu0 0.0
    %3162 = vmatpush1.msra.mxu0 0.0
    %3163 = vmatprep.subr.mxu0 0.0
    %3164 = vmatpush1.msra.mxu0 0.0
    %3165 = vmatprep.subr.mxu0 0.0
    %3166 = vmatpush1.msra.mxu0 0.0
    %3167 = vmatprep.subr.mxu0 0.0
    %3168 = vmatpush1.msra.mxu0 0.0
    %3169 = vmatprep.subr.mxu0 0.0
    %3170 = vmatpush1.msra.mxu0 0.0
    %3171 = vmatprep.subr.mxu0 0.0
    %3172 = vmatpush1.msra.mxu0 0.0
    %3173 = vmatprep.subr.mxu0 0.0
    %3174 = vmatpush1.msra.mxu0 0.0
    %3175 = vmatprep.subr.mxu0 0.0
    %3176 = vmatpush1.msra.mxu0 0.0
    %3177 = vmatprep.subr.mxu0 0.0
    %3178 = vmatpush1.msra.mxu0 0.0
    %3179 = vmatprep.subr.mxu0 0.0
    %3180 = vmatpush1.msra.mxu0 0.0
    %3181 = vmatprep.subr.mxu0 0.0
    %3182 = vmatpush1.msra.mxu0 0.0
    %3183 = vmatprep.mubr.f32.mxu0 0.0
    %3184 = vmatmul.mubr.f32.gmra.mrb[0].mxu0 %v3114
    %v3185 = vpop.f32.mrb[0].mxu0
    %v3186 = vadd.f32 0.0, %v3185
    %v3187 = vpop.f32.mrb[0].mxu0
    %v3188 = vadd.f32 0.0, %v3187
    %3189 = vmatprep.mubr.f32.mxu0 0.0
    %3190 = vmatmul.mubr.f32.gmra.mrb[0].mxu0 %v3117
    %v3191 = vpop.f32.mrb[0].mxu0
    %v3192 = vadd.f32 0.0, %v3191
    %v3193 = vpop.f32.mrb[0].mxu0
    %v3194 = vadd.f32 0.0, %v3193
    %3195 = vdwg.mxu0
    %v3196 = vmax.f32 %v3101, %v3186
    %v3197 = vmax.f32 %v3103, %v3188
    %v3198 = vmax.f32 %v3107, %v3192
    %v3199 = vmax.f32 %v3109, %v3194
    %v3200 = vld [vmem:[#allocation8] sm:$0xff]
    %v3201 = vld [vmem:[#allocation8 + $0x8] sm:$0xff]
    %v3202 = vld [vmem:[#allocation8 + $0x10] sm:$0xff]
    %v3203 = vld [vmem:[#allocation8 + $0x18] sm:$0xff]
    %v3204 = vld [vmem:[#allocation8 + $0x20] sm:$0xff]
    %v3205 = vld [vmem:[#allocation8 + $0x28] sm:$0xff]
    %v3206 = vld [vmem:[#allocation8 + $0x30] sm:$0xff]
    %v3207 = vld [vmem:[#allocation8 + $0x38] sm:$0xff]
    %v3208 = vld [vmem:[#allocation8 + $0x40] sm:$0xff]
    %v3209 = vld [vmem:[#allocation8 + $0x48] sm:$0xff]
    %v3210 = vld [vmem:[#allocation8 + $0x50] sm:$0xff]
    %v3211 = vld [vmem:[#allocation8 + $0x58] sm:$0xff]
    %v3212 = vld [vmem:[#allocation8 + $0x60] sm:$0xff]
    %v3213 = vld [vmem:[#allocation8 + $0x68] sm:$0xff]
    %v3214 = vld [vmem:[#allocation8 + $0x70] sm:$0xff]
    %v3215 = vld [vmem:[#allocation8 + $0x78] sm:$0xff]
    %v3216 = vld [vmem:[#allocation8 + $0x80] sm:$0xff]
    %v3217 = vld [vmem:[#allocation8 + $0x88] sm:$0xff]
    %v3219 = vsel %vm995, %v3197, 0
    %v3222 = vsel %vm995, %v3199, 0
    %3224 = vmatprep.subr.mxu0 0.0
    %3225 = vmatpush1.msra.mxu0 %v3200
    %3226 = vmatprep.subr.mxu0 0.0
    %3227 = vmatpush1.msra.mxu0 %v3201
    %3228 = vmatprep.subr.mxu0 0.0
    %3229 = vmatpush1.msra.mxu0 %v3202
    %3230 = vmatprep.subr.mxu0 0.0
    %3231 = vmatpush1.msra.mxu0 %v3203
    %3232 = vmatprep.subr.mxu0 0.0
    %3233 = vmatpush1.msra.mxu0 %v3204
    %3234 = vmatprep.subr.mxu0 0.0
    %3235 = vmatpush1.msra.mxu0 %v3205
    %3236 = vmatprep.subr.mxu0 0.0
    %3237 = vmatpush1.msra.mxu0 %v3206
    %3238 = vmatprep.subr.mxu0 0.0
    %3239 = vmatpush1.msra.mxu0 %v3207
    %3240 = vmatprep.subr.mxu0 0.0
    %3241 = vmatpush1.msra.mxu0 %v3208
    %3242 = vmatprep.subr.mxu0 0.0
    %3243 = vmatpush1.msra.mxu0 %v3209
    %3244 = vmatprep.subr.mxu0 0.0
    %3245 = vmatpush1.msra.mxu0 %v3210
    %3246 = vmatprep.subr.mxu0 0.0
    %3247 = vmatpush1.msra.mxu0 %v3211
    %3248 = vmatprep.subr.mxu0 0.0
    %3249 = vmatpush1.msra.mxu0 %v3212
    %3250 = vmatprep.subr.mxu0 0.0
    %3251 = vmatpush1.msra.mxu0 %v3213
    %3252 = vmatprep.subr.mxu0 0.0
    %3253 = vmatpush1.msra.mxu0 %v3214
    %3254 = vmatprep.subr.mxu0 0.0
    %3255 = vmatpush1.msra.mxu0 %v3215
    %3256 = vmatprep.subr.mxu0 0.0
    %3257 = vmatpush1.msra.mxu0 %v3216
    %3258 = vmatprep.subr.mxu0 0.0
    %3259 = vmatpush1.msra.mxu0 %v3217
    %3260 = vmatprep.subr.mxu0 0.0
    %3261 = vmatpush1.msra.mxu0 0.0
    %3262 = vmatprep.subr.mxu0 0.0
    %3263 = vmatpush1.msra.mxu0 0.0
    %3264 = vmatprep.subr.mxu0 0.0
    %3265 = vmatpush1.msra.mxu0 0.0
    %3266 = vmatprep.subr.mxu0 0.0
    %3267 = vmatpush1.msra.mxu0 0.0
    %3268 = vmatprep.subr.mxu0 0.0
    %3269 = vmatpush1.msra.mxu0 0.0
    %3270 = vmatprep.subr.mxu0 0.0
    %3271 = vmatpush1.msra.mxu0 0.0
    %3272 = vmatprep.subr.mxu0 0.0
    %3273 = vmatpush1.msra.mxu0 0.0
    %3274 = vmatprep.subr.mxu0 0.0
    %3275 = vmatpush1.msra.mxu0 0.0
    %3276 = vmatprep.subr.mxu0 0.0
    %3277 = vmatpush1.msra.mxu0 0.0
    %3278 = vmatprep.subr.mxu0 0.0
    %3279 = vmatpush1.msra.mxu0 0.0
    %3280 = vmatprep.subr.mxu0 0.0
    %3281 = vmatpush1.msra.mxu0 0.0
    %3282 = vmatprep.subr.mxu0 0.0
    %3283 = vmatpush1.msra.mxu0 0.0
    %3284 = vmatprep.subr.mxu0 0.0
    %3285 = vmatpush1.msra.mxu0 0.0
    %3286 = vmatprep.subr.mxu0 0.0
    %3287 = vmatpush1.msra.mxu0 0.0
    %3288 = vmatprep.mubr.f32.mxu0 %v3219
    %3289 = vmatmul.mubr.f32.gmra.mrb[0].mxu0 %v3196
    %v3290 = vpop.f32.mrb[0].mxu0
    %v3291 = vadd.f32 0.0, %v3290
    %v3292 = vpop.f32.mrb[0].mxu0
    %3293 = vmatprep.mubr.f32.mxu0 %v3222
    %3294 = vmatmul.mubr.f32.gmra.mrb[0].mxu0 %v3198
    %v3295 = vpop.f32.mrb[0].mxu0
    %v3296 = vadd.f32 0.0, %v3295
    %v3297 = vpop.f32.mrb[0].mxu0
    %3298 = vdwg.mxu0
    %v3299 = vld [vmem:[#allocation10] sm:$0xff]
    %v3300 = vld [vmem:[#allocation10 + $0x8] sm:$0xff]
    %v3301 = vld [vmem:[#allocation10 + $0x10] sm:$0xff]
    %v3302 = vld [vmem:[#allocation10 + $0x18] sm:$0xff]
    %v3303 = vld [vmem:[#allocation10 + $0x20] sm:$0xff]
    %v3304 = vld [vmem:[#allocation10 + $0x28] sm:$0xff]
    %v3305 = vld [vmem:[#allocation10 + $0x30] sm:$0xff]
    %v3306 = vld [vmem:[#allocation10 + $0x38] sm:$0xff]
    %v3307 = vld [vmem:[#allocation10 + $0x40] sm:$0xff]
    %v3308 = vld [vmem:[#allocation10 + $0x48] sm:$0xff]
    %v3309 = vld [vmem:[#allocation10 + $0x50] sm:$0xff]
    %v3310 = vld [vmem:[#allocation10 + $0x58] sm:$0xff]
    %v3311 = vld [vmem:[#allocation10 + $0x60] sm:$0xff]
    %v3312 = vld [vmem:[#allocation10 + $0x68] sm:$0xff]
    %v3313 = vld [vmem:[#allocation10 + $0x70] sm:$0xff]
    %v3314 = vld [vmem:[#allocation10 + $0x78] sm:$0xff]
    %v3315 = vld [vmem:[#allocation10 + $0x80] sm:$0xff]
    %v3316 = vld [vmem:[#allocation10 + $0x88] sm:$0xff]
    %3317 = vmatprep.subr.mxu0 0.0
    %3318 = vmatpush1.msra.mxu0 %v3299
    %3319 = vmatprep.subr.mxu0 0.0
    %3320 = vmatpush1.msra.mxu0 %v3300
    %3321 = vmatprep.subr.mxu0 0.0
    %3322 = vmatpush1.msra.mxu0 %v3301
    %3323 = vmatprep.subr.mxu0 0.0
    %3324 = vmatpush1.msra.mxu0 %v3302
    %3325 = vmatprep.subr.mxu0 0.0
    %3326 = vmatpush1.msra.mxu0 %v3303
    %3327 = vmatprep.subr.mxu0 0.0
    %3328 = vmatpush1.msra.mxu0 %v3304
    %3329 = vmatprep.subr.mxu0 0.0
    %3330 = vmatpush1.msra.mxu0 %v3305
    %3331 = vmatprep.subr.mxu0 0.0
    %3332 = vmatpush1.msra.mxu0 %v3306
    %3333 = vmatprep.subr.mxu0 0.0
    %3334 = vmatpush1.msra.mxu0 %v3307
    %3335 = vmatprep.subr.mxu0 0.0
    %3336 = vmatpush1.msra.mxu0 %v3308
    %3337 = vmatprep.subr.mxu0 0.0
    %3338 = vmatpush1.msra.mxu0 %v3309
    %3339 = vmatprep.subr.mxu0 0.0
    %3340 = vmatpush1.msra.mxu0 %v3310
    %3341 = vmatprep.subr.mxu0 0.0
    %3342 = vmatpush1.msra.mxu0 %v3311
    %3343 = vmatprep.subr.mxu0 0.0
    %3344 = vmatpush1.msra.mxu0 %v3312
    %3345 = vmatprep.subr.mxu0 0.0
    %3346 = vmatpush1.msra.mxu0 %v3313
    %3347 = vmatprep.subr.mxu0 0.0
    %3348 = vmatpush1.msra.mxu0 %v3314
    %3349 = vmatprep.subr.mxu0 0.0
    %3350 = vmatpush1.msra.mxu0 %v3315
    %3351 = vmatprep.subr.mxu0 0.0
    %3352 = vmatpush1.msra.mxu0 %v3316
    %3353 = vmatprep.subr.mxu0 0.0
    %3354 = vmatpush1.msra.mxu0 0.0
    %3355 = vmatprep.subr.mxu0 0.0
    %3356 = vmatpush1.msra.mxu0 0.0
    %3357 = vmatprep.subr.mxu0 0.0
    %3358 = vmatpush1.msra.mxu0 0.0
    %3359 = vmatprep.subr.mxu0 0.0
    %3360 = vmatpush1.msra.mxu0 0.0
    %3361 = vmatprep.subr.mxu0 0.0
    %3362 = vmatpush1.msra.mxu0 0.0
    %3363 = vmatprep.subr.mxu0 0.0
    %3364 = vmatpush1.msra.mxu0 0.0
    %3365 = vmatprep.subr.mxu0 0.0
    %3366 = vmatpush1.msra.mxu0 0.0
    %3367 = vmatprep.subr.mxu0 0.0
    %3368 = vmatpush1.msra.mxu0 0.0
    %3369 = vmatprep.subr.mxu0 0.0
    %3370 = vmatpush1.msra.mxu0 0.0
    %3371 = vmatprep.subr.mxu0 0.0
    %3372 = vmatpush1.msra.mxu0 0.0
    %3373 = vmatprep.subr.mxu0 0.0
    %3374 = vmatpush1.msra.mxu0 0.0
    %3375 = vmatprep.subr.mxu0 0.0
    %3376 = vmatpush1.msra.mxu0 0.0
    %3377 = vmatprep.subr.mxu0 0.0
    %3378 = vmatpush1.msra.mxu0 0.0
    %3379 = vmatprep.subr.mxu0 0.0
    %3380 = vmatpush1.msra.mxu0 0.0
    %3381 = vmatprep.mubr.f32.mxu0 %v3219
    %3382 = vmatmul.mubr.f32.gmra.mrb[0].mxu0 %v3196
    %v3383 = vpop.f32.mrb[0].mxu0
    %v3384 = vadd.f32 0.0, %v3383
    %v3385 = vpop.f32.mrb[0].mxu0
    %3386 = vmatprep.mubr.f32.mxu0 %v3222
    %3387 = vmatmul.mubr.f32.gmra.mrb[0].mxu0 %v3198
    %v3388 = vpop.f32.mrb[0].mxu0
    %v3389 = vadd.f32 0.0, %v3388
    %v3390 = vpop.f32.mrb[0].mxu0
    %3391 = vdwg.mxu0
    %v3392 = vmax.f32 %v3291, %v3384
    %v3393 = vmax.f32 %v3296, %v3389
    %v3394 = vld [vmem:[%s7] sm:$0xff]
    %v3395 = vld [vmem:[%s7 + $0x8] sm:$0xff]
    %v3396 = vld [vmem:[%s7 + $0x10] sm:$0xff]
    %v3397 = vld [vmem:[%s7 + $0x18] sm:$0xff]
    %v3398 = vld [vmem:[%s7 + $0x20] sm:$0xff]
    %v3399 = vld [vmem:[%s7 + $0x28] sm:$0xff]
    %v3400 = vld [vmem:[%s7 + $0x30] sm:$0xff]
    %v3401 = vld [vmem:[%s7 + $0x38] sm:$0xff]
    %v3402 = vld [vmem:[%s7 + $0x40] sm:$0xff]
    %v3403 = vld [vmem:[%s1181] sm:$0xff]
    %v3404 = vld [vmem:[%s1181 + $0x8] sm:$0xff]
    %v3405 = vld [vmem:[%s1181 + $0x10] sm:$0xff]
    %v3406 = vld [vmem:[%s1181 + $0x18] sm:$0xff]
    %v3407 = vld [vmem:[%s1181 + $0x20] sm:$0xff]
    %v3408 = vld [vmem:[%s1181 + $0x28] sm:$0xff]
    %v3409 = vld [vmem:[%s1181 + $0x30] sm:$0xff]
    %v3410 = vld [vmem:[%s1181 + $0x38] sm:$0xff]
    %v3411 = vld [vmem:[%s1181 + $0x40] sm:$0xff]
    %v3414 = vrot.slane %v3392, 1
    %v3415 = vrot.slane %v3393, 1
    %v3416 = vsel %vm225, %v3414, %v3415
    %v3417 = vsel %vm1196, %v3416, 0
    %3419 = vmatprep.subr.mxu0 0.0
    %3420 = vmatpush1.msra.mxu0 %v3403
    %3421 = vmatprep.subr.mxu0 0.0
    %3422 = vmatpush1.msra.mxu0 %v3404
    %3423 = vmatprep.subr.mxu0 0.0
    %3424 = vmatpush1.msra.mxu0 %v3405
    %3425 = vmatprep.subr.mxu0 0.0
    %3426 = vmatpush1.msra.mxu0 %v3406
    %3427 = vmatprep.subr.mxu0 0.0
    %3428 = vmatpush1.msra.mxu0 %v3407
    %3429 = vmatprep.subr.mxu0 0.0
    %3430 = vmatpush1.msra.mxu0 %v3408
    %3431 = vmatprep.subr.mxu0 0.0
    %3432 = vmatpush1.msra.mxu0 %v3409
    %3433 = vmatprep.subr.mxu0 0.0
    %3434 = vmatpush1.msra.mxu0 %v3410
    %3435 = vmatprep.subr.mxu0 0.0
    %3436 = vmatpush1.msra.mxu0 %v3411
    %3437 = vmatprep.subr.mxu0 0.0
    %3438 = vmatpush1.msra.mxu0 0.0
    %3439 = vmatprep.subr.mxu0 0.0
    %3440 = vmatpush1.msra.mxu0 0.0
    %3441 = vmatprep.subr.mxu0 0.0
    %3442 = vmatpush1.msra.mxu0 0.0
    %3443 = vmatprep.subr.mxu0 0.0
    %3444 = vmatpush1.msra.mxu0 0.0
    %3445 = vmatprep.subr.mxu0 0.0
    %3446 = vmatpush1.msra.mxu0 0.0
    %3447 = vmatprep.subr.mxu0 0.0
    %3448 = vmatpush1.msra.mxu0 0.0
    %3449 = vmatprep.subr.mxu0 0.0
    %3450 = vmatpush1.msra.mxu0 0.0
    %3451 = vmatprep.subr.mxu0 0.0
    %3452 = vmatpush1.msra.mxu0 0.0
    %3453 = vmatprep.subr.mxu0 0.0
    %3454 = vmatpush1.msra.mxu0 0.0
    %3455 = vmatprep.subr.mxu0 0.0
    %3456 = vmatpush1.msra.mxu0 0.0
    %3457 = vmatprep.subr.mxu0 0.0
    %3458 = vmatpush1.msra.mxu0 0.0
    %3459 = vmatprep.subr.mxu0 0.0
    %3460 = vmatpush1.msra.mxu0 0.0
    %3461 = vmatprep.subr.mxu0 0.0
    %3462 = vmatpush1.msra.mxu0 0.0
    %3463 = vmatprep.subr.mxu0 0.0
    %3464 = vmatpush1.msra.mxu0 0.0
    %3465 = vmatprep.subr.mxu0 0.0
    %3466 = vmatpush1.msra.mxu0 0.0
    %3467 = vmatprep.subr.mxu0 0.0
    %3468 = vmatpush1.msra.mxu0 0.0
    %3469 = vmatprep.subr.mxu0 0.0
    %3470 = vmatpush1.msra.mxu0 0.0
    %3471 = vmatprep.subr.mxu0 0.0
    %3472 = vmatpush1.msra.mxu0 0.0
    %3473 = vmatprep.subr.mxu0 0.0
    %3474 = vmatpush1.msra.mxu0 0.0
    %3475 = vmatprep.subr.mxu0 0.0
    %3476 = vmatpush1.msra.mxu0 0.0
    %3477 = vmatprep.subr.mxu0 0.0
    %3478 = vmatpush1.msra.mxu0 0.0
    %3479 = vmatprep.subr.mxu0 0.0
    %3480 = vmatpush1.msra.mxu0 0.0
    %3481 = vmatprep.subr.mxu0 0.0
    %3482 = vmatpush1.msra.mxu0 0.0
    %3483 = vmatprep.mubr.f32.mxu0 0.0
    %3484 = vmatmul.mubr.f32.gmra.mrb[0].mxu0 %v3417
    %v3485 = vpop.f32.mrb[0].mxu0
    %v3486 = vadd.f32 0.0, %v3485
    %v3487 = vpop.f32.mrb[0].mxu0
    %3488 = vdwg.mxu0
    %v3489 = vsel %vm1196, %v3392, 0
    %3491 = vmatprep.subr.mxu0 0.0
    %3492 = vmatpush1.msra.mxu0 %v3394
    %3493 = vmatprep.subr.mxu0 0.0
    %3494 = vmatpush1.msra.mxu0 %v3395
    %3495 = vmatprep.subr.mxu0 0.0
    %3496 = vmatpush1.msra.mxu0 %v3396
    %3497 = vmatprep.subr.mxu0 0.0
    %3498 = vmatpush1.msra.mxu0 %v3397
    %3499 = vmatprep.subr.mxu0 0.0
    %3500 = vmatpush1.msra.mxu0 %v3398
    %3501 = vmatprep.subr.mxu0 0.0
    %3502 = vmatpush1.msra.mxu0 %v3399
    %3503 = vmatprep.subr.mxu0 0.0
    %3504 = vmatpush1.msra.mxu0 %v3400
    %3505 = vmatprep.subr.mxu0 0.0
    %3506 = vmatpush1.msra.mxu0 %v3401
    %3507 = vmatprep.subr.mxu0 0.0
    %3508 = vmatpush1.msra.mxu0 %v3402
    %3509 = vmatprep.subr.mxu0 0.0
    %3510 = vmatpush1.msra.mxu0 0.0
    %3511 = vmatprep.subr.mxu0 0.0
    %3512 = vmatpush1.msra.mxu0 0.0
    %3513 = vmatprep.subr.mxu0 0.0
    %3514 = vmatpush1.msra.mxu0 0.0
    %3515 = vmatprep.subr.mxu0 0.0
    %3516 = vmatpush1.msra.mxu0 0.0
    %3517 = vmatprep.subr.mxu0 0.0
    %3518 = vmatpush1.msra.mxu0 0.0
    %3519 = vmatprep.subr.mxu0 0.0
    %3520 = vmatpush1.msra.mxu0 0.0
    %3521 = vmatprep.subr.mxu0 0.0
    %3522 = vmatpush1.msra.mxu0 0.0
    %3523 = vmatprep.subr.mxu0 0.0
    %3524 = vmatpush1.msra.mxu0 0.0
    %3525 = vmatprep.subr.mxu0 0.0
    %3526 = vmatpush1.msra.mxu0 0.0
    %3527 = vmatprep.subr.mxu0 0.0
    %3528 = vmatpush1.msra.mxu0 0.0
    %3529 = vmatprep.subr.mxu0 0.0
    %3530 = vmatpush1.msra.mxu0 0.0
    %3531 = vmatprep.subr.mxu0 0.0
    %3532 = vmatpush1.msra.mxu0 0.0
    %3533 = vmatprep.subr.mxu0 0.0
    %3534 = vmatpush1.msra.mxu0 0.0
    %3535 = vmatprep.subr.mxu0 0.0
    %3536 = vmatpush1.msra.mxu0 0.0
    %3537 = vmatprep.subr.mxu0 0.0
    %3538 = vmatpush1.msra.mxu0 0.0
    %3539 = vmatprep.subr.mxu0 0.0
    %3540 = vmatpush1.msra.mxu0 0.0
    %3541 = vmatprep.subr.mxu0 0.0
    %3542 = vmatpush1.msra.mxu0 0.0
    %3543 = vmatprep.subr.mxu0 0.0
    %3544 = vmatpush1.msra.mxu0 0.0
    %3545 = vmatprep.subr.mxu0 0.0
    %3546 = vmatpush1.msra.mxu0 0.0
    %3547 = vmatprep.subr.mxu0 0.0
    %3548 = vmatpush1.msra.mxu0 0.0
    %3549 = vmatprep.subr.mxu0 0.0
    %3550 = vmatpush1.msra.mxu0 0.0
    %3551 = vmatprep.subr.mxu0 0.0
    %3552 = vmatpush1.msra.mxu0 0.0
    %3553 = vmatprep.subr.mxu0 0.0
    %3554 = vmatpush1.msra.mxu0 0.0
    %3555 = vmatprep.mubr.f32.mxu0 0.0
    %3556 = vmatmul.mubr.f32.gmra.mrb[0].mxu0 %v3489
    %v3557 = vpop.f32.mrb[0].mxu0
    %v3558 = vadd.f32 %v3486, %v3557
    %v3559 = vpop.f32.mrb[0].mxu0
    %3560 = vdwg.mxu0
    %v3561 = vld [vmem:[%s1341] sm:$0xff]
    %v3562 = vld [vmem:[%s1341 + $0x8] sm:$0xff]
    %v3563 = vld [vmem:[%s1341 + $0x10] sm:$0xff]
    %v3564 = vld [vmem:[%s1341 + $0x18] sm:$0xff]
    %v3565 = vld [vmem:[%s1341 + $0x20] sm:$0xff]
    %v3566 = vld [vmem:[%s1341 + $0x28] sm:$0xff]
    %v3567 = vld [vmem:[%s1341 + $0x30] sm:$0xff]
    %v3568 = vld [vmem:[%s1341 + $0x38] sm:$0xff]
    %v3569 = vld [vmem:[%s1341 + $0x40] sm:$0xff]
    %v3570 = vrot.slane %v3392, 2
    %v3571 = vrot.slane %v3393, 2
    %v3572 = vsel %vm434, %v3570, %v3571
    %v3573 = vsel %vm1196, %v3572, 0
    %3575 = vmatprep.subr.mxu0 0.0
    %3576 = vmatpush1.msra.mxu0 %v3561
    %3577 = vmatprep.subr.mxu0 0.0
    %3578 = vmatpush1.msra.mxu0 %v3562
    %3579 = vmatprep.subr.mxu0 0.0
    %3580 = vmatpush1.msra.mxu0 %v3563
    %3581 = vmatprep.subr.mxu0 0.0
    %3582 = vmatpush1.msra.mxu0 %v3564
    %3583 = vmatprep.subr.mxu0 0.0
    %3584 = vmatpush1.msra.mxu0 %v3565
    %3585 = vmatprep.subr.mxu0 0.0
    %3586 = vmatpush1.msra.mxu0 %v3566
    %3587 = vmatprep.subr.mxu0 0.0
    %3588 = vmatpush1.msra.mxu0 %v3567
    %3589 = vmatprep.subr.mxu0 0.0
    %3590 = vmatpush1.msra.mxu0 %v3568
    %3591 = vmatprep.subr.mxu0 0.0
    %3592 = vmatpush1.msra.mxu0 %v3569
    %3593 = vmatprep.subr.mxu0 0.0
    %3594 = vmatpush1.msra.mxu0 0.0
    %3595 = vmatprep.subr.mxu0 0.0
    %3596 = vmatpush1.msra.mxu0 0.0
    %3597 = vmatprep.subr.mxu0 0.0
    %3598 = vmatpush1.msra.mxu0 0.0
    %3599 = vmatprep.subr.mxu0 0.0
    %3600 = vmatpush1.msra.mxu0 0.0
    %3601 = vmatprep.subr.mxu0 0.0
    %3602 = vmatpush1.msra.mxu0 0.0
    %3603 = vmatprep.subr.mxu0 0.0
    %3604 = vmatpush1.msra.mxu0 0.0
    %3605 = vmatprep.subr.mxu0 0.0
    %3606 = vmatpush1.msra.mxu0 0.0
    %3607 = vmatprep.subr.mxu0 0.0
    %3608 = vmatpush1.msra.mxu0 0.0
    %3609 = vmatprep.subr.mxu0 0.0
    %3610 = vmatpush1.msra.mxu0 0.0
    %3611 = vmatprep.subr.mxu0 0.0
    %3612 = vmatpush1.msra.mxu0 0.0
    %3613 = vmatprep.subr.mxu0 0.0
    %3614 = vmatpush1.msra.mxu0 0.0
    %3615 = vmatprep.subr.mxu0 0.0
    %3616 = vmatpush1.msra.mxu0 0.0
    %3617 = vmatprep.subr.mxu0 0.0
    %3618 = vmatpush1.msra.mxu0 0.0
    %3619 = vmatprep.subr.mxu0 0.0
    %3620 = vmatpush1.msra.mxu0 0.0
    %3621 = vmatprep.subr.mxu0 0.0
    %3622 = vmatpush1.msra.mxu0 0.0
    %3623 = vmatprep.subr.mxu0 0.0
    %3624 = vmatpush1.msra.mxu0 0.0
    %3625 = vmatprep.subr.mxu0 0.0
    %3626 = vmatpush1.msra.mxu0 0.0
    %3627 = vmatprep.subr.mxu0 0.0
    %3628 = vmatpush1.msra.mxu0 0.0
    %3629 = vmatprep.subr.mxu0 0.0
    %3630 = vmatpush1.msra.mxu0 0.0
    %3631 = vmatprep.subr.mxu0 0.0
    %3632 = vmatpush1.msra.mxu0 0.0
    %3633 = vmatprep.subr.mxu0 0.0
    %3634 = vmatpush1.msra.mxu0 0.0
    %3635 = vmatprep.subr.mxu0 0.0
    %3636 = vmatpush1.msra.mxu0 0.0
    %3637 = vmatprep.subr.mxu0 0.0
    %3638 = vmatpush1.msra.mxu0 0.0
    %3639 = vmatprep.mubr.f32.mxu0 0.0
    %3640 = vmatmul.mubr.f32.gmra.mrb[0].mxu0 %v3573
    %v3641 = vpop.f32.mrb[0].mxu0
    %v3642 = vadd.f32 0.0, %v3641
    %v3643 = vpop.f32.mrb[0].mxu0
    %3644 = vdwg.mxu0
    %v3645 = vadd.f32 %v3558, %v3642
    %v3646 = vld [vmem:[%s1427] sm:$0xff]
    %v3647 = vld [vmem:[%s1427 + $0x8] sm:$0xff]
    %v3648 = vld [vmem:[%s1427 + $0x10] sm:$0xff]
    %v3649 = vld [vmem:[%s1427 + $0x18] sm:$0xff]
    %v3650 = vld [vmem:[%s1427 + $0x20] sm:$0xff]
    %v3651 = vld [vmem:[%s1427 + $0x28] sm:$0xff]
    %v3652 = vld [vmem:[%s1427 + $0x30] sm:$0xff]
    %v3653 = vld [vmem:[%s1427 + $0x38] sm:$0xff]
    %v3654 = vld [vmem:[%s1427 + $0x40] sm:$0xff]
    %v3655 = vrot.slane %v3392, 3
    %v3656 = vrot.slane %v3393, 3
    %v3657 = vsel %vm552, %v3655, %v3656
    %v3658 = vsel %vm1196, %v3657, 0
    %3660 = vmatprep.subr.mxu0 0.0
    %3661 = vmatpush1.msra.mxu0 %v3646
    %3662 = vmatprep.subr.mxu0 0.0
    %3663 = vmatpush1.msra.mxu0 %v3647
    %3664 = vmatprep.subr.mxu0 0.0
    %3665 = vmatpush1.msra.mxu0 %v3648
    %3666 = vmatprep.subr.mxu0 0.0
    %3667 = vmatpush1.msra.mxu0 %v3649
    %3668 = vmatprep.subr.mxu0 0.0
    %3669 = vmatpush1.msra.mxu0 %v3650
    %3670 = vmatprep.subr.mxu0 0.0
    %3671 = vmatpush1.msra.mxu0 %v3651
    %3672 = vmatprep.subr.mxu0 0.0
    %3673 = vmatpush1.msra.mxu0 %v3652
    %3674 = vmatprep.subr.mxu0 0.0
    %3675 = vmatpush1.msra.mxu0 %v3653
    %3676 = vmatprep.subr.mxu0 0.0
    %3677 = vmatpush1.msra.mxu0 %v3654
    %3678 = vmatprep.subr.mxu0 0.0
    %3679 = vmatpush1.msra.mxu0 0.0
    %3680 = vmatprep.subr.mxu0 0.0
    %3681 = vmatpush1.msra.mxu0 0.0
    %3682 = vmatprep.subr.mxu0 0.0
    %3683 = vmatpush1.msra.mxu0 0.0
    %3684 = vmatprep.subr.mxu0 0.0
    %3685 = vmatpush1.msra.mxu0 0.0
    %3686 = vmatprep.subr.mxu0 0.0
    %3687 = vmatpush1.msra.mxu0 0.0
    %3688 = vmatprep.subr.mxu0 0.0
    %3689 = vmatpush1.msra.mxu0 0.0
    %3690 = vmatprep.subr.mxu0 0.0
    %3691 = vmatpush1.msra.mxu0 0.0
    %3692 = vmatprep.subr.mxu0 0.0
    %3693 = vmatpush1.msra.mxu0 0.0
    %3694 = vmatprep.subr.mxu0 0.0
    %3695 = vmatpush1.msra.mxu0 0.0
    %3696 = vmatprep.subr.mxu0 0.0
    %3697 = vmatpush1.msra.mxu0 0.0
    %3698 = vmatprep.subr.mxu0 0.0
    %3699 = vmatpush1.msra.mxu0 0.0
    %3700 = vmatprep.subr.mxu0 0.0
    %3701 = vmatpush1.msra.mxu0 0.0
    %3702 = vmatprep.subr.mxu0 0.0
    %3703 = vmatpush1.msra.mxu0 0.0
    %3704 = vmatprep.subr.mxu0 0.0
    %3705 = vmatpush1.msra.mxu0 0.0
    %3706 = vmatprep.subr.mxu0 0.0
    %3707 = vmatpush1.msra.mxu0 0.0
    %3708 = vmatprep.subr.mxu0 0.0
    %3709 = vmatpush1.msra.mxu0 0.0
    %3710 = vmatprep.subr.mxu0 0.0
    %3711 = vmatpush1.msra.mxu0 0.0
    %3712 = vmatprep.subr.mxu0 0.0
    %3713 = vmatpush1.msra.mxu0 0.0
    %3714 = vmatprep.subr.mxu0 0.0
    %3715 = vmatpush1.msra.mxu0 0.0
    %3716 = vmatprep.subr.mxu0 0.0
    %3717 = vmatpush1.msra.mxu0 0.0
    %3718 = vmatprep.subr.mxu0 0.0
    %3719 = vmatpush1.msra.mxu0 0.0
    %3720 = vmatprep.subr.mxu0 0.0
    %3721 = vmatpush1.msra.mxu0 0.0
    %3722 = vmatprep.subr.mxu0 0.0
    %3723 = vmatpush1.msra.mxu0 0.0
    %3724 = vmatprep.mubr.f32.mxu0 0.0
    %3725 = vmatmul.mubr.f32.gmra.mrb[0].mxu0 %v3658
    %v3726 = vpop.f32.mrb[0].mxu0
    %v3727 = vadd.f32 0.0, %v3726
    %v3728 = vpop.f32.mrb[0].mxu0
    %3729 = vdwg.mxu0
    %v3730 = vadd.f32 %v3645, %v3727
    %v3731 = vld [vmem:[%s1513] sm:$0xff]
    %v3732 = vld [vmem:[%s1513 + $0x8] sm:$0xff]
    %v3733 = vld [vmem:[%s1513 + $0x10] sm:$0xff]
    %v3734 = vld [vmem:[%s1513 + $0x18] sm:$0xff]
    %v3735 = vld [vmem:[%s1513 + $0x20] sm:$0xff]
    %v3736 = vld [vmem:[%s1513 + $0x28] sm:$0xff]
    %v3737 = vld [vmem:[%s1513 + $0x30] sm:$0xff]
    %v3738 = vld [vmem:[%s1513 + $0x38] sm:$0xff]
    %v3739 = vld [vmem:[%s1513 + $0x40] sm:$0xff]
    %v3740 = vrot.slane %v3392, 4
    %v3741 = vrot.slane %v3393, 4
    %v3742 = vsel %vm240, %v3740, %v3741
    %v3743 = vsel %vm1196, %v3742, 0
    %3745 = vmatprep.subr.mxu0 0.0
    %3746 = vmatpush1.msra.mxu0 %v3731
    %3747 = vmatprep.subr.mxu0 0.0
    %3748 = vmatpush1.msra.mxu0 %v3732
    %3749 = vmatprep.subr.mxu0 0.0
    %3750 = vmatpush1.msra.mxu0 %v3733
    %3751 = vmatprep.subr.mxu0 0.0
    %3752 = vmatpush1.msra.mxu0 %v3734
    %3753 = vmatprep.subr.mxu0 0.0
    %3754 = vmatpush1.msra.mxu0 %v3735
    %3755 = vmatprep.subr.mxu0 0.0
    %3756 = vmatpush1.msra.mxu0 %v3736
    %3757 = vmatprep.subr.mxu0 0.0
    %3758 = vmatpush1.msra.mxu0 %v3737
    %3759 = vmatprep.subr.mxu0 0.0
    %3760 = vmatpush1.msra.mxu0 %v3738
    %3761 = vmatprep.subr.mxu0 0.0
    %3762 = vmatpush1.msra.mxu0 %v3739
    %3763 = vmatprep.subr.mxu0 0.0
    %3764 = vmatpush1.msra.mxu0 0.0
    %3765 = vmatprep.subr.mxu0 0.0
    %3766 = vmatpush1.msra.mxu0 0.0
    %3767 = vmatprep.subr.mxu0 0.0
    %3768 = vmatpush1.msra.mxu0 0.0
    %3769 = vmatprep.subr.mxu0 0.0
    %3770 = vmatpush1.msra.mxu0 0.0
    %3771 = vmatprep.subr.mxu0 0.0
    %3772 = vmatpush1.msra.mxu0 0.0
    %3773 = vmatprep.subr.mxu0 0.0
    %3774 = vmatpush1.msra.mxu0 0.0
    %3775 = vmatprep.subr.mxu0 0.0
    %3776 = vmatpush1.msra.mxu0 0.0
    %3777 = vmatprep.subr.mxu0 0.0
    %3778 = vmatpush1.msra.mxu0 0.0
    %3779 = vmatprep.subr.mxu0 0.0
    %3780 = vmatpush1.msra.mxu0 0.0
    %3781 = vmatprep.subr.mxu0 0.0
    %3782 = vmatpush1.msra.mxu0 0.0
    %3783 = vmatprep.subr.mxu0 0.0
    %3784 = vmatpush1.msra.mxu0 0.0
    %3785 = vmatprep.subr.mxu0 0.0
    %3786 = vmatpush1.msra.mxu0 0.0
    %3787 = vmatprep.subr.mxu0 0.0
    %3788 = vmatpush1.msra.mxu0 0.0
    %3789 = vmatprep.subr.mxu0 0.0
    %3790 = vmatpush1.msra.mxu0 0.0
    %3791 = vmatprep.subr.mxu0 0.0
    %3792 = vmatpush1.msra.mxu0 0.0
    %3793 = vmatprep.subr.mxu0 0.0
    %3794 = vmatpush1.msra.mxu0 0.0
    %3795 = vmatprep.subr.mxu0 0.0
    %3796 = vmatpush1.msra.mxu0 0.0
    %3797 = vmatprep.subr.mxu0 0.0
    %3798 = vmatpush1.msra.mxu0 0.0
    %3799 = vmatprep.subr.mxu0 0.0
    %3800 = vmatpush1.msra.mxu0 0.0
    %3801 = vmatprep.subr.mxu0 0.0
    %3802 = vmatpush1.msra.mxu0 0.0
    %3803 = vmatprep.subr.mxu0 0.0
    %3804 = vmatpush1.msra.mxu0 0.0
    %3805 = vmatprep.subr.mxu0 0.0
    %3806 = vmatpush1.msra.mxu0 0.0
    %3807 = vmatprep.subr.mxu0 0.0
    %3808 = vmatpush1.msra.mxu0 0.0
    %3809 = vmatprep.mubr.f32.mxu0 0.0
    %3810 = vmatmul.mubr.f32.gmra.mrb[0].mxu0 %v3743
    %v3811 = vpop.f32.mrb[0].mxu0
    %v3812 = vadd.f32 0.0, %v3811
    %v3813 = vpop.f32.mrb[0].mxu0
    %3814 = vdwg.mxu0
    %v3815 = vadd.f32 %v3730, %v3812
    %v3816 = vld [vmem:[#allocation11] sm:$0x1]
    %v3818 = vlaneseq
    %v3819 = vshrl.u32 %v3818, 7
    %v3820 = vsub.s32 0, %v3819
    %v3821 = vrot.slane %v3816, %v3820
    %v3823 = vadd.f32 %v3815, %v3821
    %v3824 = vmax.f32 %v3823, 0.0
    %v3825 = vld [vmem:[%s9] sm:$0xf]
    %v3827 = vsel %vm1609, %v3825, 0
    %3829 = vmatprep.subr.mxu0 0.0
    %3830 = vmatpush1.msra.mxu0 %v3824
    %3831 = vmatprep.subr.mxu0 0.0
    %3832 = vmatpush1.msra.mxu0 0.0
    %3833 = vmatprep.subr.mxu0 0.0
    %3834 = vmatpush1.msra.mxu0 0.0
    %3835 = vmatprep.subr.mxu0 0.0
    %3836 = vmatpush1.msra.mxu0 0.0
    %3837 = vmatprep.subr.mxu0 0.0
    %3838 = vmatpush1.msra.mxu0 0.0
    %3839 = vmatprep.subr.mxu0 0.0
    %3840 = vmatpush1.msra.mxu0 0.0
    %3841 = vmatprep.subr.mxu0 0.0
    %3842 = vmatpush1.msra.mxu0 0.0
    %3843 = vmatprep.subr.mxu0 0.0
    %3844 = vmatpush1.msra.mxu0 0.0
    %3845 = vmatprep.subr.mxu0 0.0
    %3846 = vmatpush1.msra.mxu0 0.0
    %3847 = vmatprep.subr.mxu0 0.0
    %3848 = vmatpush1.msra.mxu0 0.0
    %3849 = vmatprep.subr.mxu0 0.0
    %3850 = vmatpush1.msra.mxu0 0.0
    %3851 = vmatprep.subr.mxu0 0.0
    %3852 = vmatpush1.msra.mxu0 0.0
    %3853 = vmatprep.subr.mxu0 0.0
    %3854 = vmatpush1.msra.mxu0 0.0
    %3855 = vmatprep.subr.mxu0 0.0
    %3856 = vmatpush1.msra.mxu0 0.0
    %3857 = vmatprep.subr.mxu0 0.0
    %3858 = vmatpush1.msra.mxu0 0.0
    %3859 = vmatprep.subr.mxu0 0.0
    %3860 = vmatpush1.msra.mxu0 0.0
    %3861 = vmatprep.subr.mxu0 0.0
    %3862 = vmatpush1.msra.mxu0 0.0
    %3863 = vmatprep.subr.mxu0 0.0
    %3864 = vmatpush1.msra.mxu0 0.0
    %3865 = vmatprep.subr.mxu0 0.0
    %3866 = vmatpush1.msra.mxu0 0.0
    %3867 = vmatprep.subr.mxu0 0.0
    %3868 = vmatpush1.msra.mxu0 0.0
    %3869 = vmatprep.subr.mxu0 0.0
    %3870 = vmatpush1.msra.mxu0 0.0
    %3871 = vmatprep.subr.mxu0 0.0
    %3872 = vmatpush1.msra.mxu0 0.0
    %3873 = vmatprep.subr.mxu0 0.0
    %3874 = vmatpush1.msra.mxu0 0.0
    %3875 = vmatprep.subr.mxu0 0.0
    %3876 = vmatpush1.msra.mxu0 0.0
    %3877 = vmatprep.subr.mxu0 0.0
    %3878 = vmatpush1.msra.mxu0 0.0
    %3879 = vmatprep.subr.mxu0 0.0
    %3880 = vmatpush1.msra.mxu0 0.0
    %3881 = vmatprep.subr.mxu0 0.0
    %3882 = vmatpush1.msra.mxu0 0.0
    %3883 = vmatprep.subr.mxu0 0.0
    %3884 = vmatpush1.msra.mxu0 0.0
    %3885 = vmatprep.subr.mxu0 0.0
    %3886 = vmatpush1.msra.mxu0 0.0
    %3887 = vmatprep.subr.mxu0 0.0
    %3888 = vmatpush1.msra.mxu0 0.0
    %3889 = vmatprep.subr.mxu0 0.0
    %3890 = vmatpush1.msra.mxu0 0.0
    %3891 = vmatprep.subr.mxu0 0.0
    %3892 = vmatpush1.msra.mxu0 0.0
    %3893 = vmatprep.mubr.f32.mxu0 0.0
    %3894 = vmatmul.mubr.f32.gmra.mrb[0].mxu0 %v3827
    %v3895 = vpop.f32.mrb[0].mxu0
    %v3896 = vadd.f32 0.0, %v3895
    %v3897 = vpop.f32.mrb[0].mxu0
    %3898 = vdwg.mxu0
    %v3899 = vld [vmem:[#allocation13] sm:$0xf]
    %v3901 = vsel %vm1609, %v3899, 0
    %3903 = vmatprep.subr.mxu0 0.0
    %3904 = vmatpush1.msra.mxu0 %v3824
    %3905 = vmatprep.subr.mxu0 0.0
    %3906 = vmatpush1.msra.mxu0 0.0
    %3907 = vmatprep.subr.mxu0 0.0
    %3908 = vmatpush1.msra.mxu0 0.0
    %3909 = vmatprep.subr.mxu0 0.0
    %3910 = vmatpush1.msra.mxu0 0.0
    %3911 = vmatprep.subr.mxu0 0.0
    %3912 = vmatpush1.msra.mxu0 0.0
    %3913 = vmatprep.subr.mxu0 0.0
    %3914 = vmatpush1.msra.mxu0 0.0
    %3915 = vmatprep.subr.mxu0 0.0
    %3916 = vmatpush1.msra.mxu0 0.0
    %3917 = vmatprep.subr.mxu0 0.0
    %3918 = vmatpush1.msra.mxu0 0.0
    %3919 = vmatprep.subr.mxu0 0.0
    %3920 = vmatpush1.msra.mxu0 0.0
    %3921 = vmatprep.subr.mxu0 0.0
    %3922 = vmatpush1.msra.mxu0 0.0
    %3923 = vmatprep.subr.mxu0 0.0
    %3924 = vmatpush1.msra.mxu0 0.0
    %3925 = vmatprep.subr.mxu0 0.0
    %3926 = vmatpush1.msra.mxu0 0.0
    %3927 = vmatprep.subr.mxu0 0.0
    %3928 = vmatpush1.msra.mxu0 0.0
    %3929 = vmatprep.subr.mxu0 0.0
    %3930 = vmatpush1.msra.mxu0 0.0
    %3931 = vmatprep.subr.mxu0 0.0
    %3932 = vmatpush1.msra.mxu0 0.0
    %3933 = vmatprep.subr.mxu0 0.0
    %3934 = vmatpush1.msra.mxu0 0.0
    %3935 = vmatprep.subr.mxu0 0.0
    %3936 = vmatpush1.msra.mxu0 0.0
    %3937 = vmatprep.subr.mxu0 0.0
    %3938 = vmatpush1.msra.mxu0 0.0
    %3939 = vmatprep.subr.mxu0 0.0
    %3940 = vmatpush1.msra.mxu0 0.0
    %3941 = vmatprep.subr.mxu0 0.0
    %3942 = vmatpush1.msra.mxu0 0.0
    %3943 = vmatprep.subr.mxu0 0.0
    %3944 = vmatpush1.msra.mxu0 0.0
    %3945 = vmatprep.subr.mxu0 0.0
    %3946 = vmatpush1.msra.mxu0 0.0
    %3947 = vmatprep.subr.mxu0 0.0
    %3948 = vmatpush1.msra.mxu0 0.0
    %3949 = vmatprep.subr.mxu0 0.0
    %3950 = vmatpush1.msra.mxu0 0.0
    %3951 = vmatprep.subr.mxu0 0.0
    %3952 = vmatpush1.msra.mxu0 0.0
    %3953 = vmatprep.subr.mxu0 0.0
    %3954 = vmatpush1.msra.mxu0 0.0
    %3955 = vmatprep.subr.mxu0 0.0
    %3956 = vmatpush1.msra.mxu0 0.0
    %3957 = vmatprep.subr.mxu0 0.0
    %3958 = vmatpush1.msra.mxu0 0.0
    %3959 = vmatprep.subr.mxu0 0.0
    %3960 = vmatpush1.msra.mxu0 0.0
    %3961 = vmatprep.subr.mxu0 0.0
    %3962 = vmatpush1.msra.mxu0 0.0
    %3963 = vmatprep.subr.mxu0 0.0
    %3964 = vmatpush1.msra.mxu0 0.0
    %3965 = vmatprep.subr.mxu0 0.0
    %3966 = vmatpush1.msra.mxu0 0.0
    %3967 = vmatprep.mubr.f32.mxu0 0.0
    %3968 = vmatmul.mubr.f32.gmra.mrb[0].mxu0 %v3901
    %v3969 = vpop.f32.mrb[0].mxu0
    %v3970 = vadd.f32 0.0, %v3969
    %v3971 = vpop.f32.mrb[0].mxu0
    %3972 = vdwg.mxu0
    %v3973 = vmax.f32 %v3896, %v3970
    %v3974 = vld [vmem:[%s11] sm:$0xff]
    %v3975 = vld [vmem:[%s11 + $0x8] sm:$0xff]
    %v3976 = vld [vmem:[%s11 + $0x10] sm:$0xff]
    %v3977 = vld [vmem:[%s11 + $0x18] sm:$0xff]
    %v3978 = vld [vmem:[%s11 + $0x20] sm:$0xff]
    %v3979 = vld [vmem:[%s11 + $0x28] sm:$0xff]
    %v3980 = vld [vmem:[%s11 + $0x30] sm:$0xff]
    %v3981 = vld [vmem:[%s11 + $0x38] sm:$0xff]
    %v3982 = vld [vmem:[%s11 + $0x40] sm:$0xff]
    %v3983 = vld [vmem:[%s11 + $0x48] sm:$0xff]
    %v3984 = vld [vmem:[%s11 + $0x50] sm:$0xff]
    %v3985 = vld [vmem:[%s11 + $0x58] sm:$0xff]
    %v3987 = vsel %vm1770, %v3973, 0
    %3989 = vmatprep.subr.mxu0 0.0
    %3990 = vmatpush1.msra.mxu0 %v3974
    %3991 = vmatprep.subr.mxu0 0.0
    %3992 = vmatpush1.msra.mxu0 %v3975
    %3993 = vmatprep.subr.mxu0 0.0
    %3994 = vmatpush1.msra.mxu0 %v3976
    %3995 = vmatprep.subr.mxu0 0.0
    %3996 = vmatpush1.msra.mxu0 %v3977
    %3997 = vmatprep.subr.mxu0 0.0
    %3998 = vmatpush1.msra.mxu0 %v3978
    %3999 = vmatprep.subr.mxu0 0.0
    %4000 = vmatpush1.msra.mxu0 %v3979
    %4001 = vmatprep.subr.mxu0 0.0
    %4002 = vmatpush1.msra.mxu0 %v3980
    %4003 = vmatprep.subr.mxu0 0.0
    %4004 = vmatpush1.msra.mxu0 %v3981
    %4005 = vmatprep.subr.mxu0 0.0
    %4006 = vmatpush1.msra.mxu0 %v3982
    %4007 = vmatprep.subr.mxu0 0.0
    %4008 = vmatpush1.msra.mxu0 %v3983
    %4009 = vmatprep.subr.mxu0 0.0
    %4010 = vmatpush1.msra.mxu0 %v3984
    %4011 = vmatprep.subr.mxu0 0.0
    %4012 = vmatpush1.msra.mxu0 %v3985
    %4013 = vmatprep.subr.mxu0 0.0
    %4014 = vmatpush1.msra.mxu0 0.0
    %4015 = vmatprep.subr.mxu0 0.0
    %4016 = vmatpush1.msra.mxu0 0.0
    %4017 = vmatprep.subr.mxu0 0.0
    %4018 = vmatpush1.msra.mxu0 0.0
    %4019 = vmatprep.subr.mxu0 0.0
    %4020 = vmatpush1.msra.mxu0 0.0
    %4021 = vmatprep.subr.mxu0 0.0
    %4022 = vmatpush1.msra.mxu0 0.0
    %4023 = vmatprep.subr.mxu0 0.0
    %4024 = vmatpush1.msra.mxu0 0.0
    %4025 = vmatprep.subr.mxu0 0.0
    %4026 = vmatpush1.msra.mxu0 0.0
    %4027 = vmatprep.subr.mxu0 0.0
    %4028 = vmatpush1.msra.mxu0 0.0
    %4029 = vmatprep.subr.mxu0 0.0
    %4030 = vmatpush1.msra.mxu0 0.0
    %4031 = vmatprep.subr.mxu0 0.0
    %4032 = vmatpush1.msra.mxu0 0.0
    %4033 = vmatprep.subr.mxu0 0.0
    %4034 = vmatpush1.msra.mxu0 0.0
    %4035 = vmatprep.subr.mxu0 0.0
    %4036 = vmatpush1.msra.mxu0 0.0
    %4037 = vmatprep.subr.mxu0 0.0
    %4038 = vmatpush1.msra.mxu0 0.0
    %4039 = vmatprep.subr.mxu0 0.0
    %4040 = vmatpush1.msra.mxu0 0.0
    %4041 = vmatprep.subr.mxu0 0.0
    %4042 = vmatpush1.msra.mxu0 0.0
    %4043 = vmatprep.subr.mxu0 0.0
    %4044 = vmatpush1.msra.mxu0 0.0
    %4045 = vmatprep.subr.mxu0 0.0
    %4046 = vmatpush1.msra.mxu0 0.0
    %4047 = vmatprep.subr.mxu0 0.0
    %4048 = vmatpush1.msra.mxu0 0.0
    %4049 = vmatprep.subr.mxu0 0.0
    %4050 = vmatpush1.msra.mxu0 0.0
    %4051 = vmatprep.subr.mxu0 0.0
    %4052 = vmatpush1.msra.mxu0 0.0
    %4053 = vmatprep.mubr.f32.mxu0 0.0
    %4054 = vmatmul.mubr.f32.gmra.mrb[0].mxu0 %v3987
    %v4055 = vpop.f32.mrb[0].mxu0
    %v4056 = vadd.f32 0.0, %v4055
    %v4057 = vpop.f32.mrb[0].mxu0
    %4058 = vdwg.mxu0
    %v4059 = vld [vmem:[%s12] sm:$0xff]
    %v4060 = vld [vmem:[%s12 + $0x8] sm:$0xff]
    %v4061 = vld [vmem:[%s12 + $0x10] sm:$0xff]
    %v4062 = vld [vmem:[%s12 + $0x18] sm:$0xff]
    %v4063 = vld [vmem:[%s12 + $0x20] sm:$0xff]
    %v4064 = vld [vmem:[%s12 + $0x28] sm:$0xff]
    %v4065 = vld [vmem:[%s12 + $0x30] sm:$0xff]
    %v4066 = vld [vmem:[%s12 + $0x38] sm:$0xff]
    %v4067 = vld [vmem:[%s12 + $0x40] sm:$0xff]
    %v4068 = vld [vmem:[%s12 + $0x48] sm:$0xff]
    %v4069 = vld [vmem:[%s12 + $0x50] sm:$0xff]
    %v4070 = vld [vmem:[%s12 + $0x58] sm:$0xff]
    %4071 = vmatprep.subr.mxu0 0.0
    %4072 = vmatpush1.msra.mxu0 %v4059
    %4073 = vmatprep.subr.mxu0 0.0
    %4074 = vmatpush1.msra.mxu0 %v4060
    %4075 = vmatprep.subr.mxu0 0.0
    %4076 = vmatpush1.msra.mxu0 %v4061
    %4077 = vmatprep.subr.mxu0 0.0
    %4078 = vmatpush1.msra.mxu0 %v4062
    %4079 = vmatprep.subr.mxu0 0.0
    %4080 = vmatpush1.msra.mxu0 %v4063
    %4081 = vmatprep.subr.mxu0 0.0
    %4082 = vmatpush1.msra.mxu0 %v4064
    %4083 = vmatprep.subr.mxu0 0.0
    %4084 = vmatpush1.msra.mxu0 %v4065
    %4085 = vmatprep.subr.mxu0 0.0
    %4086 = vmatpush1.msra.mxu0 %v4066
    %4087 = vmatprep.subr.mxu0 0.0
    %4088 = vmatpush1.msra.mxu0 %v4067
    %4089 = vmatprep.subr.mxu0 0.0
    %4090 = vmatpush1.msra.mxu0 %v4068
    %4091 = vmatprep.subr.mxu0 0.0
    %4092 = vmatpush1.msra.mxu0 %v4069
    %4093 = vmatprep.subr.mxu0 0.0
    %4094 = vmatpush1.msra.mxu0 %v4070
    %4095 = vmatprep.subr.mxu0 0.0
    %4096 = vmatpush1.msra.mxu0 0.0
    %4097 = vmatprep.subr.mxu0 0.0
    %4098 = vmatpush1.msra.mxu0 0.0
    %4099 = vmatprep.subr.mxu0 0.0
    %4100 = vmatpush1.msra.mxu0 0.0
    %4101 = vmatprep.subr.mxu0 0.0
    %4102 = vmatpush1.msra.mxu0 0.0
    %4103 = vmatprep.subr.mxu0 0.0
    %4104 = vmatpush1.msra.mxu0 0.0
    %4105 = vmatprep.subr.mxu0 0.0
    %4106 = vmatpush1.msra.mxu0 0.0
    %4107 = vmatprep.subr.mxu0 0.0
    %4108 = vmatpush1.msra.mxu0 0.0
    %4109 = vmatprep.subr.mxu0 0.0
    %4110 = vmatpush1.msra.mxu0 0.0
    %4111 = vmatprep.subr.mxu0 0.0
    %4112 = vmatpush1.msra.mxu0 0.0
    %4113 = vmatprep.subr.mxu0 0.0
    %4114 = vmatpush1.msra.mxu0 0.0
    %4115 = vmatprep.subr.mxu0 0.0
    %4116 = vmatpush1.msra.mxu0 0.0
    %4117 = vmatprep.subr.mxu0 0.0
    %4118 = vmatpush1.msra.mxu0 0.0
    %4119 = vmatprep.subr.mxu0 0.0
    %4120 = vmatpush1.msra.mxu0 0.0
    %4121 = vmatprep.subr.mxu0 0.0
    %4122 = vmatpush1.msra.mxu0 0.0
    %4123 = vmatprep.subr.mxu0 0.0
    %4124 = vmatpush1.msra.mxu0 0.0
    %4125 = vmatprep.subr.mxu0 0.0
    %4126 = vmatpush1.msra.mxu0 0.0
    %4127 = vmatprep.subr.mxu0 0.0
    %4128 = vmatpush1.msra.mxu0 0.0
    %4129 = vmatprep.subr.mxu0 0.0
    %4130 = vmatpush1.msra.mxu0 0.0
    %4131 = vmatprep.subr.mxu0 0.0
    %4132 = vmatpush1.msra.mxu0 0.0
    %4133 = vmatprep.subr.mxu0 0.0
    %4134 = vmatpush1.msra.mxu0 0.0
    %4135 = vmatprep.mubr.f32.mxu0 0.0
    %4136 = vmatmul.mubr.f32.gmra.mrb[0].mxu0 %v3987
    %v4137 = vpop.f32.mrb[0].mxu0
    %v4138 = vadd.f32 0.0, %v4137
    %v4139 = vpop.f32.mrb[0].mxu0
    %4140 = vdwg.mxu0
    %v4141 = vmax.f32 %v4056, %v4138
    %v4142 = vld [vmem:[#allocation16] sm:$0x1]
    %v4143 = vld [vmem:[#allocation14] sm:$0xff]
    %v4144 = vld [vmem:[#allocation14 + $0x8] sm:$0xff]
    %v4145 = vld [vmem:[#allocation14 + $0x10] sm:$0xff]
    %v4146 = vld [vmem:[#allocation14 + $0x18] sm:$0xff]
    %v4147 = vld [vmem:[#allocation14 + $0x20] sm:$0xff]
    %v4148 = vld [vmem:[#allocation14 + $0x28] sm:$0xff]
    %v4150 = vsel %vm1934, %v4141, 0
    %4152 = vmatprep.subr.mxu0 0.0
    %4153 = vmatpush1.msra.mxu0 %v4143
    %4154 = vmatprep.subr.mxu0 0.0
    %4155 = vmatpush1.msra.mxu0 %v4144
    %4156 = vmatprep.subr.mxu0 0.0
    %4157 = vmatpush1.msra.mxu0 %v4145
    %4158 = vmatprep.subr.mxu0 0.0
    %4159 = vmatpush1.msra.mxu0 %v4146
    %4160 = vmatprep.subr.mxu0 0.0
    %4161 = vmatpush1.msra.mxu0 %v4147
    %4162 = vmatprep.subr.mxu0 0.0
    %4163 = vmatpush1.msra.mxu0 %v4148
    %4164 = vmatprep.subr.mxu0 0.0
    %4165 = vmatpush1.msra.mxu0 0.0
    %4166 = vmatprep.subr.mxu0 0.0
    %4167 = vmatpush1.msra.mxu0 0.0
    %4168 = vmatprep.subr.mxu0 0.0
    %4169 = vmatpush1.msra.mxu0 0.0
    %4170 = vmatprep.subr.mxu0 0.0
    %4171 = vmatpush1.msra.mxu0 0.0
    %4172 = vmatprep.subr.mxu0 0.0
    %4173 = vmatpush1.msra.mxu0 0.0
    %4174 = vmatprep.subr.mxu0 0.0
    %4175 = vmatpush1.msra.mxu0 0.0
    %4176 = vmatprep.subr.mxu0 0.0
    %4177 = vmatpush1.msra.mxu0 0.0
    %4178 = vmatprep.subr.mxu0 0.0
    %4179 = vmatpush1.msra.mxu0 0.0
    %4180 = vmatprep.subr.mxu0 0.0
    %4181 = vmatpush1.msra.mxu0 0.0
    %4182 = vmatprep.subr.mxu0 0.0
    %4183 = vmatpush1.msra.mxu0 0.0
    %4184 = vmatprep.subr.mxu0 0.0
    %4185 = vmatpush1.msra.mxu0 0.0
    %4186 = vmatprep.subr.mxu0 0.0
    %4187 = vmatpush1.msra.mxu0 0.0
    %4188 = vmatprep.subr.mxu0 0.0
    %4189 = vmatpush1.msra.mxu0 0.0
    %4190 = vmatprep.subr.mxu0 0.0
    %4191 = vmatpush1.msra.mxu0 0.0
    %4192 = vmatprep.subr.mxu0 0.0
    %4193 = vmatpush1.msra.mxu0 0.0
    %4194 = vmatprep.subr.mxu0 0.0
    %4195 = vmatpush1.msra.mxu0 0.0
    %4196 = vmatprep.subr.mxu0 0.0
    %4197 = vmatpush1.msra.mxu0 0.0
    %4198 = vmatprep.subr.mxu0 0.0
    %4199 = vmatpush1.msra.mxu0 0.0
    %4200 = vmatprep.subr.mxu0 0.0
    %4201 = vmatpush1.msra.mxu0 0.0
    %4202 = vmatprep.subr.mxu0 0.0
    %4203 = vmatpush1.msra.mxu0 0.0
    %4204 = vmatprep.subr.mxu0 0.0
    %4205 = vmatpush1.msra.mxu0 0.0
    %4206 = vmatprep.subr.mxu0 0.0
    %4207 = vmatpush1.msra.mxu0 0.0
    %4208 = vmatprep.subr.mxu0 0.0
    %4209 = vmatpush1.msra.mxu0 0.0
    %4210 = vmatprep.subr.mxu0 0.0
    %4211 = vmatpush1.msra.mxu0 0.0
    %4212 = vmatprep.subr.mxu0 0.0
    %4213 = vmatpush1.msra.mxu0 0.0
    %4214 = vmatprep.subr.mxu0 0.0
    %4215 = vmatpush1.msra.mxu0 0.0
    %4216 = vmatprep.mubr.f32.mxu0 0.0
    %4217 = vmatmul.mubr.f32.gmra.mrb[0].mxu0 %v4150
    %v4218 = vpop.f32.mrb[0].mxu0
    %v4219 = vadd.f32 0.0, %v4218
    %v4220 = vpop.f32.mrb[0].mxu0
    %4221 = vdwg.mxu0
    %v4222 = vadd.f32 %v4142, %v4219
    %v4223 = vld [vmem:[%s2009] sm:$0xff]
    %v4224 = vld [vmem:[%s2009 + $0x8] sm:$0xff]
    %v4225 = vld [vmem:[%s2009 + $0x10] sm:$0xff]
    %v4226 = vld [vmem:[%s2009 + $0x18] sm:$0xff]
    %v4227 = vld [vmem:[%s2009 + $0x20] sm:$0xff]
    %v4228 = vld [vmem:[%s2009 + $0x28] sm:$0xff]
    %v4229 = vrot.slane %v4141, 1
    %v4230 = vsel %vm1934, %v4229, 0
    %4232 = vmatprep.subr.mxu0 0.0
    %4233 = vmatpush1.msra.mxu0 %v4223
    %4234 = vmatprep.subr.mxu0 0.0
    %4235 = vmatpush1.msra.mxu0 %v4224
    %4236 = vmatprep.subr.mxu0 0.0
    %4237 = vmatpush1.msra.mxu0 %v4225
    %4238 = vmatprep.subr.mxu0 0.0
    %4239 = vmatpush1.msra.mxu0 %v4226
    %4240 = vmatprep.subr.mxu0 0.0
    %4241 = vmatpush1.msra.mxu0 %v4227
    %4242 = vmatprep.subr.mxu0 0.0
    %4243 = vmatpush1.msra.mxu0 %v4228
    %4244 = vmatprep.subr.mxu0 0.0
    %4245 = vmatpush1.msra.mxu0 0.0
    %4246 = vmatprep.subr.mxu0 0.0
    %4247 = vmatpush1.msra.mxu0 0.0
    %4248 = vmatprep.subr.mxu0 0.0
    %4249 = vmatpush1.msra.mxu0 0.0
    %4250 = vmatprep.subr.mxu0 0.0
    %4251 = vmatpush1.msra.mxu0 0.0
    %4252 = vmatprep.subr.mxu0 0.0
    %4253 = vmatpush1.msra.mxu0 0.0
    %4254 = vmatprep.subr.mxu0 0.0
    %4255 = vmatpush1.msra.mxu0 0.0
    %4256 = vmatprep.subr.mxu0 0.0
    %4257 = vmatpush1.msra.mxu0 0.0
    %4258 = vmatprep.subr.mxu0 0.0
    %4259 = vmatpush1.msra.mxu0 0.0
    %4260 = vmatprep.subr.mxu0 0.0
    %4261 = vmatpush1.msra.mxu0 0.0
    %4262 = vmatprep.subr.mxu0 0.0
    %4263 = vmatpush1.msra.mxu0 0.0
    %4264 = vmatprep.subr.mxu0 0.0
    %4265 = vmatpush1.msra.mxu0 0.0
    %4266 = vmatprep.subr.mxu0 0.0
    %4267 = vmatpush1.msra.mxu0 0.0
    %4268 = vmatprep.subr.mxu0 0.0
    %4269 = vmatpush1.msra.mxu0 0.0
    %4270 = vmatprep.subr.mxu0 0.0
    %4271 = vmatpush1.msra.mxu0 0.0
    %4272 = vmatprep.subr.mxu0 0.0
    %4273 = vmatpush1.msra.mxu0 0.0
    %4274 = vmatprep.subr.mxu0 0.0
    %4275 = vmatpush1.msra.mxu0 0.0
    %4276 = vmatprep.subr.mxu0 0.0
    %4277 = vmatpush1.msra.mxu0 0.0
    %4278 = vmatprep.subr.mxu0 0.0
    %4279 = vmatpush1.msra.mxu0 0.0
    %4280 = vmatprep.subr.mxu0 0.0
    %4281 = vmatpush1.msra.mxu0 0.0
    %4282 = vmatprep.subr.mxu0 0.0
    %4283 = vmatpush1.msra.mxu0 0.0
    %4284 = vmatprep.subr.mxu0 0.0
    %4285 = vmatpush1.msra.mxu0 0.0
    %4286 = vmatprep.subr.mxu0 0.0
    %4287 = vmatpush1.msra.mxu0 0.0
    %4288 = vmatprep.subr.mxu0 0.0
    %4289 = vmatpush1.msra.mxu0 0.0
    %4290 = vmatprep.subr.mxu0 0.0
    %4291 = vmatpush1.msra.mxu0 0.0
    %4292 = vmatprep.subr.mxu0 0.0
    %4293 = vmatpush1.msra.mxu0 0.0
    %4294 = vmatprep.subr.mxu0 0.0
    %4295 = vmatpush1.msra.mxu0 0.0
    %4296 = vmatprep.mubr.f32.mxu0 0.0
    %4297 = vmatmul.mubr.f32.gmra.mrb[0].mxu0 %v4230
    %v4298 = vpop.f32.mrb[0].mxu0
    %v4299 = vadd.f32 0.0, %v4298
    %v4300 = vpop.f32.mrb[0].mxu0
    %4301 = vdwg.mxu0
    %v4302 = vadd.f32 %v4222, %v4299
    %v4303 = vld [vmem:[%s2090] sm:$0xff]
    %v4304 = vld [vmem:[%s2090 + $0x8] sm:$0xff]
    %v4305 = vld [vmem:[%s2090 + $0x10] sm:$0xff]
    %v4306 = vld [vmem:[%s2090 + $0x18] sm:$0xff]
    %v4307 = vld [vmem:[%s2090 + $0x20] sm:$0xff]
    %v4308 = vld [vmem:[%s2090 + $0x28] sm:$0xff]
    %v4309 = vrot.slane %v4141, 2
    %v4310 = vsel %vm1934, %v4309, 0
    %4312 = vmatprep.subr.mxu0 0.0
    %4313 = vmatpush1.msra.mxu0 %v4303
    %4314 = vmatprep.subr.mxu0 0.0
    %4315 = vmatpush1.msra.mxu0 %v4304
    %4316 = vmatprep.subr.mxu0 0.0
    %4317 = vmatpush1.msra.mxu0 %v4305
    %4318 = vmatprep.subr.mxu0 0.0
    %4319 = vmatpush1.msra.mxu0 %v4306
    %4320 = vmatprep.subr.mxu0 0.0
    %4321 = vmatpush1.msra.mxu0 %v4307
    %4322 = vmatprep.subr.mxu0 0.0
    %4323 = vmatpush1.msra.mxu0 %v4308
    %4324 = vmatprep.subr.mxu0 0.0
    %4325 = vmatpush1.msra.mxu0 0.0
    %4326 = vmatprep.subr.mxu0 0.0
    %4327 = vmatpush1.msra.mxu0 0.0
    %4328 = vmatprep.subr.mxu0 0.0
    %4329 = vmatpush1.msra.mxu0 0.0
    %4330 = vmatprep.subr.mxu0 0.0
    %4331 = vmatpush1.msra.mxu0 0.0
    %4332 = vmatprep.subr.mxu0 0.0
    %4333 = vmatpush1.msra.mxu0 0.0
    %4334 = vmatprep.subr.mxu0 0.0
    %4335 = vmatpush1.msra.mxu0 0.0
    %4336 = vmatprep.subr.mxu0 0.0
    %4337 = vmatpush1.msra.mxu0 0.0
    %4338 = vmatprep.subr.mxu0 0.0
    %4339 = vmatpush1.msra.mxu0 0.0
    %4340 = vmatprep.subr.mxu0 0.0
    %4341 = vmatpush1.msra.mxu0 0.0
    %4342 = vmatprep.subr.mxu0 0.0
    %4343 = vmatpush1.msra.mxu0 0.0
    %4344 = vmatprep.subr.mxu0 0.0
    %4345 = vmatpush1.msra.mxu0 0.0
    %4346 = vmatprep.subr.mxu0 0.0
    %4347 = vmatpush1.msra.mxu0 0.0
    %4348 = vmatprep.subr.mxu0 0.0
    %4349 = vmatpush1.msra.mxu0 0.0
    %4350 = vmatprep.subr.mxu0 0.0
    %4351 = vmatpush1.msra.mxu0 0.0
    %4352 = vmatprep.subr.mxu0 0.0
    %4353 = vmatpush1.msra.mxu0 0.0
    %4354 = vmatprep.subr.mxu0 0.0
    %4355 = vmatpush1.msra.mxu0 0.0
    %4356 = vmatprep.subr.mxu0 0.0
    %4357 = vmatpush1.msra.mxu0 0.0
    %4358 = vmatprep.subr.mxu0 0.0
    %4359 = vmatpush1.msra.mxu0 0.0
    %4360 = vmatprep.subr.mxu0 0.0
    %4361 = vmatpush1.msra.mxu0 0.0
    %4362 = vmatprep.subr.mxu0 0.0
    %4363 = vmatpush1.msra.mxu0 0.0
    %4364 = vmatprep.subr.mxu0 0.0
    %4365 = vmatpush1.msra.mxu0 0.0
    %4366 = vmatprep.subr.mxu0 0.0
    %4367 = vmatpush1.msra.mxu0 0.0
    %4368 = vmatprep.subr.mxu0 0.0
    %4369 = vmatpush1.msra.mxu0 0.0
    %4370 = vmatprep.subr.mxu0 0.0
    %4371 = vmatpush1.msra.mxu0 0.0
    %4372 = vmatprep.subr.mxu0 0.0
    %4373 = vmatpush1.msra.mxu0 0.0
    %4374 = vmatprep.subr.mxu0 0.0
    %4375 = vmatpush1.msra.mxu0 0.0
    %4376 = vmatprep.mubr.f32.mxu0 0.0
    %4377 = vmatmul.mubr.f32.gmra.mrb[0].mxu0 %v4310
    %v4378 = vpop.f32.mrb[0].mxu0
    %v4379 = vadd.f32 0.0, %v4378
    %v4380 = vpop.f32.mrb[0].mxu0
    %4381 = vdwg.mxu0
    %v4382 = vadd.f32 %v4302, %v4379
    %v4383 = vld [vmem:[%s2171] sm:$0xff]
    %v4384 = vld [vmem:[%s2171 + $0x8] sm:$0xff]
    %v4385 = vld [vmem:[%s2171 + $0x10] sm:$0xff]
    %v4386 = vld [vmem:[%s2171 + $0x18] sm:$0xff]
    %v4387 = vld [vmem:[%s2171 + $0x20] sm:$0xff]
    %v4388 = vld [vmem:[%s2171 + $0x28] sm:$0xff]
    %v4389 = vrot.slane %v4141, 3
    %v4390 = vsel %vm1934, %v4389, 0
    %4392 = vmatprep.subr.mxu0 0.0
    %4393 = vmatpush1.msra.mxu0 %v4383
    %4394 = vmatprep.subr.mxu0 0.0
    %4395 = vmatpush1.msra.mxu0 %v4384
    %4396 = vmatprep.subr.mxu0 0.0
    %4397 = vmatpush1.msra.mxu0 %v4385
    %4398 = vmatprep.subr.mxu0 0.0
    %4399 = vmatpush1.msra.mxu0 %v4386
    %4400 = vmatprep.subr.mxu0 0.0
    %4401 = vmatpush1.msra.mxu0 %v4387
    %4402 = vmatprep.subr.mxu0 0.0
    %4403 = vmatpush1.msra.mxu0 %v4388
    %4404 = vmatprep.subr.mxu0 0.0
    %4405 = vmatpush1.msra.mxu0 0.0
    %4406 = vmatprep.subr.mxu0 0.0
    %4407 = vmatpush1.msra.mxu0 0.0
    %4408 = vmatprep.subr.mxu0 0.0
    %4409 = vmatpush1.msra.mxu0 0.0
    %4410 = vmatprep.subr.mxu0 0.0
    %4411 = vmatpush1.msra.mxu0 0.0
    %4412 = vmatprep.subr.mxu0 0.0
    %4413 = vmatpush1.msra.mxu0 0.0
    %4414 = vmatprep.subr.mxu0 0.0
    %4415 = vmatpush1.msra.mxu0 0.0
    %4416 = vmatprep.subr.mxu0 0.0
    %4417 = vmatpush1.msra.mxu0 0.0
    %4418 = vmatprep.subr.mxu0 0.0
    %4419 = vmatpush1.msra.mxu0 0.0
    %4420 = vmatprep.subr.mxu0 0.0
    %4421 = vmatpush1.msra.mxu0 0.0
    %4422 = vmatprep.subr.mxu0 0.0
    %4423 = vmatpush1.msra.mxu0 0.0
    %4424 = vmatprep.subr.mxu0 0.0
    %4425 = vmatpush1.msra.mxu0 0.0
    %4426 = vmatprep.subr.mxu0 0.0
    %4427 = vmatpush1.msra.mxu0 0.0
    %4428 = vmatprep.subr.mxu0 0.0
    %4429 = vmatpush1.msra.mxu0 0.0
    %4430 = vmatprep.subr.mxu0 0.0
    %4431 = vmatpush1.msra.mxu0 0.0
    %4432 = vmatprep.subr.mxu0 0.0
    %4433 = vmatpush1.msra.mxu0 0.0
    %4434 = vmatprep.subr.mxu0 0.0
    %4435 = vmatpush1.msra.mxu0 0.0
    %4436 = vmatprep.subr.mxu0 0.0
    %4437 = vmatpush1.msra.mxu0 0.0
    %4438 = vmatprep.subr.mxu0 0.0
    %4439 = vmatpush1.msra.mxu0 0.0
    %4440 = vmatprep.subr.mxu0 0.0
    %4441 = vmatpush1.msra.mxu0 0.0
    %4442 = vmatprep.subr.mxu0 0.0
    %4443 = vmatpush1.msra.mxu0 0.0
    %4444 = vmatprep.subr.mxu0 0.0
    %4445 = vmatpush1.msra.mxu0 0.0
    %4446 = vmatprep.subr.mxu0 0.0
    %4447 = vmatpush1.msra.mxu0 0.0
    %4448 = vmatprep.subr.mxu0 0.0
    %4449 = vmatpush1.msra.mxu0 0.0
    %4450 = vmatprep.subr.mxu0 0.0
    %4451 = vmatpush1.msra.mxu0 0.0
    %4452 = vmatprep.subr.mxu0 0.0
    %4453 = vmatpush1.msra.mxu0 0.0
    %4454 = vmatprep.subr.mxu0 0.0
    %4455 = vmatpush1.msra.mxu0 0.0
    %4456 = vmatprep.mubr.f32.mxu0 0.0
    %4457 = vmatmul.mubr.f32.gmra.mrb[0].mxu0 %v4390
    %v4458 = vpop.f32.mrb[0].mxu0
    %v4459 = vadd.f32 0.0, %v4458
    %v4460 = vpop.f32.mrb[0].mxu0
    %4461 = vdwg.mxu0
    %v4462 = vadd.f32 %v4382, %v4459
    %v4463 = vmax.f32 %v4462, 0.0
    %v4464 = vld [vmem:[%s15] sm:$0xff]
    %v4465 = vld [vmem:[%s15 + $0x8] sm:$0xff]
    %v4466 = vld [vmem:[%s15 + $0x10] sm:$0xff]
    %v4467 = vld [vmem:[%s15 + $0x18] sm:$0xff]
    %v4468 = vld [vmem:[%s15 + $0x20] sm:$0xff]
    %v4469 = vld [vmem:[%s15 + $0x28] sm:$0xff]
    %v4470 = vld [vmem:[%s15 + $0x30] sm:$0xff]
    %v4471 = vld [vmem:[%s15 + $0x38] sm:$0xff]
    %v4472 = vld [vmem:[%s15 + $0x40] sm:$0xff]
    %v4473 = vld [vmem:[%s15 + $0x48] sm:$0xff]
    %v4474 = vld [vmem:[%s15 + $0x50] sm:$0xff]
    %v4475 = vld [vmem:[%s15 + $0x58] sm:$0xff]
    %v4476 = vld [vmem:[%s15 + $0x60] sm:$0xff]
    %v4477 = vld [vmem:[%s15 + $0x68] sm:$0xff]
    %v4478 = vld [vmem:[%s15 + $0x70] sm:$0xff]
    %v4479 = vld [vmem:[#allocation17] sm:$0x1]
    %v4481 = vsel %vm2269, %v4463, 0
    %4483 = vmatprep.subr.mxu0 0.0
    %4484 = vmatpush1.msra.mxu0 %v4464
    %4485 = vmatprep.subr.mxu0 0.0
    %4486 = vmatpush1.msra.mxu0 %v4465
    %4487 = vmatprep.subr.mxu0 0.0
    %4488 = vmatpush1.msra.mxu0 %v4466
    %4489 = vmatprep.subr.mxu0 0.0
    %4490 = vmatpush1.msra.mxu0 %v4467
    %4491 = vmatprep.subr.mxu0 0.0
    %4492 = vmatpush1.msra.mxu0 %v4468
    %4493 = vmatprep.subr.mxu0 0.0
    %4494 = vmatpush1.msra.mxu0 %v4469
    %4495 = vmatprep.subr.mxu0 0.0
    %4496 = vmatpush1.msra.mxu0 %v4470
    %4497 = vmatprep.subr.mxu0 0.0
    %4498 = vmatpush1.msra.mxu0 %v4471
    %4499 = vmatprep.subr.mxu0 0.0
    %4500 = vmatpush1.msra.mxu0 %v4472
    %4501 = vmatprep.subr.mxu0 0.0
    %4502 = vmatpush1.msra.mxu0 %v4473
    %4503 = vmatprep.subr.mxu0 0.0
    %4504 = vmatpush1.msra.mxu0 %v4474
    %4505 = vmatprep.subr.mxu0 0.0
    %4506 = vmatpush1.msra.mxu0 %v4475
    %4507 = vmatprep.subr.mxu0 0.0
    %4508 = vmatpush1.msra.mxu0 %v4476
    %4509 = vmatprep.subr.mxu0 0.0
    %4510 = vmatpush1.msra.mxu0 %v4477
    %4511 = vmatprep.subr.mxu0 0.0
    %4512 = vmatpush1.msra.mxu0 %v4478
    %4513 = vmatprep.subr.mxu0 0.0
    %4514 = vmatpush1.msra.mxu0 0.0
    %4515 = vmatprep.subr.mxu0 0.0
    %4516 = vmatpush1.msra.mxu0 0.0
    %4517 = vmatprep.subr.mxu0 0.0
    %4518 = vmatpush1.msra.mxu0 0.0
    %4519 = vmatprep.subr.mxu0 0.0
    %4520 = vmatpush1.msra.mxu0 0.0
    %4521 = vmatprep.subr.mxu0 0.0
    %4522 = vmatpush1.msra.mxu0 0.0
    %4523 = vmatprep.subr.mxu0 0.0
    %4524 = vmatpush1.msra.mxu0 0.0
    %4525 = vmatprep.subr.mxu0 0.0
    %4526 = vmatpush1.msra.mxu0 0.0
    %4527 = vmatprep.subr.mxu0 0.0
    %4528 = vmatpush1.msra.mxu0 0.0
    %4529 = vmatprep.subr.mxu0 0.0
    %4530 = vmatpush1.msra.mxu0 0.0
    %4531 = vmatprep.subr.mxu0 0.0
    %4532 = vmatpush1.msra.mxu0 0.0
    %4533 = vmatprep.subr.mxu0 0.0
    %4534 = vmatpush1.msra.mxu0 0.0
    %4535 = vmatprep.subr.mxu0 0.0
    %4536 = vmatpush1.msra.mxu0 0.0
    %4537 = vmatprep.subr.mxu0 0.0
    %4538 = vmatpush1.msra.mxu0 0.0
    %4539 = vmatprep.subr.mxu0 0.0
    %4540 = vmatpush1.msra.mxu0 0.0
    %4541 = vmatprep.subr.mxu0 0.0
    %4542 = vmatpush1.msra.mxu0 0.0
    %4543 = vmatprep.subr.mxu0 0.0
    %4544 = vmatpush1.msra.mxu0 0.0
    %4545 = vmatprep.subr.mxu0 0.0
    %4546 = vmatpush1.msra.mxu0 0.0
    %4547 = vmatprep.mubr.f32.mxu0 0.0
    %4548 = vmatmul.mubr.f32.gmra.mrb[0].mxu0 %v4481
    %v4549 = vpop.f32.mrb[0].mxu0
    %v4550 = vadd.f32 %v4479, %v4549
    %v4551 = vpop.f32.mrb[0].mxu0
    %4552 = vdwg.mxu0
    %v4553 = vmax.f32 %v4550, 0.0
    %v4554 = vld [vmem:[%s17] sm:$0xff]
    %v4555 = vld [vmem:[%s17 + $0x8] sm:$0xff]
    %v4556 = vld [vmem:[%s17 + $0x10] sm:$0xff]
    %v4557 = vld [vmem:[%s17 + $0x18] sm:$0xff]
    %v4558 = vld [vmem:[%s17 + $0x20] sm:$0xff]
    %v4559 = vld [vmem:[%s17 + $0x28] sm:$0xff]
    %v4560 = vld [vmem:[%s17 + $0x30] sm:$0xff]
    %v4561 = vld [vmem:[%s17 + $0x38] sm:$0xf]
    %v4562 = vld [vmem:[#allocation19] sm:$0x1]
    %v4564 = vsel %vm2353, %v4553, 0
    %v4567 = vsel %vm240, %v4561, 0
    %4569 = vmatprep.subr.mxu0 0.0
    %4570 = vmatpush1.msra.mxu0 %v4554
    %4571 = vmatprep.subr.mxu0 0.0
    %4572 = vmatpush1.msra.mxu0 %v4555
    %4573 = vmatprep.subr.mxu0 0.0
    %4574 = vmatpush1.msra.mxu0 %v4556
    %4575 = vmatprep.subr.mxu0 0.0
    %4576 = vmatpush1.msra.mxu0 %v4557
    %4577 = vmatprep.subr.mxu0 0.0
    %4578 = vmatpush1.msra.mxu0 %v4558
    %4579 = vmatprep.subr.mxu0 0.0
    %4580 = vmatpush1.msra.mxu0 %v4559
    %4581 = vmatprep.subr.mxu0 0.0
    %4582 = vmatpush1.msra.mxu0 %v4560
    %4583 = vmatprep.subr.mxu0 0.0
    %4584 = vmatpush1.msra.mxu0 %v4567
    %4585 = vmatprep.subr.mxu0 0.0
    %4586 = vmatpush1.msra.mxu0 0.0
    %4587 = vmatprep.subr.mxu0 0.0
    %4588 = vmatpush1.msra.mxu0 0.0
    %4589 = vmatprep.subr.mxu0 0.0
    %4590 = vmatpush1.msra.mxu0 0.0
    %4591 = vmatprep.subr.mxu0 0.0
    %4592 = vmatpush1.msra.mxu0 0.0
    %4593 = vmatprep.subr.mxu0 0.0
    %4594 = vmatpush1.msra.mxu0 0.0
    %4595 = vmatprep.subr.mxu0 0.0
    %4596 = vmatpush1.msra.mxu0 0.0
    %4597 = vmatprep.subr.mxu0 0.0
    %4598 = vmatpush1.msra.mxu0 0.0
    %4599 = vmatprep.subr.mxu0 0.0
    %4600 = vmatpush1.msra.mxu0 0.0
    %4601 = vmatprep.subr.mxu0 0.0
    %4602 = vmatpush1.msra.mxu0 0.0
    %4603 = vmatprep.subr.mxu0 0.0
    %4604 = vmatpush1.msra.mxu0 0.0
    %4605 = vmatprep.subr.mxu0 0.0
    %4606 = vmatpush1.msra.mxu0 0.0
    %4607 = vmatprep.subr.mxu0 0.0
    %4608 = vmatpush1.msra.mxu0 0.0
    %4609 = vmatprep.subr.mxu0 0.0
    %4610 = vmatpush1.msra.mxu0 0.0
    %4611 = vmatprep.subr.mxu0 0.0
    %4612 = vmatpush1.msra.mxu0 0.0
    %4613 = vmatprep.subr.mxu0 0.0
    %4614 = vmatpush1.msra.mxu0 0.0
    %4615 = vmatprep.subr.mxu0 0.0
    %4616 = vmatpush1.msra.mxu0 0.0
    %4617 = vmatprep.subr.mxu0 0.0
    %4618 = vmatpush1.msra.mxu0 0.0
    %4619 = vmatprep.subr.mxu0 0.0
    %4620 = vmatpush1.msra.mxu0 0.0
    %4621 = vmatprep.subr.mxu0 0.0
    %4622 = vmatpush1.msra.mxu0 0.0
    %4623 = vmatprep.subr.mxu0 0.0
    %4624 = vmatpush1.msra.mxu0 0.0
    %4625 = vmatprep.subr.mxu0 0.0
    %4626 = vmatpush1.msra.mxu0 0.0
    %4627 = vmatprep.subr.mxu0 0.0
    %4628 = vmatpush1.msra.mxu0 0.0
    %4629 = vmatprep.subr.mxu0 0.0
    %4630 = vmatpush1.msra.mxu0 0.0
    %4631 = vmatprep.subr.mxu0 0.0
    %4632 = vmatpush1.msra.mxu0 0.0
    %4633 = vmatprep.mubr.f32.mxu0 0.0
    %4634 = vmatmul.mubr.f32.gmra.mrb[0].mxu0 %v4564
    %v4635 = vpop.f32.mrb[0].mxu0
    %v4636 = vadd.f32 %v4562, %v4635
    %v4637 = vpop.f32.mrb[0].mxu0
    %4638 = vdwg.mxu0
    %4639 = vst.msk [vmem:[#allocation20 + $0x1] sm:$0x1] %vm2430, %v4636
    // Predicated region
    $region122: #{network_forward.1} parent=1 // pred_check
      _
    $region123: #{network_forward.1} parent=1 // pred_check_branch
      %4641 = sbr.rel (0) target = $region125
    $region124: #{network_forward.1} parent=1 // pred_region
      %s4643 = ssub.s32 32, 32
      %4644 = vsyncadd [#allocation4], %s4643
      %s4646 = sshll.u32 [#allocation20], 4
      %s4647 = int_to_ptr.vmem [resolvable:$true] %s4646
      %4649 = dma.vmem_to_hbm [thread:$0]  %s4647, 32, %s19, [#allocation4]
    $region125: #{network_forward.1} parent=1 // pred_fallthru
      _
    // Predicated region
    $region126: #{network_forward.1} parent=1 // pred_check
      _
    $region127: #{network_forward.1} parent=1 // pred_check_branch
      %4651 = sbr.rel (0) target = $region129
    $region128: #{network_forward.1} parent=1 // pred_region
      %4652 = dma.done [#allocation4], 32
    $region129: #{network_forward.1} parent=1 // pred_fallthru
      _
    %4653 = vsyncpa [#allocation3], 1
    %4654 = vsyncpa [#allocation6], 1
    %4655 = vsyncpa [#allocation9], 1
    %4656 = vsyncpa [#allocation12], 1
    %4657 = vsyncpa [#allocation15], 1
    %4658 = vsyncpa [#allocation18], 1
    %4659 = vsyncpa [#allocation4], 1

</llo_original>
